<compile_context>
chip_gen: v5e
topology: v5e:2x2
jax: 0.10.0
libtpu: 0.0.40
codegen_flags: <defaults>
</compile_context>

<pallas_src>
import functools

import jax
import jax.numpy as jnp
from jax.experimental import pallas as pl
from jax.experimental.pallas import tpu as pltpu

HEADS = 12
NUM_CLASSES = 40
NUM_FEATURES = 128


def _round_up(x, m):
    return ((x + m - 1) // m) * m


# ---------------------------------------------------------------------------
# Kernel helpers (traced inside the single fused kernel)
# ---------------------------------------------------------------------------
def _elu(x):
    # exp only sees non-positive inputs -> no transient inf for large positive x.
    return jnp.where(x > 0, x, jnp.exp(jnp.minimum(x, 0.0)) - 1.0)


def _fused_forward_kernel(x_ref, adjf_ref,
                          wlr1_ref, blr1_ref, a1_ref, bias1_ref,
                          wlr2_ref, blr2_ref, a2_ref, bias2_ref,
                          hmask_ref, w3_ref, b3_ref, w4_ref, b4_ref,
                          o_ref):
    n = x_ref.shape[0]
    # Additive attention mask, flat [N*N, 1]: 0 on edges, -1e30 elsewhere.
    mbias = jnp.where(adjf_ref[...] > 0.0,
                      jnp.float32(0.0), jnp.float32(-1e30))      # [N*N, 1]
    hmask = hmask_ref[...]                                        # [H, HD_pad]

    def gat_layer(h_in, wlr, blr, a_bd, bias):
        """One GATv2Conv layer (all heads batched) + conv bias + fused ELU."""
        hd_pad, heads = a_bd.shape
        # Fused lin_l|lin_r projection, padded to 128-lane halves.
        xlr = jnp.dot(h_in, wlr, preferred_element_type=jnp.float32) + blr
        xl = xlr[:, :hd_pad]          # lin_l(x): source-node features (j)
        xr = xlr[:, hd_pad:]          # lin_r(x): target-node features (i)

        # All-heads pairwise scores, lane-dense along the feature axis.
        s = xr[:, None, :] + xl[None, :, :]            # [N_i, N_j, HD_pad]
        s = jnp.where(s > 0, s, 0.2 * s)               # LeakyReLU(0.2)
        # Per-head "att . s" as ONE block-diagonal MXU matmul (padding rows = 0).
        e = jnp.dot(s.reshape(n * n, hd_pad), a_bd,
                    preferred_element_type=jnp.float32)            # [N*N, H]
        e = (e + mbias).reshape(n, n, heads)                       # mask non-edges

        # Softmax over source nodes j (axis=1), all heads in one max/sum.
        m = jnp.max(e, axis=1, keepdims=True)                      # [N, 1, H]
        p = jnp.exp(e - m)            # masked entries underflow to exactly 0
        denom = jnp.sum(p, axis=1, keepdims=True)                  # [N, 1, H]
        pn = p * (1.0 / denom)        # exact normalization (tiny [N,1,H] divide)

        # Expand per-head weights to feature lanes (MXU) and aggregate once.
        q = jnp.dot(pn.reshape(n * n, heads), hmask,
                    preferred_element_type=jnp.float32).reshape(n, n, hd_pad)
        agg = jnp.sum(q * xl[None, :, :], axis=1)                  # [N, HD_pad]
        return _elu(agg + bias)       # padding lanes stay exactly 0

    # gat1 + elu, gat2 + elu (slab stays in registers, padded to 128 lanes)
    h = gat_layer(x_ref[...], wlr1_ref[...], blr1_ref[...],
                  a1_ref[...], bias1_ref[...])
    h = gat_layer(h, wlr2_ref[...], blr2_ref[...],
                  a2_ref[...], bias2_ref[...])

    # linear1 + elu
    h = _elu(jnp.dot(h, w3_ref[...], preferred_element_type=jnp.float32)
             + b3_ref[...])
    # linear2 + log_softmax
    y = jnp.dot(h, w4_ref[...], preferred_element_type=jnp.float32) + b4_ref[...]
    z = y - jnp.max(y, axis=-1, keepdims=True)
    o_ref[...] = z - jnp.log(jnp.sum(jnp.exp(z), axis=-1, keepdims=True))


# ---------------------------------------------------------------------------
# Wrapper: one pallas_call for the whole forward pass
# ---------------------------------------------------------------------------
def forward(params, x, adj):
    n = x.shape[0]
    g1, g2 = params["gat1"], params["gat2"]
    l1, l2 = params["linear1"], params["linear2"]
    num_classes = l2["w"].shape[1]

    in_pad1 = g1["wlr"].shape[0]
    if x.shape[1] < in_pad1:                       # pad features to 128 lanes
        x = jnp.pad(x, ((0, 0), (0, in_pad1 - x.shape[1])))
    adj_flat = adj.reshape(n * n, 1).astype(jnp.float32)   # wrapper-side reshape

    in_arrays = [x, adj_flat,
                 g1["wlr"], g1["blr"], g1["a_bd"], g1["bias"],
                 g2["wlr"], g2["blr"], g2["a_bd"], g2["bias"],
                 g1["hmask"], l1["w"], l1["b"], l2["w"], l2["b"]]

    def full(shape):
        nd = len(shape)
        return pl.BlockSpec(shape, lambda i, nd=nd: (0,) * nd)

    return pl.pallas_call(
        _fused_forward_kernel,
        out_shape=jax.ShapeDtypeStruct((n, num_classes), jnp.float32),
        grid=(1,),
        in_specs=[full(a.shape) for a in in_arrays],
        out_specs=full((n, num_classes)),
        compiler_params=pltpu.CompilerParams(
            dimension_semantics=("arbitrary",)),
    )(*in_arrays)


# ---------------------------------------------------------------------------
# Parameters (initialized torch-style, stored in kernel-ready padded layout)
# ---------------------------------------------------------------------------
def _init_gatv2(key, in_dim, out_dim, heads, in_pad, scale=0.1):
    ks = jax.random.split(key, 6)
    hd = heads * out_dim
    hd_pad = _round_up(hd, 128)
    wl = scale * jax.random.normal(ks[0], (hd, in_dim), jnp.float32)   # torch [Fout, Fin]
    bl = scale * jax.random.normal(ks[1], (hd,), jnp.float32)
    wr = scale * jax.random.normal(ks[2], (hd, in_dim), jnp.float32)
    br = scale * jax.random.normal(ks[3], (hd,), jnp.float32)
    att = scale * jax.random.normal(ks[4], (heads, out_dim), jnp.float32)
    bias = scale * jax.random.normal(ks[5], (hd,), jnp.float32)

    # Fused, pre-transposed, 128-lane-padded [lin_l | lin_r] weight & bias.
    wlr = jnp.zeros((in_pad, 2 * hd_pad), jnp.float32)
    wlr = wlr.at[:in_dim, :hd].set(wl.T)
    wlr = wlr.at[:in_dim, hd_pad:hd_pad + hd].set(wr.T)
    blr = jnp.zeros((1, 2 * hd_pad), jnp.float32)
    blr = blr.at[0, :hd].set(bl).at[0, hd_pad:hd_pad + hd].set(br)

    # Block-diagonal attention reduction matrix: A[h*D + d, h] = att[h, d].
    a_bd = jnp.zeros((hd_pad, heads), jnp.float32)
    for h in range(heads):
        a_bd = a_bd.at[h * out_dim:(h + 1) * out_dim, h].set(att[h])
    # Head -> feature-lane expansion mask: M[h, h*D + d] = 1.
    hmask = jnp.zeros((heads, hd_pad), jnp.float32)
    for h in range(heads):
        hmask = hmask.at[h, h * out_dim:(h + 1) * out_dim].set(1.0)

    bias_p = jnp.zeros((1, hd_pad), jnp.float32).at[0, :hd].set(bias)
    return {"wlr": wlr, "blr": blr, "a_bd": a_bd, "hmask": hmask, "bias": bias_p}


def _init_linear(key, in_dim, out_dim, in_pad=None, scale=0.1):
    in_pad = in_dim if in_pad is None else in_pad
    k0, k1 = jax.random.split(key)
    w = scale * jax.random.normal(k0, (out_dim, in_dim), jnp.float32)  # torch [Fout, Fin]
    b = scale * jax.random.normal(k1, (out_dim,), jnp.float32)
    w_p = jnp.zeros((in_pad, out_dim), jnp.float32).at[:in_dim, :].set(w.T)
    return {"w": w_p, "b": b.reshape(1, -1)}


def init_params(key, hidden_dim, heads=HEADS):
    k1, k2, k3, k4 = jax.random.split(key, 4)
    hd = hidden_dim * heads
    hd_pad = _round_up(hd, 128)
    in_pad1 = _round_up(NUM_FEATURES, 128)
    return {
        "gat1": _init_gatv2(k1, NUM_FEATURES, hidden_dim, heads, in_pad1),
        "gat2": _init_gatv2(k2, hd, hidden_dim, heads, hd_pad),
        "linear1": _init_linear(k3, hd, hidden_dim, in_pad=hd_pad),
        "linear2": _init_linear(k4, hidden_dim, NUM_CLASSES),
    }


def edge_index_to_adj(edge_index, num_nodes):
    src, dst = edge_index[0], edge_index[1]
    adj = jnp.zeros((num_nodes, num_nodes), jnp.float32)
    adj = adj.at[dst, src].set(1.0)                                    # edge j -> i
    adj = jnp.maximum(adj, jnp.eye(num_nodes, dtype=jnp.float32))      # self loops
    return adj


# ---------------------------------------------------------------------------
if __name__ == "__main__":
    N = 16            # nodes
    HIDDEN = 8        # hidden_dim
    E = 48            # edges

    key = jax.random.PRNGKey(0)
    kx, ke1, ke2, kp = jax.random.split(key, 4)

    x = jax.random.normal(kx, (N, NUM_FEATURES), jnp.float32)
    src = jax.random.randint(ke1, (E,), 0, N)
    dst = jax.random.randint(ke2, (E,), 0, N)
    edge_index = jnp.stack([src, dst], axis=0)          # [2, E]
    adj = edge_index_to_adj(edge_index, N)

    params = init_params(kp, HIDDEN, HEADS)

    out = forward(params, x, adj)
    out = jax.block_until_ready(out)

    assert out.shape == (N, NUM_CLASSES), out.shape
    assert bool(jnp.all(jnp.isfinite(out)))
    # log_softmax rows should sum to ~1 after exp
    assert bool(jnp.allclose(jnp.sum(jnp.exp(out), axis=1), 1.0, atol=1e-4))
    print("KERNEL_OK")
</pallas_src>

<mosaic_0001>
module attributes {stable_mosaic.version = 11 : i64} {
  func.func @_fused_forward_kernel(%arg0: i32, %arg1: memref<16x128xf32, #tpu.memory_space<vmem>>, %arg2: memref<256x1xf32, #tpu.memory_space<vmem>>, %arg3: memref<128x256xf32, #tpu.memory_space<vmem>>, %arg4: memref<1x256xf32, #tpu.memory_space<vmem>>, %arg5: memref<128x12xf32, #tpu.memory_space<vmem>>, %arg6: memref<1x128xf32, #tpu.memory_space<vmem>>, %arg7: memref<128x256xf32, #tpu.memory_space<vmem>>, %arg8: memref<1x256xf32, #tpu.memory_space<vmem>>, %arg9: memref<128x12xf32, #tpu.memory_space<vmem>>, %arg10: memref<1x128xf32, #tpu.memory_space<vmem>>, %arg11: memref<12x128xf32, #tpu.memory_space<vmem>>, %arg12: memref<128x8xf32, #tpu.memory_space<vmem>>, %arg13: memref<1x8xf32, #tpu.memory_space<vmem>>, %arg14: memref<8x40xf32, #tpu.memory_space<vmem>>, %arg15: memref<1x40xf32, #tpu.memory_space<vmem>>, %arg16: memref<16x40xf32, #tpu.memory_space<vmem>>) attributes {dimension_semantics = [#tpu.dimension_semantics<arbitrary>], iteration_bounds = array<i64: 1>, scalar_prefetch = 0 : i64, scratch_operands = 0 : i64, tpu.core_type = #tpu.core_type<tc>, window_params = [{pipeline_mode = #tpu.pipeline_mode<synchronous>, transform_indices = @transform_0, window_bounds = array<i64: 16, 128>}, {pipeline_mode = #tpu.pipeline_mode<synchronous>, transform_indices = @transform_1, window_bounds = array<i64: 256, 1>}, {pipeline_mode = #tpu.pipeline_mode<synchronous>, transform_indices = @transform_2, window_bounds = array<i64: 128, 256>}, {pipeline_mode = #tpu.pipeline_mode<synchronous>, transform_indices = @transform_3, window_bounds = array<i64: 1, 256>}, {pipeline_mode = #tpu.pipeline_mode<synchronous>, transform_indices = @transform_4, window_bounds = array<i64: 128, 12>}, {pipeline_mode = #tpu.pipeline_mode<synchronous>, transform_indices = @transform_5, window_bounds = array<i64: 1, 128>}, {pipeline_mode = #tpu.pipeline_mode<synchronous>, transform_indices = @transform_6, window_bounds = array<i64: 128, 256>}, {pipeline_mode = #tpu.pipeline_mode<synchronous>, transform_indices = @transform_7, window_bounds = array<i64: 1, 256>}, {pipeline_mode = #tpu.pipeline_mode<synchronous>, transform_indices = @transform_8, window_bounds = array<i64: 128, 12>}, {pipeline_mode = #tpu.pipeline_mode<synchronous>, transform_indices = @transform_9, window_bounds = array<i64: 1, 128>}, {pipeline_mode = #tpu.pipeline_mode<synchronous>, transform_indices = @transform_10, window_bounds = array<i64: 12, 128>}, {pipeline_mode = #tpu.pipeline_mode<synchronous>, transform_indices = @transform_11, window_bounds = array<i64: 128, 8>}, {pipeline_mode = #tpu.pipeline_mode<synchronous>, transform_indices = @transform_12, window_bounds = array<i64: 1, 8>}, {pipeline_mode = #tpu.pipeline_mode<synchronous>, transform_indices = @transform_13, window_bounds = array<i64: 8, 40>}, {pipeline_mode = #tpu.pipeline_mode<synchronous>, transform_indices = @transform_14, window_bounds = array<i64: 1, 40>}, {pipeline_mode = #tpu.pipeline_mode<synchronous>, transform_indices = @transform_15, window_bounds = array<i64: 16, 40>}]} {
    %c0 = arith.constant 0 : index
    %c0_0 = arith.constant 0 : index
    %0 = vector.load %arg2[%c0, %c0_0] : memref<256x1xf32, #tpu.memory_space<vmem>>, vector<256x1xf32>
    %cst = arith.constant 0.000000e+00 : f32
    %1 = vector.broadcast %cst : f32 to vector<256x1xf32>
    %2 = arith.cmpf ogt, %0, %1 : vector<256x1xf32>
    %cst_1 = arith.constant 0.000000e+00 : f32
    %cst_2 = arith.constant -1.000000e+30 : f32
    %3 = vector.broadcast %cst_1 : f32 to vector<256x1xf32>
    %4 = vector.broadcast %cst_2 : f32 to vector<256x1xf32>
    %5 = arith.select %2, %3, %4 : vector<256x1xi1>, vector<256x1xf32>
    %c0_3 = arith.constant 0 : index
    %c0_4 = arith.constant 0 : index
    %6 = vector.load %arg11[%c0_3, %c0_4] : memref<12x128xf32, #tpu.memory_space<vmem>>, vector<12x128xf32>
    %c0_5 = arith.constant 0 : index
    %c0_6 = arith.constant 0 : index
    %7 = vector.load %arg1[%c0_5, %c0_6] : memref<16x128xf32, #tpu.memory_space<vmem>>, vector<16x128xf32>
    %c0_7 = arith.constant 0 : index
    %c0_8 = arith.constant 0 : index
    %8 = vector.load %arg3[%c0_7, %c0_8] : memref<128x256xf32, #tpu.memory_space<vmem>>, vector<128x256xf32>
    %c0_9 = arith.constant 0 : index
    %c0_10 = arith.constant 0 : index
    %9 = vector.load %arg4[%c0_9, %c0_10] : memref<1x256xf32, #tpu.memory_space<vmem>>, vector<1x256xf32>
    %c0_11 = arith.constant 0 : index
    %c0_12 = arith.constant 0 : index
    %10 = vector.load %arg5[%c0_11, %c0_12] : memref<128x12xf32, #tpu.memory_space<vmem>>, vector<128x12xf32>
    %c0_13 = arith.constant 0 : index
    %c0_14 = arith.constant 0 : index
    %11 = vector.load %arg6[%c0_13, %c0_14] : memref<1x128xf32, #tpu.memory_space<vmem>>, vector<1x128xf32>
    %cst_15 = arith.constant dense<0.000000e+00> : vector<16x256xf32>
    %12 = tpu.matmul %7, %8, %cst_15 {dimension_numbers = #tpu.dot_dimension_numbers<[1], [0], [0], [1], [0, 0, 1, 1], [], []>} : vector<16x128xf32>, vector<128x256xf32>, vector<16x256xf32> -> vector<16x256xf32>
    %13 = vector.broadcast %9 : vector<1x256xf32> to vector<16x256xf32>
    %14 = arith.addf %12, %13 : vector<16x256xf32>
    %15 = vector.extract_strided_slice %14 {offsets = [0, 0], sizes = [16, 128], strides = [1, 1]} : vector<16x256xf32> to vector<16x128xf32>
    %16 = vector.extract_strided_slice %14 {offsets = [0, 128], sizes = [16, 128], strides = [1, 1]} : vector<16x256xf32> to vector<16x128xf32>
    %17 = vector.shape_cast %16 : vector<16x128xf32> to vector<16x1x128xf32>
    %18 = vector.shape_cast %15 : vector<16x128xf32> to vector<1x16x128xf32>
    %19 = vector.broadcast %17 : vector<16x1x128xf32> to vector<16x16x128xf32>
    %20 = vector.broadcast %18 : vector<1x16x128xf32> to vector<16x16x128xf32>
    %21 = arith.addf %19, %20 : vector<16x16x128xf32>
    %cst_16 = arith.constant 0.000000e+00 : f32
    %22 = vector.broadcast %cst_16 : f32 to vector<16x16x128xf32>
    %23 = arith.cmpf ogt, %21, %22 : vector<16x16x128xf32>
    %cst_17 = arith.constant 2.000000e-01 : f32
    %24 = vector.broadcast %cst_17 : f32 to vector<16x16x128xf32>
    %25 = arith.mulf %24, %21 : vector<16x16x128xf32>
    %26 = arith.select %23, %21, %25 : vector<16x16x128xi1>, vector<16x16x128xf32>
    %27 = vector.shape_cast %26 : vector<16x16x128xf32> to vector<256x128xf32>
    %cst_18 = arith.constant dense<0.000000e+00> : vector<256x12xf32>
    %28 = tpu.matmul %27, %10, %cst_18 {dimension_numbers = #tpu.dot_dimension_numbers<[1], [0], [0], [1], [0, 0, 1, 1], [], []>} : vector<256x128xf32>, vector<128x12xf32>, vector<256x12xf32> -> vector<256x12xf32>
    %29 = vector.broadcast %5 : vector<256x1xf32> to vector<256x12xf32>
    %30 = arith.addf %28, %29 : vector<256x12xf32>
    %31 = vector.shape_cast %30 : vector<256x12xf32> to vector<16x16x12xf32>
    %cst_19 = arith.constant dense<0xFF800000> : vector<16x12xf32>
    %32 = vector.multi_reduction <maximumf>, %31, %cst_19 [1] : vector<16x16x12xf32> to vector<16x12xf32>
    %33 = vector.shape_cast %32 : vector<16x12xf32> to vector<16x1x12xf32>
    %34 = vector.broadcast %33 : vector<16x1x12xf32> to vector<16x16x12xf32>
    %35 = arith.subf %31, %34 : vector<16x16x12xf32>
    %36 = math.exp %35 : vector<16x16x12xf32>
    %cst_20 = arith.constant dense<0.000000e+00> : vector<16x12xf32>
    %37 = vector.multi_reduction <add>, %36, %cst_20 [1] : vector<16x16x12xf32> to vector<16x12xf32>
    %38 = vector.shape_cast %37 : vector<16x12xf32> to vector<16x1x12xf32>
    %cst_21 = arith.constant 1.000000e+00 : f32
    %39 = vector.broadcast %cst_21 : f32 to vector<16x1x12xf32>
    %40 = arith.divf %39, %38 : vector<16x1x12xf32>
    %41 = vector.broadcast %40 : vector<16x1x12xf32> to vector<16x16x12xf32>
    %42 = arith.mulf %36, %41 : vector<16x16x12xf32>
    %43 = vector.shape_cast %42 : vector<16x16x12xf32> to vector<256x12xf32>
    %cst_22 = arith.constant dense<0.000000e+00> : vector<256x128xf32>
    %44 = tpu.matmul %43, %6, %cst_22 {dimension_numbers = #tpu.dot_dimension_numbers<[1], [0], [0], [1], [0, 0, 1, 1], [], []>} : vector<256x12xf32>, vector<12x128xf32>, vector<256x128xf32> -> vector<256x128xf32>
    %45 = vector.shape_cast %44 : vector<256x128xf32> to vector<16x16x128xf32>
    %46 = vector.shape_cast %15 : vector<16x128xf32> to vector<1x16x128xf32>
    %47 = vector.broadcast %46 : vector<1x16x128xf32> to vector<16x16x128xf32>
    %48 = arith.mulf %45, %47 : vector<16x16x128xf32>
    %cst_23 = arith.constant dense<0.000000e+00> : vector<16x128xf32>
    %49 = vector.multi_reduction <add>, %48, %cst_23 [1] : vector<16x16x128xf32> to vector<16x128xf32>
    %50 = vector.broadcast %11 : vector<1x128xf32> to vector<16x128xf32>
    %51 = arith.addf %49, %50 : vector<16x128xf32>
    %cst_24 = arith.constant 0.000000e+00 : f32
    %52 = vector.broadcast %cst_24 : f32 to vector<16x128xf32>
    %53 = arith.cmpf ogt, %51, %52 : vector<16x128xf32>
    %cst_25 = arith.constant 0.000000e+00 : f32
    %54 = vector.broadcast %cst_25 : f32 to vector<16x128xf32>
    %55 = arith.minimumf %51, %54 : vector<16x128xf32>
    %56 = math.exp %55 : vector<16x128xf32>
    %cst_26 = arith.constant 1.000000e+00 : f32
    %57 = vector.broadcast %cst_26 : f32 to vector<16x128xf32>
    %58 = arith.subf %56, %57 : vector<16x128xf32>
    %59 = arith.select %53, %51, %58 : vector<16x128xi1>, vector<16x128xf32>
    %c0_27 = arith.constant 0 : index
    %c0_28 = arith.constant 0 : index
    %60 = vector.load %arg7[%c0_27, %c0_28] : memref<128x256xf32, #tpu.memory_space<vmem>>, vector<128x256xf32>
    %c0_29 = arith.constant 0 : index
    %c0_30 = arith.constant 0 : index
    %61 = vector.load %arg8[%c0_29, %c0_30] : memref<1x256xf32, #tpu.memory_space<vmem>>, vector<1x256xf32>
    %c0_31 = arith.constant 0 : index
    %c0_32 = arith.constant 0 : index
    %62 = vector.load %arg9[%c0_31, %c0_32] : memref<128x12xf32, #tpu.memory_space<vmem>>, vector<128x12xf32>
    %c0_33 = arith.constant 0 : index
    %c0_34 = arith.constant 0 : index
    %63 = vector.load %arg10[%c0_33, %c0_34] : memref<1x128xf32, #tpu.memory_space<vmem>>, vector<1x128xf32>
    %cst_35 = arith.constant dense<0.000000e+00> : vector<16x256xf32>
    %64 = tpu.matmul %59, %60, %cst_35 {dimension_numbers = #tpu.dot_dimension_numbers<[1], [0], [0], [1], [0, 0, 1, 1], [], []>} : vector<16x128xf32>, vector<128x256xf32>, vector<16x256xf32> -> vector<16x256xf32>
    %65 = vector.broadcast %61 : vector<1x256xf32> to vector<16x256xf32>
    %66 = arith.addf %64, %65 : vector<16x256xf32>
    %67 = vector.extract_strided_slice %66 {offsets = [0, 0], sizes = [16, 128], strides = [1, 1]} : vector<16x256xf32> to vector<16x128xf32>
    %68 = vector.extract_strided_slice %66 {offsets = [0, 128], sizes = [16, 128], strides = [1, 1]} : vector<16x256xf32> to vector<16x128xf32>
    %69 = vector.shape_cast %68 : vector<16x128xf32> to vector<16x1x128xf32>
    %70 = vector.shape_cast %67 : vector<16x128xf32> to vector<1x16x128xf32>
    %71 = vector.broadcast %69 : vector<16x1x128xf32> to vector<16x16x128xf32>
    %72 = vector.broadcast %70 : vector<1x16x128xf32> to vector<16x16x128xf32>
    %73 = arith.addf %71, %72 : vector<16x16x128xf32>
    %cst_36 = arith.constant 0.000000e+00 : f32
    %74 = vector.broadcast %cst_36 : f32 to vector<16x16x128xf32>
    %75 = arith.cmpf ogt, %73, %74 : vector<16x16x128xf32>
    %cst_37 = arith.constant 2.000000e-01 : f32
    %76 = vector.broadcast %cst_37 : f32 to vector<16x16x128xf32>
    %77 = arith.mulf %76, %73 : vector<16x16x128xf32>
    %78 = arith.select %75, %73, %77 : vector<16x16x128xi1>, vector<16x16x128xf32>
    %79 = vector.shape_cast %78 : vector<16x16x128xf32> to vector<256x128xf32>
    %cst_38 = arith.constant dense<0.000000e+00> : vector<256x12xf32>
    %80 = tpu.matmul %79, %62, %cst_38 {dimension_numbers = #tpu.dot_dimension_numbers<[1], [0], [0], [1], [0, 0, 1, 1], [], []>} : vector<256x128xf32>, vector<128x12xf32>, vector<256x12xf32> -> vector<256x12xf32>
    %81 = vector.broadcast %5 : vector<256x1xf32> to vector<256x12xf32>
    %82 = arith.addf %80, %81 : vector<256x12xf32>
    %83 = vector.shape_cast %82 : vector<256x12xf32> to vector<16x16x12xf32>
    %cst_39 = arith.constant dense<0xFF800000> : vector<16x12xf32>
    %84 = vector.multi_reduction <maximumf>, %83, %cst_39 [1] : vector<16x16x12xf32> to vector<16x12xf32>
    %85 = vector.shape_cast %84 : vector<16x12xf32> to vector<16x1x12xf32>
    %86 = vector.broadcast %85 : vector<16x1x12xf32> to vector<16x16x12xf32>
    %87 = arith.subf %83, %86 : vector<16x16x12xf32>
    %88 = math.exp %87 : vector<16x16x12xf32>
    %cst_40 = arith.constant dense<0.000000e+00> : vector<16x12xf32>
    %89 = vector.multi_reduction <add>, %88, %cst_40 [1] : vector<16x16x12xf32> to vector<16x12xf32>
    %90 = vector.shape_cast %89 : vector<16x12xf32> to vector<16x1x12xf32>
    %cst_41 = arith.constant 1.000000e+00 : f32
    %91 = vector.broadcast %cst_41 : f32 to vector<16x1x12xf32>
    %92 = arith.divf %91, %90 : vector<16x1x12xf32>
    %93 = vector.broadcast %92 : vector<16x1x12xf32> to vector<16x16x12xf32>
    %94 = arith.mulf %88, %93 : vector<16x16x12xf32>
    %95 = vector.shape_cast %94 : vector<16x16x12xf32> to vector<256x12xf32>
    %cst_42 = arith.constant dense<0.000000e+00> : vector<256x128xf32>
    %96 = tpu.matmul %95, %6, %cst_42 {dimension_numbers = #tpu.dot_dimension_numbers<[1], [0], [0], [1], [0, 0, 1, 1], [], []>} : vector<256x12xf32>, vector<12x128xf32>, vector<256x128xf32> -> vector<256x128xf32>
    %97 = vector.shape_cast %96 : vector<256x128xf32> to vector<16x16x128xf32>
    %98 = vector.shape_cast %67 : vector<16x128xf32> to vector<1x16x128xf32>
    %99 = vector.broadcast %98 : vector<1x16x128xf32> to vector<16x16x128xf32>
    %100 = arith.mulf %97, %99 : vector<16x16x128xf32>
    %cst_43 = arith.constant dense<0.000000e+00> : vector<16x128xf32>
    %101 = vector.multi_reduction <add>, %100, %cst_43 [1] : vector<16x16x128xf32> to vector<16x128xf32>
    %102 = vector.broadcast %63 : vector<1x128xf32> to vector<16x128xf32>
    %103 = arith.addf %101, %102 : vector<16x128xf32>
    %cst_44 = arith.constant 0.000000e+00 : f32
    %104 = vector.broadcast %cst_44 : f32 to vector<16x128xf32>
    %105 = arith.cmpf ogt, %103, %104 : vector<16x128xf32>
    %cst_45 = arith.constant 0.000000e+00 : f32
    %106 = vector.broadcast %cst_45 : f32 to vector<16x128xf32>
    %107 = arith.minimumf %103, %106 : vector<16x128xf32>
    %108 = math.exp %107 : vector<16x128xf32>
    %cst_46 = arith.constant 1.000000e+00 : f32
    %109 = vector.broadcast %cst_46 : f32 to vector<16x128xf32>
    %110 = arith.subf %108, %109 : vector<16x128xf32>
    %111 = arith.select %105, %103, %110 : vector<16x128xi1>, vector<16x128xf32>
    %c0_47 = arith.constant 0 : index
    %c0_48 = arith.constant 0 : index
    %112 = vector.load %arg12[%c0_47, %c0_48] : memref<128x8xf32, #tpu.memory_space<vmem>>, vector<128x8xf32>
    %cst_49 = arith.constant dense<0.000000e+00> : vector<16x8xf32>
    %113 = tpu.matmul %111, %112, %cst_49 {dimension_numbers = #tpu.dot_dimension_numbers<[1], [0], [0], [1], [0, 0, 1, 1], [], []>} : vector<16x128xf32>, vector<128x8xf32>, vector<16x8xf32> -> vector<16x8xf32>
    %c0_50 = arith.constant 0 : index
    %c0_51 = arith.constant 0 : index
    %114 = vector.load %arg13[%c0_50, %c0_51] : memref<1x8xf32, #tpu.memory_space<vmem>>, vector<1x8xf32>
    %115 = vector.broadcast %114 : vector<1x8xf32> to vector<16x8xf32>
    %116 = arith.addf %113, %115 : vector<16x8xf32>
    %cst_52 = arith.constant 0.000000e+00 : f32
    %117 = vector.broadcast %cst_52 : f32 to vector<16x8xf32>
    %118 = arith.cmpf ogt, %116, %117 : vector<16x8xf32>
    %cst_53 = arith.constant 0.000000e+00 : f32
    %119 = vector.broadcast %cst_53 : f32 to vector<16x8xf32>
    %120 = arith.minimumf %116, %119 : vector<16x8xf32>
    %121 = math.exp %120 : vector<16x8xf32>
    %cst_54 = arith.constant 1.000000e+00 : f32
    %122 = vector.broadcast %cst_54 : f32 to vector<16x8xf32>
    %123 = arith.subf %121, %122 : vector<16x8xf32>
    %124 = arith.select %118, %116, %123 : vector<16x8xi1>, vector<16x8xf32>
    %c0_55 = arith.constant 0 : index
    %c0_56 = arith.constant 0 : index
    %125 = vector.load %arg14[%c0_55, %c0_56] : memref<8x40xf32, #tpu.memory_space<vmem>>, vector<8x40xf32>
    %cst_57 = arith.constant dense<0.000000e+00> : vector<16x40xf32>
    %126 = tpu.matmul %124, %125, %cst_57 {dimension_numbers = #tpu.dot_dimension_numbers<[1], [0], [0], [1], [0, 0, 1, 1], [], []>} : vector<16x8xf32>, vector<8x40xf32>, vector<16x40xf32> -> vector<16x40xf32>
    %c0_58 = arith.constant 0 : index
    %c0_59 = arith.constant 0 : index
    %127 = vector.load %arg15[%c0_58, %c0_59] : memref<1x40xf32, #tpu.memory_space<vmem>>, vector<1x40xf32>
    %128 = vector.broadcast %127 : vector<1x40xf32> to vector<16x40xf32>
    %129 = arith.addf %126, %128 : vector<16x40xf32>
    %cst_60 = arith.constant dense<0xFF800000> : vector<16xf32>
    %130 = vector.multi_reduction <maximumf>, %129, %cst_60 [1] : vector<16x40xf32> to vector<16xf32>
    %131 = vector.shape_cast %130 : vector<16xf32> to vector<16x1xf32>
    %132 = vector.broadcast %131 : vector<16x1xf32> to vector<16x40xf32>
    %133 = arith.subf %129, %132 : vector<16x40xf32>
    %134 = math.exp %133 : vector<16x40xf32>
    %cst_61 = arith.constant dense<0.000000e+00> : vector<16xf32>
    %135 = vector.multi_reduction <add>, %134, %cst_61 [1] : vector<16x40xf32> to vector<16xf32>
    %136 = vector.shape_cast %135 : vector<16xf32> to vector<16x1xf32>
    %137 = math.log %136 : vector<16x1xf32>
    %138 = vector.broadcast %137 : vector<16x1xf32> to vector<16x40xf32>
    %139 = arith.subf %133, %138 : vector<16x40xf32>
    %c0_62 = arith.constant 0 : index
    %c0_63 = arith.constant 0 : index
    %140 = vector.load %arg16[%c0_62, %c0_63] : memref<16x40xf32, #tpu.memory_space<vmem>>, vector<16x40xf32>
    tpu.vector_store %arg16[%c0_62, %c0_63], %139 {strides = array<i32>} : memref<16x40xf32, #tpu.memory_space<vmem>>, vector<16x40xf32>,
    return
  }
  func.func @transform_0(%arg0: i32) -> (i32, i32) {
    %c0_i32 = arith.constant 0 : i32
    %c0_i32_0 = arith.constant 0 : i32
    %c0_i32_1 = arith.constant 0 : i32
    return %c0_i32, %c0_i32_0 : i32, i32
  }
  func.func @transform_1(%arg0: i32) -> (i32, i32) {
    %c0_i32 = arith.constant 0 : i32
    %c0_i32_0 = arith.constant 0 : i32
    %c0_i32_1 = arith.constant 0 : i32
    return %c0_i32, %c0_i32_0 : i32, i32
  }
  func.func @transform_2(%arg0: i32) -> (i32, i32) {
    %c0_i32 = arith.constant 0 : i32
    %c0_i32_0 = arith.constant 0 : i32
    %c0_i32_1 = arith.constant 0 : i32
    return %c0_i32, %c0_i32_0 : i32, i32
  }
  func.func @transform_3(%arg0: i32) -> (i32, i32) {
    %c0_i32 = arith.constant 0 : i32
    %c0_i32_0 = arith.constant 0 : i32
    %c0_i32_1 = arith.constant 0 : i32
    return %c0_i32, %c0_i32_0 : i32, i32
  }
  func.func @transform_4(%arg0: i32) -> (i32, i32) {
    %c0_i32 = arith.constant 0 : i32
    %c0_i32_0 = arith.constant 0 : i32
    %c0_i32_1 = arith.constant 0 : i32
    return %c0_i32, %c0_i32_0 : i32, i32
  }
  func.func @transform_5(%arg0: i32) -> (i32, i32) {
    %c0_i32 = arith.constant 0 : i32
    %c0_i32_0 = arith.constant 0 : i32
    %c0_i32_1 = arith.constant 0 : i32
    return %c0_i32, %c0_i32_0 : i32, i32
  }
  func.func @transform_6(%arg0: i32) -> (i32, i32) {
    %c0_i32 = arith.constant 0 : i32
    %c0_i32_0 = arith.constant 0 : i32
    %c0_i32_1 = arith.constant 0 : i32
    return %c0_i32, %c0_i32_0 : i32, i32
  }
  func.func @transform_7(%arg0: i32) -> (i32, i32) {
    %c0_i32 = arith.constant 0 : i32
    %c0_i32_0 = arith.constant 0 : i32
    %c0_i32_1 = arith.constant 0 : i32
    return %c0_i32, %c0_i32_0 : i32, i32
  }
  func.func @transform_8(%arg0: i32) -> (i32, i32) {
    %c0_i32 = arith.constant 0 : i32
    %c0_i32_0 = arith.constant 0 : i32
    %c0_i32_1 = arith.constant 0 : i32
    return %c0_i32, %c0_i32_0 : i32, i32
  }
  func.func @transform_9(%arg0: i32) -> (i32, i32) {
    %c0_i32 = arith.constant 0 : i32
    %c0_i32_0 = arith.constant 0 : i32
    %c0_i32_1 = arith.constant 0 : i32
    return %c0_i32, %c0_i32_0 : i32, i32
  }
  func.func @transform_10(%arg0: i32) -> (i32, i32) {
    %c0_i32 = arith.constant 0 : i32
    %c0_i32_0 = arith.constant 0 : i32
    %c0_i32_1 = arith.constant 0 : i32
    return %c0_i32, %c0_i32_0 : i32, i32
  }
  func.func @transform_11(%arg0: i32) -> (i32, i32) {
    %c0_i32 = arith.constant 0 : i32
    %c0_i32_0 = arith.constant 0 : i32
    %c0_i32_1 = arith.constant 0 : i32
    return %c0_i32, %c0_i32_0 : i32, i32
  }
  func.func @transform_12(%arg0: i32) -> (i32, i32) {
    %c0_i32 = arith.constant 0 : i32
    %c0_i32_0 = arith.constant 0 : i32
    %c0_i32_1 = arith.constant 0 : i32
    return %c0_i32, %c0_i32_0 : i32, i32
  }
  func.func @transform_13(%arg0: i32) -> (i32, i32) {
    %c0_i32 = arith.constant 0 : i32
    %c0_i32_0 = arith.constant 0 : i32
    %c0_i32_1 = arith.constant 0 : i32
    return %c0_i32, %c0_i32_0 : i32, i32
  }
  func.func @transform_14(%arg0: i32) -> (i32, i32) {
    %c0_i32 = arith.constant 0 : i32
    %c0_i32_0 = arith.constant 0 : i32
    %c0_i32_1 = arith.constant 0 : i32
    return %c0_i32, %c0_i32_0 : i32, i32
  }
  func.func @transform_15(%arg0: i32) -> (i32, i32) {
    %c0_i32 = arith.constant 0 : i32
    %c0_i32_0 = arith.constant 0 : i32
    %c0_i32_1 = arith.constant 0 : i32
    return %c0_i32, %c0_i32_0 : i32, i32
  }
}

</mosaic_0001>

<llo_original>
// kernel: tpu_custom_call.1
$region0: #{tpu_custom_call.1}
  #allocation0 [shape = 'u32[]', space=smem, size = 0x4, offset = 0x4, fixed_abs, tag = 'smem constant byte address 0x4 - core index']
  #allocation1 [shape = 'u32[72,128]{1,0:T(1,128)}', space=vmem, size = 0x9000, scoped, tag = 'internal scratch']
  %s0 = inlined_call_operand.vmem [shape: f32[16,128], index: 0, kind: input, shape index: {}]
  %s1 = inlined_call_operand.vmem [shape: f32[256,1], index: 1, kind: input, shape index: {}]
  %s2 = inlined_call_operand.vmem [shape: f32[128,256], index: 2, kind: input, shape index: {}]
  %s3 = inlined_call_operand.vmem [shape: f32[1,256], index: 3, kind: input, shape index: {}]
  %s4 = inlined_call_operand.vmem [shape: f32[128,12], index: 4, kind: input, shape index: {}]
  %s5 = inlined_call_operand.vmem [shape: f32[1,128], index: 5, kind: input, shape index: {}]
  %s6 = inlined_call_operand.vmem [shape: f32[128,256], index: 6, kind: input, shape index: {}]
  %s7 = inlined_call_operand.vmem [shape: f32[1,256], index: 7, kind: input, shape index: {}]
  %s8 = inlined_call_operand.vmem [shape: f32[128,12], index: 8, kind: input, shape index: {}]
  %s9 = inlined_call_operand.vmem [shape: f32[1,128], index: 9, kind: input, shape index: {}]
  %s10 = inlined_call_operand.vmem [shape: f32[12,128], index: 10, kind: input, shape index: {}]
  %s11 = inlined_call_operand.vmem [shape: f32[128,8], index: 11, kind: input, shape index: {}]
  %s12 = inlined_call_operand.vmem [shape: f32[1,8], index: 12, kind: input, shape index: {}]
  %s13 = inlined_call_operand.vmem [shape: f32[8,40], index: 13, kind: input, shape index: {}]
  %s14 = inlined_call_operand.vmem [shape: f32[1,40], index: 14, kind: input, shape index: {}]
  %s15 = inlined_call_operand.hbm [shape: f32[16,40], index: 15, kind: output, shape index: {}]
  %s16 = sld [smem:[#allocation0]]
  $region70: #{tpu_custom_call.1} parent=0
    _
  %s18 = ssub.s32 1, %s16
  %s19 = scalar_select 0, %s18, %s16
  $region1: #{tpu_custom_call.1} parent=0
    #allocation2 [shape = 'u8[8192]{0}', space=vmem, size = 0x2000, scoped, tag = 'output window, operand 0, single buffered']
    #allocation3 [shape = 's32[1]{0}', space=sflag, size = 0x4, scoped, tag = 'scoped memory for tpu_custom_call.1']
    %20 = vsyncpa [#allocation3], 0
    // Predicated region
    $region2: #{tpu_custom_call.1} parent=1 // pred_check
      _
    $region3: #{tpu_custom_call.1} parent=1 // pred_check_branch
      %22 = sbr.rel (0) target = $region5
    $region4: #{tpu_custom_call.1} parent=1 // pred_region
      _
    $region5: #{tpu_custom_call.1} parent=1 // pred_fallthru
      _
    // Predicated region
    $region6: #{tpu_custom_call.1} parent=1 // pred_check
      _
    $region7: #{tpu_custom_call.1} parent=1 // pred_check_branch
      %24 = sbr.rel (0) target = $region9
    $region8: #{tpu_custom_call.1} parent=1 // pred_region
      _
    $region9: #{tpu_custom_call.1} parent=1 // pred_fallthru
      _
    // Predicated region
    $region10: #{tpu_custom_call.1} parent=1 // pred_check
      _
    $region11: #{tpu_custom_call.1} parent=1 // pred_check_branch
      %26 = sbr.rel (0) target = $region13
    $region12: #{tpu_custom_call.1} parent=1 // pred_region
      _
    $region13: #{tpu_custom_call.1} parent=1 // pred_fallthru
      _
    // Predicated region
    $region14: #{tpu_custom_call.1} parent=1 // pred_check
      _
    $region15: #{tpu_custom_call.1} parent=1 // pred_check_branch
      %28 = sbr.rel (0) target = $region17
    $region16: #{tpu_custom_call.1} parent=1 // pred_region
      _
    $region17: #{tpu_custom_call.1} parent=1 // pred_fallthru
      _
    // Predicated region
    $region18: #{tpu_custom_call.1} parent=1 // pred_check
      _
    $region19: #{tpu_custom_call.1} parent=1 // pred_check_branch
      %30 = sbr.rel (0) target = $region21
    $region20: #{tpu_custom_call.1} parent=1 // pred_region
      _
    $region21: #{tpu_custom_call.1} parent=1 // pred_fallthru
      _
    // Predicated region
    $region22: #{tpu_custom_call.1} parent=1 // pred_check
      _
    $region23: #{tpu_custom_call.1} parent=1 // pred_check_branch
      %32 = sbr.rel (0) target = $region25
    $region24: #{tpu_custom_call.1} parent=1 // pred_region
      _
    $region25: #{tpu_custom_call.1} parent=1 // pred_fallthru
      _
    // Predicated region
    $region26: #{tpu_custom_call.1} parent=1 // pred_check
      _
    $region27: #{tpu_custom_call.1} parent=1 // pred_check_branch
      %34 = sbr.rel (0) target = $region29
    $region28: #{tpu_custom_call.1} parent=1 // pred_region
      _
    $region29: #{tpu_custom_call.1} parent=1 // pred_fallthru
      _
    // Predicated region
    $region30: #{tpu_custom_call.1} parent=1 // pred_check
      _
    $region31: #{tpu_custom_call.1} parent=1 // pred_check_branch
      %36 = sbr.rel (0) target = $region33
    $region32: #{tpu_custom_call.1} parent=1 // pred_region
      _
    $region33: #{tpu_custom_call.1} parent=1 // pred_fallthru
      _
    // Predicated region
    $region34: #{tpu_custom_call.1} parent=1 // pred_check
      _
    $region35: #{tpu_custom_call.1} parent=1 // pred_check_branch
      %38 = sbr.rel (0) target = $region37
    $region36: #{tpu_custom_call.1} parent=1 // pred_region
      _
    $region37: #{tpu_custom_call.1} parent=1 // pred_fallthru
      _
    // Predicated region
    $region38: #{tpu_custom_call.1} parent=1 // pred_check
      _
    $region39: #{tpu_custom_call.1} parent=1 // pred_check_branch
      %40 = sbr.rel (0) target = $region41
    $region40: #{tpu_custom_call.1} parent=1 // pred_region
      _
    $region41: #{tpu_custom_call.1} parent=1 // pred_fallthru
      _
    // Predicated region
    $region42: #{tpu_custom_call.1} parent=1 // pred_check
      _
    $region43: #{tpu_custom_call.1} parent=1 // pred_check_branch
      %42 = sbr.rel (0) target = $region45
    $region44: #{tpu_custom_call.1} parent=1 // pred_region
      _
    $region45: #{tpu_custom_call.1} parent=1 // pred_fallthru
      _
    // Predicated region
    $region46: #{tpu_custom_call.1} parent=1 // pred_check
      _
    $region47: #{tpu_custom_call.1} parent=1 // pred_check_branch
      %44 = sbr.rel (0) target = $region49
    $region48: #{tpu_custom_call.1} parent=1 // pred_region
      _
    $region49: #{tpu_custom_call.1} parent=1 // pred_fallthru
      _
    // Predicated region
    $region50: #{tpu_custom_call.1} parent=1 // pred_check
      _
    $region51: #{tpu_custom_call.1} parent=1 // pred_check_branch
      %46 = sbr.rel (0) target = $region53
    $region52: #{tpu_custom_call.1} parent=1 // pred_region
      _
    $region53: #{tpu_custom_call.1} parent=1 // pred_fallthru
      _
    // Predicated region
    $region54: #{tpu_custom_call.1} parent=1 // pred_check
      _
    $region55: #{tpu_custom_call.1} parent=1 // pred_check_branch
      %48 = sbr.rel (0) target = $region57
    $region56: #{tpu_custom_call.1} parent=1 // pred_region
      _
    $region57: #{tpu_custom_call.1} parent=1 // pred_fallthru
      _
    // Predicated region
    $region58: #{tpu_custom_call.1} parent=1 // pred_check
      _
    $region59: #{tpu_custom_call.1} parent=1 // pred_check_branch
      %50 = sbr.rel (0) target = $region61
    $region60: #{tpu_custom_call.1} parent=1 // pred_region
      _
    $region61: #{tpu_custom_call.1} parent=1 // pred_fallthru
      _
    %v51 = vld [vmem:[%s1] sm:$0xff]
    %v52 = vld [vmem:[%s1 + $0x8] sm:$0xff]
    %v53 = vld [vmem:[%s1 + $0x10] sm:$0xff]
    %v54 = vld [vmem:[%s1 + $0x18] sm:$0xff]
    %v55 = vld [vmem:[%s1 + $0x20] sm:$0xff]
    %v56 = vld [vmem:[%s1 + $0x28] sm:$0xff]
    %v57 = vld [vmem:[%s1 + $0x30] sm:$0xff]
    %v58 = vld [vmem:[%s1 + $0x38] sm:$0xff]
    %v59 = vld [vmem:[%s1 + $0x40] sm:$0xff]
    %v60 = vld [vmem:[%s1 + $0x48] sm:$0xff]
    %v61 = vld [vmem:[%s1 + $0x50] sm:$0xff]
    %v62 = vld [vmem:[%s1 + $0x58] sm:$0xff]
    %v63 = vld [vmem:[%s1 + $0x60] sm:$0xff]
    %v64 = vld [vmem:[%s1 + $0x68] sm:$0xff]
    %v65 = vld [vmem:[%s1 + $0x70] sm:$0xff]
    %v66 = vld [vmem:[%s1 + $0x78] sm:$0xff]
    %v67 = vld [vmem:[%s1 + $0x80] sm:$0xff]
    %v68 = vld [vmem:[%s1 + $0x88] sm:$0xff]
    %v69 = vld [vmem:[%s1 + $0x90] sm:$0xff]
    %v70 = vld [vmem:[%s1 + $0x98] sm:$0xff]
    %v71 = vld [vmem:[%s1 + $0xa0] sm:$0xff]
    %v72 = vld [vmem:[%s1 + $0xa8] sm:$0xff]
    %v73 = vld [vmem:[%s1 + $0xb0] sm:$0xff]
    %v74 = vld [vmem:[%s1 + $0xb8] sm:$0xff]
    %v75 = vld [vmem:[%s1 + $0xc0] sm:$0xff]
    %v76 = vld [vmem:[%s1 + $0xc8] sm:$0xff]
    %v77 = vld [vmem:[%s1 + $0xd0] sm:$0xff]
    %v78 = vld [vmem:[%s1 + $0xd8] sm:$0xff]
    %v79 = vld [vmem:[%s1 + $0xe0] sm:$0xff]
    %v80 = vld [vmem:[%s1 + $0xe8] sm:$0xff]
    %v81 = vld [vmem:[%s1 + $0xf0] sm:$0xff]
    %v82 = vld [vmem:[%s1 + $0xf8] sm:$0xff]
    %vm83 = vcmp.gt.f32.partialorder %v51, 0.0
    %vm84 = vcmp.gt.f32.partialorder %v52, 0.0
    %vm85 = vcmp.gt.f32.partialorder %v53, 0.0
    %vm86 = vcmp.gt.f32.partialorder %v54, 0.0
    %vm87 = vcmp.gt.f32.partialorder %v55, 0.0
    %vm88 = vcmp.gt.f32.partialorder %v56, 0.0
    %vm89 = vcmp.gt.f32.partialorder %v57, 0.0
    %vm90 = vcmp.gt.f32.partialorder %v58, 0.0
    %vm91 = vcmp.gt.f32.partialorder %v59, 0.0
    %vm92 = vcmp.gt.f32.partialorder %v60, 0.0
    %vm93 = vcmp.gt.f32.partialorder %v61, 0.0
    %vm94 = vcmp.gt.f32.partialorder %v62, 0.0
    %vm95 = vcmp.gt.f32.partialorder %v63, 0.0
    %vm96 = vcmp.gt.f32.partialorder %v64, 0.0
    %vm97 = vcmp.gt.f32.partialorder %v65, 0.0
    %vm98 = vcmp.gt.f32.partialorder %v66, 0.0
    %vm99 = vcmp.gt.f32.partialorder %v67, 0.0
    %vm100 = vcmp.gt.f32.partialorder %v68, 0.0
    %vm101 = vcmp.gt.f32.partialorder %v69, 0.0
    %vm102 = vcmp.gt.f32.partialorder %v70, 0.0
    %vm103 = vcmp.gt.f32.partialorder %v71, 0.0
    %vm104 = vcmp.gt.f32.partialorder %v72, 0.0
    %vm105 = vcmp.gt.f32.partialorder %v73, 0.0
    %vm106 = vcmp.gt.f32.partialorder %v74, 0.0
    %vm107 = vcmp.gt.f32.partialorder %v75, 0.0
    %vm108 = vcmp.gt.f32.partialorder %v76, 0.0
    %vm109 = vcmp.gt.f32.partialorder %v77, 0.0
    %vm110 = vcmp.gt.f32.partialorder %v78, 0.0
    %vm111 = vcmp.gt.f32.partialorder %v79, 0.0
    %vm112 = vcmp.gt.f32.partialorder %v80, 0.0
    %vm113 = vcmp.gt.f32.partialorder %v81, 0.0
    %vm114 = vcmp.gt.f32.partialorder %v82, 0.0
    %v115 = vsel %vm83, 0.0, -1e+30
    %v116 = vsel %vm84, 0.0, -1e+30
    %v117 = vsel %vm85, 0.0, -1e+30
    %v118 = vsel %vm86, 0.0, -1e+30
    %v119 = vsel %vm87, 0.0, -1e+30
    %v120 = vsel %vm88, 0.0, -1e+30
    %v121 = vsel %vm89, 0.0, -1e+30
    %v122 = vsel %vm90, 0.0, -1e+30
    %v123 = vsel %vm91, 0.0, -1e+30
    %v124 = vsel %vm92, 0.0, -1e+30
    %v125 = vsel %vm93, 0.0, -1e+30
    %v126 = vsel %vm94, 0.0, -1e+30
    %v127 = vsel %vm95, 0.0, -1e+30
    %v128 = vsel %vm96, 0.0, -1e+30
    %v129 = vsel %vm97, 0.0, -1e+30
    %v130 = vsel %vm98, 0.0, -1e+30
    %v131 = vsel %vm99, 0.0, -1e+30
    %v132 = vsel %vm100, 0.0, -1e+30
    %v133 = vsel %vm101, 0.0, -1e+30
    %v134 = vsel %vm102, 0.0, -1e+30
    %v135 = vsel %vm103, 0.0, -1e+30
    %v136 = vsel %vm104, 0.0, -1e+30
    %v137 = vsel %vm105, 0.0, -1e+30
    %v138 = vsel %vm106, 0.0, -1e+30
    %v139 = vsel %vm107, 0.0, -1e+30
    %v140 = vsel %vm108, 0.0, -1e+30
    %v141 = vsel %vm109, 0.0, -1e+30
    %v142 = vsel %vm110, 0.0, -1e+30
    %v143 = vsel %vm111, 0.0, -1e+30
    %v144 = vsel %vm112, 0.0, -1e+30
    %v145 = vsel %vm113, 0.0, -1e+30
    %v146 = vsel %vm114, 0.0, -1e+30
    %v147 = vld [vmem:[%s10] sm:$0xff]
    %v148 = vld [vmem:[%s10 + $0x8] sm:$0xf]
    %v149 = vld [vmem:[%s0] sm:$0xff]
    %v150 = vld [vmem:[%s0 + $0x8] sm:$0xff]
    %v151 = vld [vmem:[%s2] sm:$0xff]
    %v152 = vld [vmem:[%s2 + $0x8] sm:$0xff]
    %v153 = vld [vmem:[%s2 + $0x10] sm:$0xff]
    %v154 = vld [vmem:[%s2 + $0x18] sm:$0xff]
    %v155 = vld [vmem:[%s2 + $0x20] sm:$0xff]
    %v156 = vld [vmem:[%s2 + $0x28] sm:$0xff]
    %v157 = vld [vmem:[%s2 + $0x30] sm:$0xff]
    %v158 = vld [vmem:[%s2 + $0x38] sm:$0xff]
    %v159 = vld [vmem:[%s2 + $0x40] sm:$0xff]
    %v160 = vld [vmem:[%s2 + $0x48] sm:$0xff]
    %v161 = vld [vmem:[%s2 + $0x50] sm:$0xff]
    %v162 = vld [vmem:[%s2 + $0x58] sm:$0xff]
    %v163 = vld [vmem:[%s2 + $0x60] sm:$0xff]
    %v164 = vld [vmem:[%s2 + $0x68] sm:$0xff]
    %v165 = vld [vmem:[%s2 + $0x70] sm:$0xff]
    %v166 = vld [vmem:[%s2 + $0x78] sm:$0xff]
    %v167 = vld [vmem:[%s2 + $0x80] sm:$0xff]
    %v168 = vld [vmem:[%s2 + $0x88] sm:$0xff]
    %v169 = vld [vmem:[%s2 + $0x90] sm:$0xff]
    %v170 = vld [vmem:[%s2 + $0x98] sm:$0xff]
    %v171 = vld [vmem:[%s2 + $0xa0] sm:$0xff]
    %v172 = vld [vmem:[%s2 + $0xa8] sm:$0xff]
    %v173 = vld [vmem:[%s2 + $0xb0] sm:$0xff]
    %v174 = vld [vmem:[%s2 + $0xb8] sm:$0xff]
    %v175 = vld [vmem:[%s2 + $0xc0] sm:$0xff]
    %v176 = vld [vmem:[%s2 + $0xc8] sm:$0xff]
    %v177 = vld [vmem:[%s2 + $0xd0] sm:$0xff]
    %v178 = vld [vmem:[%s2 + $0xd8] sm:$0xff]
    %v179 = vld [vmem:[%s2 + $0xe0] sm:$0xff]
    %v180 = vld [vmem:[%s2 + $0xe8] sm:$0xff]
    %v181 = vld [vmem:[%s2 + $0xf0] sm:$0xff]
    %v182 = vld [vmem:[%s2 + $0xf8] sm:$0xff]
    %v183 = vld [vmem:[%s3] sm:$0x3]
    %v184 = vld [vmem:[%s4] sm:$0xff]
    %v185 = vld [vmem:[%s4 + $0x8] sm:$0xff]
    %v186 = vld [vmem:[%s4 + $0x10] sm:$0xff]
    %v187 = vld [vmem:[%s4 + $0x18] sm:$0xff]
    %v188 = vld [vmem:[%s4 + $0x20] sm:$0xff]
    %v189 = vld [vmem:[%s4 + $0x28] sm:$0xff]
    %v190 = vld [vmem:[%s4 + $0x30] sm:$0xff]
    %v191 = vld [vmem:[%s4 + $0x38] sm:$0xff]
    %v192 = vld [vmem:[%s4 + $0x40] sm:$0xff]
    %v193 = vld [vmem:[%s4 + $0x48] sm:$0xff]
    %v194 = vld [vmem:[%s4 + $0x50] sm:$0xff]
    %v195 = vld [vmem:[%s4 + $0x58] sm:$0xff]
    %v196 = vld [vmem:[%s4 + $0x60] sm:$0xff]
    %v197 = vld [vmem:[%s4 + $0x68] sm:$0xff]
    %v198 = vld [vmem:[%s4 + $0x70] sm:$0xff]
    %v199 = vld [vmem:[%s4 + $0x78] sm:$0xff]
    %v200 = vld [vmem:[%s5] sm:$0x1]
    %v202 = vperm.slane %v183, 0
    %v203 = vperm.slane %v183, 1
    %206 = vmatpush.msra.mxu0 %v181
    %207 = vmatpush.msra.mxu0 %v179
    %208 = vmatpush.msra.mxu0 %v177
    %209 = vmatpush.msra.mxu0 %v175
    %210 = vmatpush.msra.mxu0 %v173
    %211 = vmatpush.msra.mxu0 %v171
    %212 = vmatpush.msra.mxu0 %v169
    %213 = vmatpush.msra.mxu0 %v167
    %214 = vmatpush.msra.mxu0 %v165
    %215 = vmatpush.msra.mxu0 %v163
    %216 = vmatpush.msra.mxu0 %v161
    %217 = vmatpush.msra.mxu0 %v159
    %218 = vmatpush.msra.mxu0 %v157
    %219 = vmatpush.msra.mxu0 %v155
    %220 = vmatpush.msra.mxu0 %v153
    %221 = vmatpush.msra.mxu0 %v151
    %222 = vmatmul.f32.gmra.mxu0 %v149
    %v223 = vpop.f32.mrf.mxu0
    %v224 = vadd.f32 %v202, %v223
    %225 = vmatmul.f32.gmra.mxu0 %v150
    %v226 = vpop.f32.mrf.mxu0
    %v227 = vadd.f32 %v202, %v226
    %228 = vdwg.mxu0
    %229 = vmatpush.msra.mxu0 %v182
    %230 = vmatpush.msra.mxu0 %v180
    %231 = vmatpush.msra.mxu0 %v178
    %232 = vmatpush.msra.mxu0 %v176
    %233 = vmatpush.msra.mxu0 %v174
    %234 = vmatpush.msra.mxu0 %v172
    %235 = vmatpush.msra.mxu0 %v170
    %236 = vmatpush.msra.mxu0 %v168
    %237 = vmatpush.msra.mxu0 %v166
    %238 = vmatpush.msra.mxu0 %v164
    %239 = vmatpush.msra.mxu0 %v162
    %240 = vmatpush.msra.mxu0 %v160
    %241 = vmatpush.msra.mxu0 %v158
    %242 = vmatpush.msra.mxu0 %v156
    %243 = vmatpush.msra.mxu0 %v154
    %244 = vmatpush.msra.mxu0 %v152
    %245 = vmatmul.f32.gmra.mxu0 %v149
    %v246 = vpop.f32.mrf.mxu0
    %v247 = vadd.f32 %v203, %v246
    %248 = vmatmul.f32.gmra.mxu0 %v150
    %v249 = vpop.f32.mrf.mxu0
    %v250 = vadd.f32 %v203, %v249
    %251 = vdwg.mxu0
    %v254 = vrot.slane %v247, 1
    %v255 = vrot.slane %v247, 2
    %v256 = vrot.slane %v247, 3
    %v257 = vrot.slane %v247, 4
    %v258 = vrot.slane %v247, 5
    %v259 = vrot.slane %v247, 6
    %v260 = vrot.slane %v247, 7
    %v261 = vrot.slane %v250, 1
    %v262 = vrot.slane %v250, 2
    %v263 = vrot.slane %v250, 3
    %v264 = vrot.slane %v250, 4
    %v265 = vrot.slane %v250, 5
    %v266 = vrot.slane %v250, 6
    %v267 = vrot.slane %v250, 7
    %v268 = vperm.slane %v247, 0
    %v269 = vperm.slane %v254, 0
    %v270 = vperm.slane %v255, 0
    %v271 = vperm.slane %v256, 0
    %v272 = vperm.slane %v257, 0
    %v273 = vperm.slane %v258, 0
    %v274 = vperm.slane %v259, 0
    %v275 = vperm.slane %v260, 0
    %v276 = vperm.slane %v250, 0
    %v277 = vperm.slane %v261, 0
    %v278 = vperm.slane %v262, 0
    %v279 = vperm.slane %v263, 0
    %v280 = vperm.slane %v264, 0
    %v281 = vperm.slane %v265, 0
    %v282 = vperm.slane %v266, 0
    %v283 = vperm.slane %v267, 0
    %v300 = vadd.f32 %v268, %v224
    %v301 = vadd.f32 %v268, %v227
    %v302 = vadd.f32 %v269, %v224
    %v303 = vadd.f32 %v269, %v227
    %v304 = vadd.f32 %v270, %v224
    %v305 = vadd.f32 %v270, %v227
    %v306 = vadd.f32 %v271, %v224
    %v307 = vadd.f32 %v271, %v227
    %v308 = vadd.f32 %v272, %v224
    %v309 = vadd.f32 %v272, %v227
    %v310 = vadd.f32 %v273, %v224
    %v311 = vadd.f32 %v273, %v227
    %v312 = vadd.f32 %v274, %v224
    %v313 = vadd.f32 %v274, %v227
    %v314 = vadd.f32 %v275, %v224
    %v315 = vadd.f32 %v275, %v227
    %v316 = vadd.f32 %v276, %v224
    %v317 = vadd.f32 %v276, %v227
    %v318 = vadd.f32 %v277, %v224
    %v319 = vadd.f32 %v277, %v227
    %v320 = vadd.f32 %v278, %v224
    %v321 = vadd.f32 %v278, %v227
    %v322 = vadd.f32 %v279, %v224
    %v323 = vadd.f32 %v279, %v227
    %v324 = vadd.f32 %v280, %v224
    %v325 = vadd.f32 %v280, %v227
    %v326 = vadd.f32 %v281, %v224
    %v327 = vadd.f32 %v281, %v227
    %v328 = vadd.f32 %v282, %v224
    %v329 = vadd.f32 %v282, %v227
    %v330 = vadd.f32 %v283, %v224
    %v331 = vadd.f32 %v283, %v227
    %vm332 = vcmp.gt.f32.partialorder %v300, 0.0
    %vm333 = vcmp.gt.f32.partialorder %v301, 0.0
    %vm334 = vcmp.gt.f32.partialorder %v302, 0.0
    %vm335 = vcmp.gt.f32.partialorder %v303, 0.0
    %vm336 = vcmp.gt.f32.partialorder %v304, 0.0
    %vm337 = vcmp.gt.f32.partialorder %v305, 0.0
    %vm338 = vcmp.gt.f32.partialorder %v306, 0.0
    %vm339 = vcmp.gt.f32.partialorder %v307, 0.0
    %vm340 = vcmp.gt.f32.partialorder %v308, 0.0
    %vm341 = vcmp.gt.f32.partialorder %v309, 0.0
    %vm342 = vcmp.gt.f32.partialorder %v310, 0.0
    %vm343 = vcmp.gt.f32.partialorder %v311, 0.0
    %vm344 = vcmp.gt.f32.partialorder %v312, 0.0
    %vm345 = vcmp.gt.f32.partialorder %v313, 0.0
    %vm346 = vcmp.gt.f32.partialorder %v314, 0.0
    %vm347 = vcmp.gt.f32.partialorder %v315, 0.0
    %vm348 = vcmp.gt.f32.partialorder %v316, 0.0
    %vm349 = vcmp.gt.f32.partialorder %v317, 0.0
    %vm350 = vcmp.gt.f32.partialorder %v318, 0.0
    %vm351 = vcmp.gt.f32.partialorder %v319, 0.0
    %vm352 = vcmp.gt.f32.partialorder %v320, 0.0
    %vm353 = vcmp.gt.f32.partialorder %v321, 0.0
    %vm354 = vcmp.gt.f32.partialorder %v322, 0.0
    %vm355 = vcmp.gt.f32.partialorder %v323, 0.0
    %vm356 = vcmp.gt.f32.partialorder %v324, 0.0
    %vm357 = vcmp.gt.f32.partialorder %v325, 0.0
    %vm358 = vcmp.gt.f32.partialorder %v326, 0.0
    %vm359 = vcmp.gt.f32.partialorder %v327, 0.0
    %vm360 = vcmp.gt.f32.partialorder %v328, 0.0
    %vm361 = vcmp.gt.f32.partialorder %v329, 0.0
    %vm362 = vcmp.gt.f32.partialorder %v330, 0.0
    %vm363 = vcmp.gt.f32.partialorder %v331, 0.0
    %v364 = vmul.f32 %v300, 0.2
    %v365 = vmul.f32 %v301, 0.2
    %v366 = vmul.f32 %v302, 0.2
    %v367 = vmul.f32 %v303, 0.2
    %v368 = vmul.f32 %v304, 0.2
    %v369 = vmul.f32 %v305, 0.2
    %v370 = vmul.f32 %v306, 0.2
    %v371 = vmul.f32 %v307, 0.2
    %v372 = vmul.f32 %v308, 0.2
    %v373 = vmul.f32 %v309, 0.2
    %v374 = vmul.f32 %v310, 0.2
    %v375 = vmul.f32 %v311, 0.2
    %v376 = vmul.f32 %v312, 0.2
    %v377 = vmul.f32 %v313, 0.2
    %v378 = vmul.f32 %v314, 0.2
    %v379 = vmul.f32 %v315, 0.2
    %v380 = vmul.f32 %v316, 0.2
    %v381 = vmul.f32 %v317, 0.2
    %v382 = vmul.f32 %v318, 0.2
    %v383 = vmul.f32 %v319, 0.2
    %v384 = vmul.f32 %v320, 0.2
    %v385 = vmul.f32 %v321, 0.2
    %v386 = vmul.f32 %v322, 0.2
    %v387 = vmul.f32 %v323, 0.2
    %v388 = vmul.f32 %v324, 0.2
    %v389 = vmul.f32 %v325, 0.2
    %v390 = vmul.f32 %v326, 0.2
    %v391 = vmul.f32 %v327, 0.2
    %v392 = vmul.f32 %v328, 0.2
    %v393 = vmul.f32 %v329, 0.2
    %v394 = vmul.f32 %v330, 0.2
    %v395 = vmul.f32 %v331, 0.2
    %v396 = vsel %vm332, %v300, %v364
    %v397 = vsel %vm333, %v301, %v365
    %v398 = vsel %vm334, %v302, %v366
    %v399 = vsel %vm335, %v303, %v367
    %v400 = vsel %vm336, %v304, %v368
    %v401 = vsel %vm337, %v305, %v369
    %v402 = vsel %vm338, %v306, %v370
    %v403 = vsel %vm339, %v307, %v371
    %v404 = vsel %vm340, %v308, %v372
    %v405 = vsel %vm341, %v309, %v373
    %v406 = vsel %vm342, %v310, %v374
    %v407 = vsel %vm343, %v311, %v375
    %v408 = vsel %vm344, %v312, %v376
    %v409 = vsel %vm345, %v313, %v377
    %v410 = vsel %vm346, %v314, %v378
    %v411 = vsel %vm347, %v315, %v379
    %v412 = vsel %vm348, %v316, %v380
    %v413 = vsel %vm349, %v317, %v381
    %v414 = vsel %vm350, %v318, %v382
    %v415 = vsel %vm351, %v319, %v383
    %v416 = vsel %vm352, %v320, %v384
    %v417 = vsel %vm353, %v321, %v385
    %v418 = vsel %vm354, %v322, %v386
    %v419 = vsel %vm355, %v323, %v387
    %v420 = vsel %vm356, %v324, %v388
    %v421 = vsel %vm357, %v325, %v389
    %v422 = vsel %vm358, %v326, %v390
    %v423 = vsel %vm359, %v327, %v391
    %v424 = vsel %vm360, %v328, %v392
    %v425 = vsel %vm361, %v329, %v393
    %v426 = vsel %vm362, %v330, %v394
    %v427 = vsel %vm363, %v331, %v395
    %429 = vset.pattern.permute.xlu0 0
    %430 = vperm.xlu0 %429, %v115
    %v431 = vpop.permute.xlu0 %430
    %434 = vset.pattern.permute.xlu0 0
    %435 = vperm.xlu0 %434, %v116
    %v436 = vpop.permute.xlu0 %435
    %439 = vset.pattern.permute.xlu0 0
    %440 = vperm.xlu0 %439, %v117
    %v441 = vpop.permute.xlu0 %440
    %444 = vset.pattern.permute.xlu0 0
    %445 = vperm.xlu0 %444, %v118
    %v446 = vpop.permute.xlu0 %445
    %449 = vset.pattern.permute.xlu0 0
    %450 = vperm.xlu0 %449, %v119
    %v451 = vpop.permute.xlu0 %450
    %454 = vset.pattern.permute.xlu0 0
    %455 = vperm.xlu0 %454, %v120
    %v456 = vpop.permute.xlu0 %455
    %459 = vset.pattern.permute.xlu0 0
    %460 = vperm.xlu0 %459, %v121
    %v461 = vpop.permute.xlu0 %460
    %464 = vset.pattern.permute.xlu0 0
    %465 = vperm.xlu0 %464, %v122
    %v466 = vpop.permute.xlu0 %465
    %469 = vset.pattern.permute.xlu0 0
    %470 = vperm.xlu0 %469, %v123
    %v471 = vpop.permute.xlu0 %470
    %474 = vset.pattern.permute.xlu0 0
    %475 = vperm.xlu0 %474, %v124
    %v476 = vpop.permute.xlu0 %475
    %479 = vset.pattern.permute.xlu0 0
    %480 = vperm.xlu0 %479, %v125
    %v481 = vpop.permute.xlu0 %480
    %484 = vset.pattern.permute.xlu0 0
    %485 = vperm.xlu0 %484, %v126
    %v486 = vpop.permute.xlu0 %485
    %489 = vset.pattern.permute.xlu0 0
    %490 = vperm.xlu0 %489, %v127
    %v491 = vpop.permute.xlu0 %490
    %494 = vset.pattern.permute.xlu0 0
    %495 = vperm.xlu0 %494, %v128
    %v496 = vpop.permute.xlu0 %495
    %499 = vset.pattern.permute.xlu0 0
    %500 = vperm.xlu0 %499, %v129
    %v501 = vpop.permute.xlu0 %500
    %504 = vset.pattern.permute.xlu0 0
    %505 = vperm.xlu0 %504, %v130
    %v506 = vpop.permute.xlu0 %505
    %509 = vset.pattern.permute.xlu0 0
    %510 = vperm.xlu0 %509, %v131
    %v511 = vpop.permute.xlu0 %510
    %514 = vset.pattern.permute.xlu0 0
    %515 = vperm.xlu0 %514, %v132
    %v516 = vpop.permute.xlu0 %515
    %519 = vset.pattern.permute.xlu0 0
    %520 = vperm.xlu0 %519, %v133
    %v521 = vpop.permute.xlu0 %520
    %524 = vset.pattern.permute.xlu0 0
    %525 = vperm.xlu0 %524, %v134
    %v526 = vpop.permute.xlu0 %525
    %529 = vset.pattern.permute.xlu0 0
    %530 = vperm.xlu0 %529, %v135
    %v531 = vpop.permute.xlu0 %530
    %534 = vset.pattern.permute.xlu0 0
    %535 = vperm.xlu0 %534, %v136
    %v536 = vpop.permute.xlu0 %535
    %539 = vset.pattern.permute.xlu0 0
    %540 = vperm.xlu0 %539, %v137
    %v541 = vpop.permute.xlu0 %540
    %544 = vset.pattern.permute.xlu0 0
    %545 = vperm.xlu0 %544, %v138
    %v546 = vpop.permute.xlu0 %545
    %549 = vset.pattern.permute.xlu0 0
    %550 = vperm.xlu0 %549, %v139
    %v551 = vpop.permute.xlu0 %550
    %554 = vset.pattern.permute.xlu0 0
    %555 = vperm.xlu0 %554, %v140
    %v556 = vpop.permute.xlu0 %555
    %559 = vset.pattern.permute.xlu0 0
    %560 = vperm.xlu0 %559, %v141
    %v561 = vpop.permute.xlu0 %560
    %564 = vset.pattern.permute.xlu0 0
    %565 = vperm.xlu0 %564, %v142
    %v566 = vpop.permute.xlu0 %565
    %569 = vset.pattern.permute.xlu0 0
    %570 = vperm.xlu0 %569, %v143
    %v571 = vpop.permute.xlu0 %570
    %574 = vset.pattern.permute.xlu0 0
    %575 = vperm.xlu0 %574, %v144
    %v576 = vpop.permute.xlu0 %575
    %579 = vset.pattern.permute.xlu0 0
    %580 = vperm.xlu0 %579, %v145
    %v581 = vpop.permute.xlu0 %580
    %584 = vset.pattern.permute.xlu0 0
    %585 = vperm.xlu0 %584, %v146
    %v586 = vpop.permute.xlu0 %585
    %588 = vmatpush.msra.mxu0 %v199
    %589 = vmatpush.msra.mxu0 %v198
    %590 = vmatpush.msra.mxu0 %v197
    %591 = vmatpush.msra.mxu0 %v196
    %592 = vmatpush.msra.mxu0 %v195
    %593 = vmatpush.msra.mxu0 %v194
    %594 = vmatpush.msra.mxu0 %v193
    %595 = vmatpush.msra.mxu0 %v192
    %596 = vmatpush.msra.mxu0 %v191
    %597 = vmatpush.msra.mxu0 %v190
    %598 = vmatpush.msra.mxu0 %v189
    %599 = vmatpush.msra.mxu0 %v188
    %600 = vmatpush.msra.mxu0 %v187
    %601 = vmatpush.msra.mxu0 %v186
    %602 = vmatpush.msra.mxu0 %v185
    %603 = vmatpush.msra.mxu0 %v184
    %604 = vmatmul.f32.gmra.mxu0 %v396
    %v605 = vpop.f32.mrf.mxu0
    %v606 = vadd.f32 %v431, %v605
    %607 = vmatmul.f32.gmra.mxu0 %v397
    %v608 = vpop.f32.mrf.mxu0
    %v609 = vadd.f32 %v436, %v608
    %610 = vmatmul.f32.gmra.mxu0 %v398
    %v611 = vpop.f32.mrf.mxu0
    %v612 = vadd.f32 %v441, %v611
    %613 = vmatmul.f32.gmra.mxu0 %v399
    %v614 = vpop.f32.mrf.mxu0
    %v615 = vadd.f32 %v446, %v614
    %616 = vmatmul.f32.gmra.mxu0 %v400
    %v617 = vpop.f32.mrf.mxu0
    %v618 = vadd.f32 %v451, %v617
    %619 = vmatmul.f32.gmra.mxu0 %v401
    %v620 = vpop.f32.mrf.mxu0
    %v621 = vadd.f32 %v456, %v620
    %622 = vmatmul.f32.gmra.mxu0 %v402
    %v623 = vpop.f32.mrf.mxu0
    %v624 = vadd.f32 %v461, %v623
    %625 = vmatmul.f32.gmra.mxu0 %v403
    %v626 = vpop.f32.mrf.mxu0
    %v627 = vadd.f32 %v466, %v626
    %628 = vmatmul.f32.gmra.mxu0 %v404
    %v629 = vpop.f32.mrf.mxu0
    %v630 = vadd.f32 %v471, %v629
    %631 = vmatmul.f32.gmra.mxu0 %v405
    %v632 = vpop.f32.mrf.mxu0
    %v633 = vadd.f32 %v476, %v632
    %634 = vmatmul.f32.gmra.mxu0 %v406
    %v635 = vpop.f32.mrf.mxu0
    %v636 = vadd.f32 %v481, %v635
    %637 = vmatmul.f32.gmra.mxu0 %v407
    %v638 = vpop.f32.mrf.mxu0
    %v639 = vadd.f32 %v486, %v638
    %640 = vmatmul.f32.gmra.mxu0 %v408
    %v641 = vpop.f32.mrf.mxu0
    %v642 = vadd.f32 %v491, %v641
    %643 = vmatmul.f32.gmra.mxu0 %v409
    %v644 = vpop.f32.mrf.mxu0
    %v645 = vadd.f32 %v496, %v644
    %646 = vmatmul.f32.gmra.mxu0 %v410
    %v647 = vpop.f32.mrf.mxu0
    %v648 = vadd.f32 %v501, %v647
    %649 = vmatmul.f32.gmra.mxu0 %v411
    %v650 = vpop.f32.mrf.mxu0
    %v651 = vadd.f32 %v506, %v650
    %652 = vmatmul.f32.gmra.mxu0 %v412
    %v653 = vpop.f32.mrf.mxu0
    %v654 = vadd.f32 %v511, %v653
    %655 = vmatmul.f32.gmra.mxu0 %v413
    %v656 = vpop.f32.mrf.mxu0
    %v657 = vadd.f32 %v516, %v656
    %658 = vmatmul.f32.gmra.mxu0 %v414
    %v659 = vpop.f32.mrf.mxu0
    %v660 = vadd.f32 %v521, %v659
    %661 = vmatmul.f32.gmra.mxu0 %v415
    %v662 = vpop.f32.mrf.mxu0
    %v663 = vadd.f32 %v526, %v662
    %664 = vmatmul.f32.gmra.mxu0 %v416
    %v665 = vpop.f32.mrf.mxu0
    %v666 = vadd.f32 %v531, %v665
    %667 = vmatmul.f32.gmra.mxu0 %v417
    %v668 = vpop.f32.mrf.mxu0
    %v669 = vadd.f32 %v536, %v668
    %670 = vmatmul.f32.gmra.mxu0 %v418
    %v671 = vpop.f32.mrf.mxu0
    %v672 = vadd.f32 %v541, %v671
    %673 = vmatmul.f32.gmra.mxu0 %v419
    %v674 = vpop.f32.mrf.mxu0
    %v675 = vadd.f32 %v546, %v674
    %676 = vmatmul.f32.gmra.mxu0 %v420
    %v677 = vpop.f32.mrf.mxu0
    %v678 = vadd.f32 %v551, %v677
    %679 = vmatmul.f32.gmra.mxu0 %v421
    %v680 = vpop.f32.mrf.mxu0
    %v681 = vadd.f32 %v556, %v680
    %682 = vmatmul.f32.gmra.mxu0 %v422
    %v683 = vpop.f32.mrf.mxu0
    %v684 = vadd.f32 %v561, %v683
    %685 = vmatmul.f32.gmra.mxu0 %v423
    %v686 = vpop.f32.mrf.mxu0
    %v687 = vadd.f32 %v566, %v686
    %688 = vmatmul.f32.gmra.mxu0 %v424
    %v689 = vpop.f32.mrf.mxu0
    %v690 = vadd.f32 %v571, %v689
    %691 = vmatmul.f32.gmra.mxu0 %v425
    %v692 = vpop.f32.mrf.mxu0
    %v693 = vadd.f32 %v576, %v692
    %694 = vmatmul.f32.gmra.mxu0 %v426
    %v695 = vpop.f32.mrf.mxu0
    %v696 = vadd.f32 %v581, %v695
    %697 = vmatmul.f32.gmra.mxu0 %v427
    %v698 = vpop.f32.mrf.mxu0
    %v699 = vadd.f32 %v586, %v698
    %700 = vdwg.mxu0
    %vm701 = vcmask 97280
    %v702 = vsel %vm701, %v606, -inf
    %v703 = vsel %vm701, %v609, -inf
    %v704 = vmax.f32 %v702, %v703
    %v705 = vrot.slane %v704, 4
    %v706 = vmax.f32 %v704, %v705
    %v707 = vrot.slane %v706, 2
    %v708 = vmax.f32 %v706, %v707
    %v709 = vrot.slane %v708, 1
    %v710 = vmax.f32 %v708, %v709
    %v711 = vsel %vm701, %v612, -inf
    %v712 = vsel %vm701, %v615, -inf
    %v713 = vmax.f32 %v711, %v712
    %v714 = vrot.slane %v713, 4
    %v715 = vmax.f32 %v713, %v714
    %v716 = vrot.slane %v715, 2
    %v717 = vmax.f32 %v715, %v716
    %v718 = vrot.slane %v717, 1
    %v719 = vmax.f32 %v717, %v718
    %v720 = vsel %vm701, %v618, -inf
    %v721 = vsel %vm701, %v621, -inf
    %v722 = vmax.f32 %v720, %v721
    %v723 = vrot.slane %v722, 4
    %v724 = vmax.f32 %v722, %v723
    %v725 = vrot.slane %v724, 2
    %v726 = vmax.f32 %v724, %v725
    %v727 = vrot.slane %v726, 1
    %v728 = vmax.f32 %v726, %v727
    %v729 = vsel %vm701, %v624, -inf
    %v730 = vsel %vm701, %v627, -inf
    %v731 = vmax.f32 %v729, %v730
    %v732 = vrot.slane %v731, 4
    %v733 = vmax.f32 %v731, %v732
    %v734 = vrot.slane %v733, 2
    %v735 = vmax.f32 %v733, %v734
    %v736 = vrot.slane %v735, 1
    %v737 = vmax.f32 %v735, %v736
    %v738 = vsel %vm701, %v630, -inf
    %v739 = vsel %vm701, %v633, -inf
    %v740 = vmax.f32 %v738, %v739
    %v741 = vrot.slane %v740, 4
    %v742 = vmax.f32 %v740, %v741
    %v743 = vrot.slane %v742, 2
    %v744 = vmax.f32 %v742, %v743
    %v745 = vrot.slane %v744, 1
    %v746 = vmax.f32 %v744, %v745
    %v747 = vsel %vm701, %v636, -inf
    %v748 = vsel %vm701, %v639, -inf
    %v749 = vmax.f32 %v747, %v748
    %v750 = vrot.slane %v749, 4
    %v751 = vmax.f32 %v749, %v750
    %v752 = vrot.slane %v751, 2
    %v753 = vmax.f32 %v751, %v752
    %v754 = vrot.slane %v753, 1
    %v755 = vmax.f32 %v753, %v754
    %v756 = vsel %vm701, %v642, -inf
    %v757 = vsel %vm701, %v645, -inf
    %v758 = vmax.f32 %v756, %v757
    %v759 = vrot.slane %v758, 4
    %v760 = vmax.f32 %v758, %v759
    %v761 = vrot.slane %v760, 2
    %v762 = vmax.f32 %v760, %v761
    %v763 = vrot.slane %v762, 1
    %v764 = vmax.f32 %v762, %v763
    %v765 = vsel %vm701, %v648, -inf
    %v766 = vsel %vm701, %v651, -inf
    %v767 = vmax.f32 %v765, %v766
    %v768 = vrot.slane %v767, 4
    %v769 = vmax.f32 %v767, %v768
    %v770 = vrot.slane %v769, 2
    %v771 = vmax.f32 %v769, %v770
    %v772 = vrot.slane %v771, 1
    %v773 = vmax.f32 %v771, %v772
    %v774 = vsel %vm701, %v654, -inf
    %v775 = vsel %vm701, %v657, -inf
    %v776 = vmax.f32 %v774, %v775
    %v777 = vrot.slane %v776, 4
    %v778 = vmax.f32 %v776, %v777
    %v779 = vrot.slane %v778, 2
    %v780 = vmax.f32 %v778, %v779
    %v781 = vrot.slane %v780, 1
    %v782 = vmax.f32 %v780, %v781
    %v783 = vsel %vm701, %v660, -inf
    %v784 = vsel %vm701, %v663, -inf
    %v785 = vmax.f32 %v783, %v784
    %v786 = vrot.slane %v785, 4
    %v787 = vmax.f32 %v785, %v786
    %v788 = vrot.slane %v787, 2
    %v789 = vmax.f32 %v787, %v788
    %v790 = vrot.slane %v789, 1
    %v791 = vmax.f32 %v789, %v790
    %v792 = vsel %vm701, %v666, -inf
    %v793 = vsel %vm701, %v669, -inf
    %v794 = vmax.f32 %v792, %v793
    %v795 = vrot.slane %v794, 4
    %v796 = vmax.f32 %v794, %v795
    %v797 = vrot.slane %v796, 2
    %v798 = vmax.f32 %v796, %v797
    %v799 = vrot.slane %v798, 1
    %v800 = vmax.f32 %v798, %v799
    %v801 = vsel %vm701, %v672, -inf
    %v802 = vsel %vm701, %v675, -inf
    %v803 = vmax.f32 %v801, %v802
    %v804 = vrot.slane %v803, 4
    %v805 = vmax.f32 %v803, %v804
    %v806 = vrot.slane %v805, 2
    %v807 = vmax.f32 %v805, %v806
    %v808 = vrot.slane %v807, 1
    %v809 = vmax.f32 %v807, %v808
    %v810 = vsel %vm701, %v678, -inf
    %v811 = vsel %vm701, %v681, -inf
    %v812 = vmax.f32 %v810, %v811
    %v813 = vrot.slane %v812, 4
    %v814 = vmax.f32 %v812, %v813
    %v815 = vrot.slane %v814, 2
    %v816 = vmax.f32 %v814, %v815
    %v817 = vrot.slane %v816, 1
    %v818 = vmax.f32 %v816, %v817
    %v819 = vsel %vm701, %v684, -inf
    %v820 = vsel %vm701, %v687, -inf
    %v821 = vmax.f32 %v819, %v820
    %v822 = vrot.slane %v821, 4
    %v823 = vmax.f32 %v821, %v822
    %v824 = vrot.slane %v823, 2
    %v825 = vmax.f32 %v823, %v824
    %v826 = vrot.slane %v825, 1
    %v827 = vmax.f32 %v825, %v826
    %v828 = vsel %vm701, %v690, -inf
    %v829 = vsel %vm701, %v693, -inf
    %v830 = vmax.f32 %v828, %v829
    %v831 = vrot.slane %v830, 4
    %v832 = vmax.f32 %v830, %v831
    %v833 = vrot.slane %v832, 2
    %v834 = vmax.f32 %v832, %v833
    %v835 = vrot.slane %v834, 1
    %v836 = vmax.f32 %v834, %v835
    %v837 = vsel %vm701, %v696, -inf
    %v838 = vsel %vm701, %v699, -inf
    %v839 = vmax.f32 %v837, %v838
    %v840 = vrot.slane %v839, 4
    %v841 = vmax.f32 %v839, %v840
    %v842 = vrot.slane %v841, 2
    %v843 = vmax.f32 %v841, %v842
    %v844 = vrot.slane %v843, 1
    %v845 = vmax.f32 %v843, %v844
    %v846 = vsub.f32 %v606, %v710
    %v847 = vsub.f32 %v609, %v710
    %v848 = vsub.f32 %v612, %v719
    %v849 = vsub.f32 %v615, %v719
    %v850 = vsub.f32 %v618, %v728
    %v851 = vsub.f32 %v621, %v728
    %v852 = vsub.f32 %v624, %v737
    %v853 = vsub.f32 %v627, %v737
    %v854 = vsub.f32 %v630, %v746
    %v855 = vsub.f32 %v633, %v746
    %v856 = vsub.f32 %v636, %v755
    %v857 = vsub.f32 %v639, %v755
    %v858 = vsub.f32 %v642, %v764
    %v859 = vsub.f32 %v645, %v764
    %v860 = vsub.f32 %v648, %v773
    %v861 = vsub.f32 %v651, %v773
    %v862 = vsub.f32 %v654, %v782
    %v863 = vsub.f32 %v657, %v782
    %v864 = vsub.f32 %v660, %v791
    %v865 = vsub.f32 %v663, %v791
    %v866 = vsub.f32 %v666, %v800
    %v867 = vsub.f32 %v669, %v800
    %v868 = vsub.f32 %v672, %v809
    %v869 = vsub.f32 %v675, %v809
    %v870 = vsub.f32 %v678, %v818
    %v871 = vsub.f32 %v681, %v818
    %v872 = vsub.f32 %v684, %v827
    %v873 = vsub.f32 %v687, %v827
    %v874 = vsub.f32 %v690, %v836
    %v875 = vsub.f32 %v693, %v836
    %v876 = vsub.f32 %v696, %v845
    %v877 = vsub.f32 %v699, %v845
    %v878 = vmul.f32 %v846, 1.442695
    %v879 = vpow.pop %v878
    %v880 = vmul.f32 %v847, 1.442695
    %v881 = vpow.pop %v880
    %v882 = vmul.f32 %v848, 1.442695
    %v883 = vpow.pop %v882
    %v884 = vmul.f32 %v849, 1.442695
    %v885 = vpow.pop %v884
    %v886 = vmul.f32 %v850, 1.442695
    %v887 = vpow.pop %v886
    %v888 = vmul.f32 %v851, 1.442695
    %v889 = vpow.pop %v888
    %v890 = vmul.f32 %v852, 1.442695
    %v891 = vpow.pop %v890
    %v892 = vmul.f32 %v853, 1.442695
    %v893 = vpow.pop %v892
    %v894 = vmul.f32 %v854, 1.442695
    %v895 = vpow.pop %v894
    %v896 = vmul.f32 %v855, 1.442695
    %v897 = vpow.pop %v896
    %v898 = vmul.f32 %v856, 1.442695
    %v899 = vpow.pop %v898
    %v900 = vmul.f32 %v857, 1.442695
    %v901 = vpow.pop %v900
    %v902 = vmul.f32 %v858, 1.442695
    %v903 = vpow.pop %v902
    %v904 = vmul.f32 %v859, 1.442695
    %v905 = vpow.pop %v904
    %v906 = vmul.f32 %v860, 1.442695
    %v907 = vpow.pop %v906
    %v908 = vmul.f32 %v861, 1.442695
    %v909 = vpow.pop %v908
    %v910 = vmul.f32 %v862, 1.442695
    %v911 = vpow.pop %v910
    %v912 = vmul.f32 %v863, 1.442695
    %v913 = vpow.pop %v912
    %v914 = vmul.f32 %v864, 1.442695
    %v915 = vpow.pop %v914
    %v916 = vmul.f32 %v865, 1.442695
    %v917 = vpow.pop %v916
    %v918 = vmul.f32 %v866, 1.442695
    %v919 = vpow.pop %v918
    %v920 = vmul.f32 %v867, 1.442695
    %v921 = vpow.pop %v920
    %v922 = vmul.f32 %v868, 1.442695
    %v923 = vpow.pop %v922
    %v924 = vmul.f32 %v869, 1.442695
    %v925 = vpow.pop %v924
    %v926 = vmul.f32 %v870, 1.442695
    %v927 = vpow.pop %v926
    %v928 = vmul.f32 %v871, 1.442695
    %v929 = vpow.pop %v928
    %v930 = vmul.f32 %v872, 1.442695
    %v931 = vpow.pop %v930
    %v932 = vmul.f32 %v873, 1.442695
    %v933 = vpow.pop %v932
    %v934 = vmul.f32 %v874, 1.442695
    %v935 = vpow.pop %v934
    %v936 = vmul.f32 %v875, 1.442695
    %v937 = vpow.pop %v936
    %v938 = vmul.f32 %v876, 1.442695
    %v939 = vpow.pop %v938
    %v940 = vmul.f32 %v877, 1.442695
    %v941 = vpow.pop %v940
    %v942 = vsel %vm701, %v879, 0.0
    %v943 = vsel %vm701, %v881, 0.0
    %v944 = vadd.f32 %v942, %v943
    %v945 = vrot.slane %v944, 4
    %v946 = vadd.f32 %v944, %v945
    %v947 = vrot.slane %v946, 2
    %v948 = vadd.f32 %v946, %v947
    %v949 = vrot.slane %v948, 1
    %v950 = vadd.f32 %v948, %v949
    %v951 = vsel %vm701, %v883, 0.0
    %v952 = vsel %vm701, %v885, 0.0
    %v953 = vadd.f32 %v951, %v952
    %v954 = vrot.slane %v953, 4
    %v955 = vadd.f32 %v953, %v954
    %v956 = vrot.slane %v955, 2
    %v957 = vadd.f32 %v955, %v956
    %v958 = vrot.slane %v957, 1
    %v959 = vadd.f32 %v957, %v958
    %v960 = vsel %vm701, %v887, 0.0
    %v961 = vsel %vm701, %v889, 0.0
    %v962 = vadd.f32 %v960, %v961
    %v963 = vrot.slane %v962, 4
    %v964 = vadd.f32 %v962, %v963
    %v965 = vrot.slane %v964, 2
    %v966 = vadd.f32 %v964, %v965
    %v967 = vrot.slane %v966, 1
    %v968 = vadd.f32 %v966, %v967
    %v969 = vsel %vm701, %v891, 0.0
    %v970 = vsel %vm701, %v893, 0.0
    %v971 = vadd.f32 %v969, %v970
    %v972 = vrot.slane %v971, 4
    %v973 = vadd.f32 %v971, %v972
    %v974 = vrot.slane %v973, 2
    %v975 = vadd.f32 %v973, %v974
    %v976 = vrot.slane %v975, 1
    %v977 = vadd.f32 %v975, %v976
    %v978 = vsel %vm701, %v895, 0.0
    %v979 = vsel %vm701, %v897, 0.0
    %v980 = vadd.f32 %v978, %v979
    %v981 = vrot.slane %v980, 4
    %v982 = vadd.f32 %v980, %v981
    %v983 = vrot.slane %v982, 2
    %v984 = vadd.f32 %v982, %v983
    %v985 = vrot.slane %v984, 1
    %v986 = vadd.f32 %v984, %v985
    %v987 = vsel %vm701, %v899, 0.0
    %v988 = vsel %vm701, %v901, 0.0
    %v989 = vadd.f32 %v987, %v988
    %v990 = vrot.slane %v989, 4
    %v991 = vadd.f32 %v989, %v990
    %v992 = vrot.slane %v991, 2
    %v993 = vadd.f32 %v991, %v992
    %v994 = vrot.slane %v993, 1
    %v995 = vadd.f32 %v993, %v994
    %v996 = vsel %vm701, %v903, 0.0
    %v997 = vsel %vm701, %v905, 0.0
    %v998 = vadd.f32 %v996, %v997
    %v999 = vrot.slane %v998, 4
    %v1000 = vadd.f32 %v998, %v999
    %v1001 = vrot.slane %v1000, 2
    %v1002 = vadd.f32 %v1000, %v1001
    %v1003 = vrot.slane %v1002, 1
    %v1004 = vadd.f32 %v1002, %v1003
    %v1005 = vsel %vm701, %v907, 0.0
    %v1006 = vsel %vm701, %v909, 0.0
    %v1007 = vadd.f32 %v1005, %v1006
    %v1008 = vrot.slane %v1007, 4
    %v1009 = vadd.f32 %v1007, %v1008
    %v1010 = vrot.slane %v1009, 2
    %v1011 = vadd.f32 %v1009, %v1010
    %v1012 = vrot.slane %v1011, 1
    %v1013 = vadd.f32 %v1011, %v1012
    %v1014 = vsel %vm701, %v911, 0.0
    %v1015 = vsel %vm701, %v913, 0.0
    %v1016 = vadd.f32 %v1014, %v1015
    %v1017 = vrot.slane %v1016, 4
    %v1018 = vadd.f32 %v1016, %v1017
    %v1019 = vrot.slane %v1018, 2
    %v1020 = vadd.f32 %v1018, %v1019
    %v1021 = vrot.slane %v1020, 1
    %v1022 = vadd.f32 %v1020, %v1021
    %v1023 = vsel %vm701, %v915, 0.0
    %v1024 = vsel %vm701, %v917, 0.0
    %v1025 = vadd.f32 %v1023, %v1024
    %v1026 = vrot.slane %v1025, 4
    %v1027 = vadd.f32 %v1025, %v1026
    %v1028 = vrot.slane %v1027, 2
    %v1029 = vadd.f32 %v1027, %v1028
    %v1030 = vrot.slane %v1029, 1
    %v1031 = vadd.f32 %v1029, %v1030
    %v1032 = vsel %vm701, %v919, 0.0
    %v1033 = vsel %vm701, %v921, 0.0
    %v1034 = vadd.f32 %v1032, %v1033
    %v1035 = vrot.slane %v1034, 4
    %v1036 = vadd.f32 %v1034, %v1035
    %v1037 = vrot.slane %v1036, 2
    %v1038 = vadd.f32 %v1036, %v1037
    %v1039 = vrot.slane %v1038, 1
    %v1040 = vadd.f32 %v1038, %v1039
    %v1041 = vsel %vm701, %v923, 0.0
    %v1042 = vsel %vm701, %v925, 0.0
    %v1043 = vadd.f32 %v1041, %v1042
    %v1044 = vrot.slane %v1043, 4
    %v1045 = vadd.f32 %v1043, %v1044
    %v1046 = vrot.slane %v1045, 2
    %v1047 = vadd.f32 %v1045, %v1046
    %v1048 = vrot.slane %v1047, 1
    %v1049 = vadd.f32 %v1047, %v1048
    %v1050 = vsel %vm701, %v927, 0.0
    %v1051 = vsel %vm701, %v929, 0.0
    %v1052 = vadd.f32 %v1050, %v1051
    %v1053 = vrot.slane %v1052, 4
    %v1054 = vadd.f32 %v1052, %v1053
    %v1055 = vrot.slane %v1054, 2
    %v1056 = vadd.f32 %v1054, %v1055
    %v1057 = vrot.slane %v1056, 1
    %v1058 = vadd.f32 %v1056, %v1057
    %v1059 = vsel %vm701, %v931, 0.0
    %v1060 = vsel %vm701, %v933, 0.0
    %v1061 = vadd.f32 %v1059, %v1060
    %v1062 = vrot.slane %v1061, 4
    %v1063 = vadd.f32 %v1061, %v1062
    %v1064 = vrot.slane %v1063, 2
    %v1065 = vadd.f32 %v1063, %v1064
    %v1066 = vrot.slane %v1065, 1
    %v1067 = vadd.f32 %v1065, %v1066
    %v1068 = vsel %vm701, %v935, 0.0
    %v1069 = vsel %vm701, %v937, 0.0
    %v1070 = vadd.f32 %v1068, %v1069
    %v1071 = vrot.slane %v1070, 4
    %v1072 = vadd.f32 %v1070, %v1071
    %v1073 = vrot.slane %v1072, 2
    %v1074 = vadd.f32 %v1072, %v1073
    %v1075 = vrot.slane %v1074, 1
    %v1076 = vadd.f32 %v1074, %v1075
    %v1077 = vsel %vm701, %v939, 0.0
    %v1078 = vsel %vm701, %v941, 0.0
    %v1079 = vadd.f32 %v1077, %v1078
    %v1080 = vrot.slane %v1079, 4
    %v1081 = vadd.f32 %v1079, %v1080
    %v1082 = vrot.slane %v1081, 2
    %v1083 = vadd.f32 %v1081, %v1082
    %v1084 = vrot.slane %v1083, 1
    %v1085 = vadd.f32 %v1083, %v1084
    %v1086 = vrcp.pop %v950
    %v1087 = vmul.f32 %v950, %v1086
    %v1088 = vsub.f32 1.0, %v1087
    %v1089 = vmul.f32 %v1086, %v1088
    %v1090 = vadd.f32 %v1086, %v1089
    %vm1091 = vweird.f32 %v950
    %vm1092 = vweird.f32 %v1086
    %vm1093 = vmor %vm1091, %vm1092
    %v1094 = vsel %vm1093, %v1086, %v1090
    %v1095 = vand.u32 2147483647, %v950
    %vm1096 = vcmp.eq.f32.partialorder %v1095, 8.507059e+37
    %v1097 = vand.u32 %v950, 2147483648
    %v1098 = vor.u32 1.1754944e-38, %v1097
    %v1099 = vsel %vm1096, %v1098, %v1094
    %v1100 = vmul.f32 1.0, %v1099
    %v1101 = vrcp.pop %v959
    %v1102 = vmul.f32 %v959, %v1101
    %v1103 = vsub.f32 1.0, %v1102
    %v1104 = vmul.f32 %v1101, %v1103
    %v1105 = vadd.f32 %v1101, %v1104
    %vm1106 = vweird.f32 %v959
    %vm1107 = vweird.f32 %v1101
    %vm1108 = vmor %vm1106, %vm1107
    %v1109 = vsel %vm1108, %v1101, %v1105
    %v1110 = vand.u32 2147483647, %v959
    %vm1111 = vcmp.eq.f32.partialorder %v1110, 8.507059e+37
    %v1112 = vand.u32 %v959, 2147483648
    %v1113 = vor.u32 1.1754944e-38, %v1112
    %v1114 = vsel %vm1111, %v1113, %v1109
    %v1115 = vmul.f32 1.0, %v1114
    %v1116 = vrcp.pop %v968
    %v1117 = vmul.f32 %v968, %v1116
    %v1118 = vsub.f32 1.0, %v1117
    %v1119 = vmul.f32 %v1116, %v1118
    %v1120 = vadd.f32 %v1116, %v1119
    %vm1121 = vweird.f32 %v968
    %vm1122 = vweird.f32 %v1116
    %vm1123 = vmor %vm1121, %vm1122
    %v1124 = vsel %vm1123, %v1116, %v1120
    %v1125 = vand.u32 2147483647, %v968
    %vm1126 = vcmp.eq.f32.partialorder %v1125, 8.507059e+37
    %v1127 = vand.u32 %v968, 2147483648
    %v1128 = vor.u32 1.1754944e-38, %v1127
    %v1129 = vsel %vm1126, %v1128, %v1124
    %v1130 = vmul.f32 1.0, %v1129
    %v1131 = vrcp.pop %v977
    %v1132 = vmul.f32 %v977, %v1131
    %v1133 = vsub.f32 1.0, %v1132
    %v1134 = vmul.f32 %v1131, %v1133
    %v1135 = vadd.f32 %v1131, %v1134
    %vm1136 = vweird.f32 %v977
    %vm1137 = vweird.f32 %v1131
    %vm1138 = vmor %vm1136, %vm1137
    %v1139 = vsel %vm1138, %v1131, %v1135
    %v1140 = vand.u32 2147483647, %v977
    %vm1141 = vcmp.eq.f32.partialorder %v1140, 8.507059e+37
    %v1142 = vand.u32 %v977, 2147483648
    %v1143 = vor.u32 1.1754944e-38, %v1142
    %v1144 = vsel %vm1141, %v1143, %v1139
    %v1145 = vmul.f32 1.0, %v1144
    %v1146 = vrcp.pop %v986
    %v1147 = vmul.f32 %v986, %v1146
    %v1148 = vsub.f32 1.0, %v1147
    %v1149 = vmul.f32 %v1146, %v1148
    %v1150 = vadd.f32 %v1146, %v1149
    %vm1151 = vweird.f32 %v986
    %vm1152 = vweird.f32 %v1146
    %vm1153 = vmor %vm1151, %vm1152
    %v1154 = vsel %vm1153, %v1146, %v1150
    %v1155 = vand.u32 2147483647, %v986
    %vm1156 = vcmp.eq.f32.partialorder %v1155, 8.507059e+37
    %v1157 = vand.u32 %v986, 2147483648
    %v1158 = vor.u32 1.1754944e-38, %v1157
    %v1159 = vsel %vm1156, %v1158, %v1154
    %v1160 = vmul.f32 1.0, %v1159
    %v1161 = vrcp.pop %v995
    %v1162 = vmul.f32 %v995, %v1161
    %v1163 = vsub.f32 1.0, %v1162
    %v1164 = vmul.f32 %v1161, %v1163
    %v1165 = vadd.f32 %v1161, %v1164
    %vm1166 = vweird.f32 %v995
    %vm1167 = vweird.f32 %v1161
    %vm1168 = vmor %vm1166, %vm1167
    %v1169 = vsel %vm1168, %v1161, %v1165
    %v1170 = vand.u32 2147483647, %v995
    %vm1171 = vcmp.eq.f32.partialorder %v1170, 8.507059e+37
    %v1172 = vand.u32 %v995, 2147483648
    %v1173 = vor.u32 1.1754944e-38, %v1172
    %v1174 = vsel %vm1171, %v1173, %v1169
    %v1175 = vmul.f32 1.0, %v1174
    %v1176 = vrcp.pop %v1004
    %v1177 = vmul.f32 %v1004, %v1176
    %v1178 = vsub.f32 1.0, %v1177
    %v1179 = vmul.f32 %v1176, %v1178
    %v1180 = vadd.f32 %v1176, %v1179
    %vm1181 = vweird.f32 %v1004
    %vm1182 = vweird.f32 %v1176
    %vm1183 = vmor %vm1181, %vm1182
    %v1184 = vsel %vm1183, %v1176, %v1180
    %v1185 = vand.u32 2147483647, %v1004
    %vm1186 = vcmp.eq.f32.partialorder %v1185, 8.507059e+37
    %v1187 = vand.u32 %v1004, 2147483648
    %v1188 = vor.u32 1.1754944e-38, %v1187
    %v1189 = vsel %vm1186, %v1188, %v1184
    %v1190 = vmul.f32 1.0, %v1189
    %v1191 = vrcp.pop %v1013
    %v1192 = vmul.f32 %v1013, %v1191
    %v1193 = vsub.f32 1.0, %v1192
    %v1194 = vmul.f32 %v1191, %v1193
    %v1195 = vadd.f32 %v1191, %v1194
    %vm1196 = vweird.f32 %v1013
    %vm1197 = vweird.f32 %v1191
    %vm1198 = vmor %vm1196, %vm1197
    %v1199 = vsel %vm1198, %v1191, %v1195
    %v1200 = vand.u32 2147483647, %v1013
    %vm1201 = vcmp.eq.f32.partialorder %v1200, 8.507059e+37
    %v1202 = vand.u32 %v1013, 2147483648
    %v1203 = vor.u32 1.1754944e-38, %v1202
    %v1204 = vsel %vm1201, %v1203, %v1199
    %v1205 = vmul.f32 1.0, %v1204
    %v1206 = vrcp.pop %v1022
    %v1207 = vmul.f32 %v1022, %v1206
    %v1208 = vsub.f32 1.0, %v1207
    %v1209 = vmul.f32 %v1206, %v1208
    %v1210 = vadd.f32 %v1206, %v1209
    %vm1211 = vweird.f32 %v1022
    %vm1212 = vweird.f32 %v1206
    %vm1213 = vmor %vm1211, %vm1212
    %v1214 = vsel %vm1213, %v1206, %v1210
    %v1215 = vand.u32 2147483647, %v1022
    %vm1216 = vcmp.eq.f32.partialorder %v1215, 8.507059e+37
    %v1217 = vand.u32 %v1022, 2147483648
    %v1218 = vor.u32 1.1754944e-38, %v1217
    %v1219 = vsel %vm1216, %v1218, %v1214
    %v1220 = vmul.f32 1.0, %v1219
    %v1221 = vrcp.pop %v1031
    %v1222 = vmul.f32 %v1031, %v1221
    %v1223 = vsub.f32 1.0, %v1222
    %v1224 = vmul.f32 %v1221, %v1223
    %v1225 = vadd.f32 %v1221, %v1224
    %vm1226 = vweird.f32 %v1031
    %vm1227 = vweird.f32 %v1221
    %vm1228 = vmor %vm1226, %vm1227
    %v1229 = vsel %vm1228, %v1221, %v1225
    %v1230 = vand.u32 2147483647, %v1031
    %vm1231 = vcmp.eq.f32.partialorder %v1230, 8.507059e+37
    %v1232 = vand.u32 %v1031, 2147483648
    %v1233 = vor.u32 1.1754944e-38, %v1232
    %v1234 = vsel %vm1231, %v1233, %v1229
    %v1235 = vmul.f32 1.0, %v1234
    %v1236 = vrcp.pop %v1040
    %v1237 = vmul.f32 %v1040, %v1236
    %v1238 = vsub.f32 1.0, %v1237
    %v1239 = vmul.f32 %v1236, %v1238
    %v1240 = vadd.f32 %v1236, %v1239
    %vm1241 = vweird.f32 %v1040
    %vm1242 = vweird.f32 %v1236
    %vm1243 = vmor %vm1241, %vm1242
    %v1244 = vsel %vm1243, %v1236, %v1240
    %v1245 = vand.u32 2147483647, %v1040
    %vm1246 = vcmp.eq.f32.partialorder %v1245, 8.507059e+37
    %v1247 = vand.u32 %v1040, 2147483648
    %v1248 = vor.u32 1.1754944e-38, %v1247
    %v1249 = vsel %vm1246, %v1248, %v1244
    %v1250 = vmul.f32 1.0, %v1249
    %v1251 = vrcp.pop %v1049
    %v1252 = vmul.f32 %v1049, %v1251
    %v1253 = vsub.f32 1.0, %v1252
    %v1254 = vmul.f32 %v1251, %v1253
    %v1255 = vadd.f32 %v1251, %v1254
    %vm1256 = vweird.f32 %v1049
    %vm1257 = vweird.f32 %v1251
    %vm1258 = vmor %vm1256, %vm1257
    %v1259 = vsel %vm1258, %v1251, %v1255
    %v1260 = vand.u32 2147483647, %v1049
    %vm1261 = vcmp.eq.f32.partialorder %v1260, 8.507059e+37
    %v1262 = vand.u32 %v1049, 2147483648
    %v1263 = vor.u32 1.1754944e-38, %v1262
    %v1264 = vsel %vm1261, %v1263, %v1259
    %v1265 = vmul.f32 1.0, %v1264
    %v1266 = vrcp.pop %v1058
    %v1267 = vmul.f32 %v1058, %v1266
    %v1268 = vsub.f32 1.0, %v1267
    %v1269 = vmul.f32 %v1266, %v1268
    %v1270 = vadd.f32 %v1266, %v1269
    %vm1271 = vweird.f32 %v1058
    %vm1272 = vweird.f32 %v1266
    %vm1273 = vmor %vm1271, %vm1272
    %v1274 = vsel %vm1273, %v1266, %v1270
    %v1275 = vand.u32 2147483647, %v1058
    %vm1276 = vcmp.eq.f32.partialorder %v1275, 8.507059e+37
    %v1277 = vand.u32 %v1058, 2147483648
    %v1278 = vor.u32 1.1754944e-38, %v1277
    %v1279 = vsel %vm1276, %v1278, %v1274
    %v1280 = vmul.f32 1.0, %v1279
    %v1281 = vrcp.pop %v1067
    %v1282 = vmul.f32 %v1067, %v1281
    %v1283 = vsub.f32 1.0, %v1282
    %v1284 = vmul.f32 %v1281, %v1283
    %v1285 = vadd.f32 %v1281, %v1284
    %vm1286 = vweird.f32 %v1067
    %vm1287 = vweird.f32 %v1281
    %vm1288 = vmor %vm1286, %vm1287
    %v1289 = vsel %vm1288, %v1281, %v1285
    %v1290 = vand.u32 2147483647, %v1067
    %vm1291 = vcmp.eq.f32.partialorder %v1290, 8.507059e+37
    %v1292 = vand.u32 %v1067, 2147483648
    %v1293 = vor.u32 1.1754944e-38, %v1292
    %v1294 = vsel %vm1291, %v1293, %v1289
    %v1295 = vmul.f32 1.0, %v1294
    %v1296 = vrcp.pop %v1076
    %v1297 = vmul.f32 %v1076, %v1296
    %v1298 = vsub.f32 1.0, %v1297
    %v1299 = vmul.f32 %v1296, %v1298
    %v1300 = vadd.f32 %v1296, %v1299
    %vm1301 = vweird.f32 %v1076
    %vm1302 = vweird.f32 %v1296
    %vm1303 = vmor %vm1301, %vm1302
    %v1304 = vsel %vm1303, %v1296, %v1300
    %v1305 = vand.u32 2147483647, %v1076
    %vm1306 = vcmp.eq.f32.partialorder %v1305, 8.507059e+37
    %v1307 = vand.u32 %v1076, 2147483648
    %v1308 = vor.u32 1.1754944e-38, %v1307
    %v1309 = vsel %vm1306, %v1308, %v1304
    %v1310 = vmul.f32 1.0, %v1309
    %v1311 = vrcp.pop %v1085
    %v1312 = vmul.f32 %v1085, %v1311
    %v1313 = vsub.f32 1.0, %v1312
    %v1314 = vmul.f32 %v1311, %v1313
    %v1315 = vadd.f32 %v1311, %v1314
    %vm1316 = vweird.f32 %v1085
    %vm1317 = vweird.f32 %v1311
    %vm1318 = vmor %vm1316, %vm1317
    %v1319 = vsel %vm1318, %v1311, %v1315
    %v1320 = vand.u32 2147483647, %v1085
    %vm1321 = vcmp.eq.f32.partialorder %v1320, 8.507059e+37
    %v1322 = vand.u32 %v1085, 2147483648
    %v1323 = vor.u32 1.1754944e-38, %v1322
    %v1324 = vsel %vm1321, %v1323, %v1319
    %v1325 = vmul.f32 1.0, %v1324
    %v1326 = vmul.f32 %v879, %v1100
    %v1327 = vmul.f32 %v881, %v1100
    %v1328 = vmul.f32 %v883, %v1115
    %v1329 = vmul.f32 %v885, %v1115
    %v1330 = vmul.f32 %v887, %v1130
    %v1331 = vmul.f32 %v889, %v1130
    %v1332 = vmul.f32 %v891, %v1145
    %v1333 = vmul.f32 %v893, %v1145
    %v1334 = vmul.f32 %v895, %v1160
    %v1335 = vmul.f32 %v897, %v1160
    %v1336 = vmul.f32 %v899, %v1175
    %v1337 = vmul.f32 %v901, %v1175
    %v1338 = vmul.f32 %v903, %v1190
    %v1339 = vmul.f32 %v905, %v1190
    %v1340 = vmul.f32 %v907, %v1205
    %v1341 = vmul.f32 %v909, %v1205
    %v1342 = vmul.f32 %v911, %v1220
    %v1343 = vmul.f32 %v913, %v1220
    %v1344 = vmul.f32 %v915, %v1235
    %v1345 = vmul.f32 %v917, %v1235
    %v1346 = vmul.f32 %v919, %v1250
    %v1347 = vmul.f32 %v921, %v1250
    %v1348 = vmul.f32 %v923, %v1265
    %v1349 = vmul.f32 %v925, %v1265
    %v1350 = vmul.f32 %v927, %v1280
    %v1351 = vmul.f32 %v929, %v1280
    %v1352 = vmul.f32 %v931, %v1295
    %v1353 = vmul.f32 %v933, %v1295
    %v1354 = vmul.f32 %v935, %v1310
    %v1355 = vmul.f32 %v937, %v1310
    %v1356 = vmul.f32 %v939, %v1325
    %v1357 = vmul.f32 %v941, %v1325
    %v1359 = vsel %vm701, %v1326, 0
    %v1362 = vsel %vm701, %v1327, 0
    %v1365 = vsel %vm701, %v1328, 0
    %v1368 = vsel %vm701, %v1329, 0
    %v1371 = vsel %vm701, %v1330, 0
    %v1374 = vsel %vm701, %v1331, 0
    %v1377 = vsel %vm701, %v1332, 0
    %v1380 = vsel %vm701, %v1333, 0
    %v1383 = vsel %vm701, %v1334, 0
    %v1386 = vsel %vm701, %v1335, 0
    %v1389 = vsel %vm701, %v1336, 0
    %v1392 = vsel %vm701, %v1337, 0
    %v1395 = vsel %vm701, %v1338, 0
    %v1398 = vsel %vm701, %v1339, 0
    %v1401 = vsel %vm701, %v1340, 0
    %v1404 = vsel %vm701, %v1341, 0
    %v1407 = vsel %vm701, %v1342, 0
    %v1410 = vsel %vm701, %v1343, 0
    %v1413 = vsel %vm701, %v1344, 0
    %v1416 = vsel %vm701, %v1345, 0
    %v1419 = vsel %vm701, %v1346, 0
    %v1422 = vsel %vm701, %v1347, 0
    %v1425 = vsel %vm701, %v1348, 0
    %v1428 = vsel %vm701, %v1349, 0
    %v1431 = vsel %vm701, %v1350, 0
    %v1434 = vsel %vm701, %v1351, 0
    %v1437 = vsel %vm701, %v1352, 0
    %v1440 = vsel %vm701, %v1353, 0
    %v1443 = vsel %vm701, %v1354, 0
    %v1446 = vsel %vm701, %v1355, 0
    %v1449 = vsel %vm701, %v1356, 0
    %v1452 = vsel %vm701, %v1357, 0
    %vm1454 = vcmask 1043456
    %v1456 = vsel %vm1454, %v148, 0
    %1458 = vmatpush.msra.mxu0 0.0
    %1459 = vmatpush.msra.mxu0 0.0
    %1460 = vmatpush.msra.mxu0 0.0
    %1461 = vmatpush.msra.mxu0 0.0
    %1462 = vmatpush.msra.mxu0 0.0
    %1463 = vmatpush.msra.mxu0 0.0
    %1464 = vmatpush.msra.mxu0 0.0
    %1465 = vmatpush.msra.mxu0 0.0
    %1466 = vmatpush.msra.mxu0 0.0
    %1467 = vmatpush.msra.mxu0 0.0
    %1468 = vmatpush.msra.mxu0 0.0
    %1469 = vmatpush.msra.mxu0 0.0
    %1470 = vmatpush.msra.mxu0 0.0
    %1471 = vmatpush.msra.mxu0 0.0
    %1472 = vmatpush.msra.mxu0 %v1456
    %1473 = vmatpush.msra.mxu0 %v147
    %1474 = vmatmul.f32.gmra.mxu0 %v1359
    %v1475 = vpop.f32.mrf.mxu0
    %v1476 = vadd.f32 0.0, %v1475
    %1477 = vmatmul.f32.gmra.mxu0 %v1362
    %v1478 = vpop.f32.mrf.mxu0
    %v1479 = vadd.f32 0.0, %v1478
    %1480 = vmatmul.f32.gmra.mxu0 %v1365
    %v1481 = vpop.f32.mrf.mxu0
    %v1482 = vadd.f32 0.0, %v1481
    %1483 = vmatmul.f32.gmra.mxu0 %v1368
    %v1484 = vpop.f32.mrf.mxu0
    %v1485 = vadd.f32 0.0, %v1484
    %1486 = vmatmul.f32.gmra.mxu0 %v1371
    %v1487 = vpop.f32.mrf.mxu0
    %v1488 = vadd.f32 0.0, %v1487
    %1489 = vmatmul.f32.gmra.mxu0 %v1374
    %v1490 = vpop.f32.mrf.mxu0
    %v1491 = vadd.f32 0.0, %v1490
    %1492 = vmatmul.f32.gmra.mxu0 %v1377
    %v1493 = vpop.f32.mrf.mxu0
    %v1494 = vadd.f32 0.0, %v1493
    %1495 = vmatmul.f32.gmra.mxu0 %v1380
    %v1496 = vpop.f32.mrf.mxu0
    %v1497 = vadd.f32 0.0, %v1496
    %1498 = vmatmul.f32.gmra.mxu0 %v1383
    %v1499 = vpop.f32.mrf.mxu0
    %v1500 = vadd.f32 0.0, %v1499
    %1501 = vmatmul.f32.gmra.mxu0 %v1386
    %v1502 = vpop.f32.mrf.mxu0
    %v1503 = vadd.f32 0.0, %v1502
    %1504 = vmatmul.f32.gmra.mxu0 %v1389
    %v1505 = vpop.f32.mrf.mxu0
    %v1506 = vadd.f32 0.0, %v1505
    %1507 = vmatmul.f32.gmra.mxu0 %v1392
    %v1508 = vpop.f32.mrf.mxu0
    %v1509 = vadd.f32 0.0, %v1508
    %1510 = vmatmul.f32.gmra.mxu0 %v1395
    %v1511 = vpop.f32.mrf.mxu0
    %v1512 = vadd.f32 0.0, %v1511
    %1513 = vmatmul.f32.gmra.mxu0 %v1398
    %v1514 = vpop.f32.mrf.mxu0
    %v1515 = vadd.f32 0.0, %v1514
    %1516 = vmatmul.f32.gmra.mxu0 %v1401
    %v1517 = vpop.f32.mrf.mxu0
    %v1518 = vadd.f32 0.0, %v1517
    %1519 = vmatmul.f32.gmra.mxu0 %v1404
    %v1520 = vpop.f32.mrf.mxu0
    %v1521 = vadd.f32 0.0, %v1520
    %1522 = vmatmul.f32.gmra.mxu0 %v1407
    %v1523 = vpop.f32.mrf.mxu0
    %v1524 = vadd.f32 0.0, %v1523
    %1525 = vmatmul.f32.gmra.mxu0 %v1410
    %v1526 = vpop.f32.mrf.mxu0
    %v1527 = vadd.f32 0.0, %v1526
    %1528 = vmatmul.f32.gmra.mxu0 %v1413
    %v1529 = vpop.f32.mrf.mxu0
    %v1530 = vadd.f32 0.0, %v1529
    %1531 = vmatmul.f32.gmra.mxu0 %v1416
    %v1532 = vpop.f32.mrf.mxu0
    %v1533 = vadd.f32 0.0, %v1532
    %1534 = vmatmul.f32.gmra.mxu0 %v1419
    %v1535 = vpop.f32.mrf.mxu0
    %v1536 = vadd.f32 0.0, %v1535
    %1537 = vmatmul.f32.gmra.mxu0 %v1422
    %v1538 = vpop.f32.mrf.mxu0
    %v1539 = vadd.f32 0.0, %v1538
    %1540 = vmatmul.f32.gmra.mxu0 %v1425
    %v1541 = vpop.f32.mrf.mxu0
    %v1542 = vadd.f32 0.0, %v1541
    %1543 = vmatmul.f32.gmra.mxu0 %v1428
    %v1544 = vpop.f32.mrf.mxu0
    %v1545 = vadd.f32 0.0, %v1544
    %1546 = vmatmul.f32.gmra.mxu0 %v1431
    %v1547 = vpop.f32.mrf.mxu0
    %v1548 = vadd.f32 0.0, %v1547
    %1549 = vmatmul.f32.gmra.mxu0 %v1434
    %v1550 = vpop.f32.mrf.mxu0
    %v1551 = vadd.f32 0.0, %v1550
    %1552 = vmatmul.f32.gmra.mxu0 %v1437
    %v1553 = vpop.f32.mrf.mxu0
    %v1554 = vadd.f32 0.0, %v1553
    %1555 = vmatmul.f32.gmra.mxu0 %v1440
    %v1556 = vpop.f32.mrf.mxu0
    %v1557 = vadd.f32 0.0, %v1556
    %1558 = vmatmul.f32.gmra.mxu0 %v1443
    %v1559 = vpop.f32.mrf.mxu0
    %v1560 = vadd.f32 0.0, %v1559
    %1561 = vmatmul.f32.gmra.mxu0 %v1446
    %v1562 = vpop.f32.mrf.mxu0
    %v1563 = vadd.f32 0.0, %v1562
    %1564 = vmatmul.f32.gmra.mxu0 %v1449
    %v1565 = vpop.f32.mrf.mxu0
    %v1566 = vadd.f32 0.0, %v1565
    %1567 = vmatmul.f32.gmra.mxu0 %v1452
    %v1568 = vpop.f32.mrf.mxu0
    %v1569 = vadd.f32 0.0, %v1568
    %1570 = vdwg.mxu0
    %v1571 = vmul.f32 %v1476, %v224
    %v1572 = vmul.f32 %v1479, %v227
    %v1573 = vmul.f32 %v1482, %v224
    %v1574 = vmul.f32 %v1485, %v227
    %v1575 = vmul.f32 %v1488, %v224
    %v1576 = vmul.f32 %v1491, %v227
    %v1577 = vmul.f32 %v1494, %v224
    %v1578 = vmul.f32 %v1497, %v227
    %v1579 = vmul.f32 %v1500, %v224
    %v1580 = vmul.f32 %v1503, %v227
    %v1581 = vmul.f32 %v1506, %v224
    %v1582 = vmul.f32 %v1509, %v227
    %v1583 = vmul.f32 %v1512, %v224
    %v1584 = vmul.f32 %v1515, %v227
    %v1585 = vmul.f32 %v1518, %v224
    %v1586 = vmul.f32 %v1521, %v227
    %v1587 = vmul.f32 %v1524, %v224
    %v1588 = vmul.f32 %v1527, %v227
    %v1589 = vmul.f32 %v1530, %v224
    %v1590 = vmul.f32 %v1533, %v227
    %v1591 = vmul.f32 %v1536, %v224
    %v1592 = vmul.f32 %v1539, %v227
    %v1593 = vmul.f32 %v1542, %v224
    %v1594 = vmul.f32 %v1545, %v227
    %v1595 = vmul.f32 %v1548, %v224
    %v1596 = vmul.f32 %v1551, %v227
    %v1597 = vmul.f32 %v1554, %v224
    %v1598 = vmul.f32 %v1557, %v227
    %v1599 = vmul.f32 %v1560, %v224
    %v1600 = vmul.f32 %v1563, %v227
    %v1601 = vmul.f32 %v1566, %v224
    %v1602 = vmul.f32 %v1569, %v227
    %v1603 = vadd.f32 %v1571, %v1572
    %v1604 = vrot.slane %v1603, 4
    %v1605 = vadd.f32 %v1603, %v1604
    %v1606 = vrot.slane %v1605, 2
    %v1607 = vadd.f32 %v1605, %v1606
    %v1608 = vrot.slane %v1607, 1
    %v1609 = vadd.f32 %v1607, %v1608
    %v1610 = vadd.f32 %v1573, %v1574
    %v1611 = vrot.slane %v1610, 4
    %v1612 = vadd.f32 %v1610, %v1611
    %v1613 = vrot.slane %v1612, 2
    %v1614 = vadd.f32 %v1612, %v1613
    %v1615 = vrot.slane %v1614, 1
    %v1616 = vadd.f32 %v1614, %v1615
    %v1617 = vadd.f32 %v1575, %v1576
    %v1618 = vrot.slane %v1617, 4
    %v1619 = vadd.f32 %v1617, %v1618
    %v1620 = vrot.slane %v1619, 2
    %v1621 = vadd.f32 %v1619, %v1620
    %v1622 = vrot.slane %v1621, 1
    %v1623 = vadd.f32 %v1621, %v1622
    %v1624 = vadd.f32 %v1577, %v1578
    %v1625 = vrot.slane %v1624, 4
    %v1626 = vadd.f32 %v1624, %v1625
    %v1627 = vrot.slane %v1626, 2
    %v1628 = vadd.f32 %v1626, %v1627
    %v1629 = vrot.slane %v1628, 1
    %v1630 = vadd.f32 %v1628, %v1629
    %v1631 = vadd.f32 %v1579, %v1580
    %v1632 = vrot.slane %v1631, 4
    %v1633 = vadd.f32 %v1631, %v1632
    %v1634 = vrot.slane %v1633, 2
    %v1635 = vadd.f32 %v1633, %v1634
    %v1636 = vrot.slane %v1635, 1
    %v1637 = vadd.f32 %v1635, %v1636
    %v1638 = vadd.f32 %v1581, %v1582
    %v1639 = vrot.slane %v1638, 4
    %v1640 = vadd.f32 %v1638, %v1639
    %v1641 = vrot.slane %v1640, 2
    %v1642 = vadd.f32 %v1640, %v1641
    %v1643 = vrot.slane %v1642, 1
    %v1644 = vadd.f32 %v1642, %v1643
    %v1645 = vadd.f32 %v1583, %v1584
    %v1646 = vrot.slane %v1645, 4
    %v1647 = vadd.f32 %v1645, %v1646
    %v1648 = vrot.slane %v1647, 2
    %v1649 = vadd.f32 %v1647, %v1648
    %v1650 = vrot.slane %v1649, 1
    %v1651 = vadd.f32 %v1649, %v1650
    %v1652 = vadd.f32 %v1585, %v1586
    %v1653 = vrot.slane %v1652, 4
    %v1654 = vadd.f32 %v1652, %v1653
    %v1655 = vrot.slane %v1654, 2
    %v1656 = vadd.f32 %v1654, %v1655
    %v1657 = vrot.slane %v1656, 1
    %v1658 = vadd.f32 %v1656, %v1657
    %v1659 = vadd.f32 %v1587, %v1588
    %v1660 = vrot.slane %v1659, 4
    %v1661 = vadd.f32 %v1659, %v1660
    %v1662 = vrot.slane %v1661, 2
    %v1663 = vadd.f32 %v1661, %v1662
    %v1664 = vrot.slane %v1663, 1
    %v1665 = vadd.f32 %v1663, %v1664
    %v1666 = vadd.f32 %v1589, %v1590
    %v1667 = vrot.slane %v1666, 4
    %v1668 = vadd.f32 %v1666, %v1667
    %v1669 = vrot.slane %v1668, 2
    %v1670 = vadd.f32 %v1668, %v1669
    %v1671 = vrot.slane %v1670, 1
    %v1672 = vadd.f32 %v1670, %v1671
    %v1673 = vadd.f32 %v1591, %v1592
    %v1674 = vrot.slane %v1673, 4
    %v1675 = vadd.f32 %v1673, %v1674
    %v1676 = vrot.slane %v1675, 2
    %v1677 = vadd.f32 %v1675, %v1676
    %v1678 = vrot.slane %v1677, 1
    %v1679 = vadd.f32 %v1677, %v1678
    %v1680 = vadd.f32 %v1593, %v1594
    %v1681 = vrot.slane %v1680, 4
    %v1682 = vadd.f32 %v1680, %v1681
    %v1683 = vrot.slane %v1682, 2
    %v1684 = vadd.f32 %v1682, %v1683
    %v1685 = vrot.slane %v1684, 1
    %v1686 = vadd.f32 %v1684, %v1685
    %v1687 = vadd.f32 %v1595, %v1596
    %v1688 = vrot.slane %v1687, 4
    %v1689 = vadd.f32 %v1687, %v1688
    %v1690 = vrot.slane %v1689, 2
    %v1691 = vadd.f32 %v1689, %v1690
    %v1692 = vrot.slane %v1691, 1
    %v1693 = vadd.f32 %v1691, %v1692
    %v1694 = vadd.f32 %v1597, %v1598
    %v1695 = vrot.slane %v1694, 4
    %v1696 = vadd.f32 %v1694, %v1695
    %v1697 = vrot.slane %v1696, 2
    %v1698 = vadd.f32 %v1696, %v1697
    %v1699 = vrot.slane %v1698, 1
    %v1700 = vadd.f32 %v1698, %v1699
    %v1701 = vadd.f32 %v1599, %v1600
    %v1702 = vrot.slane %v1701, 4
    %v1703 = vadd.f32 %v1701, %v1702
    %v1704 = vrot.slane %v1703, 2
    %v1705 = vadd.f32 %v1703, %v1704
    %v1706 = vrot.slane %v1705, 1
    %v1707 = vadd.f32 %v1705, %v1706
    %v1708 = vadd.f32 %v1601, %v1602
    %v1709 = vrot.slane %v1708, 4
    %v1710 = vadd.f32 %v1708, %v1709
    %v1711 = vrot.slane %v1710, 2
    %v1712 = vadd.f32 %v1710, %v1711
    %v1713 = vrot.slane %v1712, 1
    %v1714 = vadd.f32 %v1712, %v1713
    %v1716 = vperm.slane %v200, 0
    %v1718 = vadd.f32 %v1609, %v1716
    %v1719 = vadd.f32 %v1616, %v1716
    %v1720 = vadd.f32 %v1623, %v1716
    %v1721 = vadd.f32 %v1630, %v1716
    %v1722 = vadd.f32 %v1637, %v1716
    %v1723 = vadd.f32 %v1644, %v1716
    %v1724 = vadd.f32 %v1651, %v1716
    %v1725 = vadd.f32 %v1658, %v1716
    %v1726 = vadd.f32 %v1665, %v1716
    %v1727 = vadd.f32 %v1672, %v1716
    %v1728 = vadd.f32 %v1679, %v1716
    %v1729 = vadd.f32 %v1686, %v1716
    %v1730 = vadd.f32 %v1693, %v1716
    %v1731 = vadd.f32 %v1700, %v1716
    %v1732 = vadd.f32 %v1707, %v1716
    %v1733 = vadd.f32 %v1714, %v1716
    %vm1734 = vcmp.gt.f32.partialorder %v1718, 0.0
    %vm1735 = vcmp.gt.f32.partialorder %v1719, 0.0
    %vm1736 = vcmp.gt.f32.partialorder %v1720, 0.0
    %vm1737 = vcmp.gt.f32.partialorder %v1721, 0.0
    %vm1738 = vcmp.gt.f32.partialorder %v1722, 0.0
    %vm1739 = vcmp.gt.f32.partialorder %v1723, 0.0
    %vm1740 = vcmp.gt.f32.partialorder %v1724, 0.0
    %vm1741 = vcmp.gt.f32.partialorder %v1725, 0.0
    %vm1742 = vcmp.gt.f32.partialorder %v1726, 0.0
    %vm1743 = vcmp.gt.f32.partialorder %v1727, 0.0
    %vm1744 = vcmp.gt.f32.partialorder %v1728, 0.0
    %vm1745 = vcmp.gt.f32.partialorder %v1729, 0.0
    %vm1746 = vcmp.gt.f32.partialorder %v1730, 0.0
    %vm1747 = vcmp.gt.f32.partialorder %v1731, 0.0
    %vm1748 = vcmp.gt.f32.partialorder %v1732, 0.0
    %vm1749 = vcmp.gt.f32.partialorder %v1733, 0.0
    %v1750 = vmin.f32 %v1718, 0.0
    %v1751 = vmin.f32 %v1719, 0.0
    %v1752 = vmin.f32 %v1720, 0.0
    %v1753 = vmin.f32 %v1721, 0.0
    %v1754 = vmin.f32 %v1722, 0.0
    %v1755 = vmin.f32 %v1723, 0.0
    %v1756 = vmin.f32 %v1724, 0.0
    %v1757 = vmin.f32 %v1725, 0.0
    %v1758 = vmin.f32 %v1726, 0.0
    %v1759 = vmin.f32 %v1727, 0.0
    %v1760 = vmin.f32 %v1728, 0.0
    %v1761 = vmin.f32 %v1729, 0.0
    %v1762 = vmin.f32 %v1730, 0.0
    %v1763 = vmin.f32 %v1731, 0.0
    %v1764 = vmin.f32 %v1732, 0.0
    %v1765 = vmin.f32 %v1733, 0.0
    %v1766 = vmul.f32 %v1750, 1.442695
    %v1767 = vpow.pop %v1766
    %v1768 = vmul.f32 %v1751, 1.442695
    %v1769 = vpow.pop %v1768
    %v1770 = vmul.f32 %v1752, 1.442695
    %v1771 = vpow.pop %v1770
    %v1772 = vmul.f32 %v1753, 1.442695
    %v1773 = vpow.pop %v1772
    %v1774 = vmul.f32 %v1754, 1.442695
    %v1775 = vpow.pop %v1774
    %v1776 = vmul.f32 %v1755, 1.442695
    %v1777 = vpow.pop %v1776
    %v1778 = vmul.f32 %v1756, 1.442695
    %v1779 = vpow.pop %v1778
    %v1780 = vmul.f32 %v1757, 1.442695
    %v1781 = vpow.pop %v1780
    %v1782 = vmul.f32 %v1758, 1.442695
    %v1783 = vpow.pop %v1782
    %v1784 = vmul.f32 %v1759, 1.442695
    %v1785 = vpow.pop %v1784
    %v1786 = vmul.f32 %v1760, 1.442695
    %v1787 = vpow.pop %v1786
    %v1788 = vmul.f32 %v1761, 1.442695
    %v1789 = vpow.pop %v1788
    %v1790 = vmul.f32 %v1762, 1.442695
    %v1791 = vpow.pop %v1790
    %v1792 = vmul.f32 %v1763, 1.442695
    %v1793 = vpow.pop %v1792
    %v1794 = vmul.f32 %v1764, 1.442695
    %v1795 = vpow.pop %v1794
    %v1796 = vmul.f32 %v1765, 1.442695
    %v1797 = vpow.pop %v1796
    %v1798 = vsub.f32 %v1767, 1.0
    %v1799 = vsub.f32 %v1769, 1.0
    %v1800 = vsub.f32 %v1771, 1.0
    %v1801 = vsub.f32 %v1773, 1.0
    %v1802 = vsub.f32 %v1775, 1.0
    %v1803 = vsub.f32 %v1777, 1.0
    %v1804 = vsub.f32 %v1779, 1.0
    %v1805 = vsub.f32 %v1781, 1.0
    %v1806 = vsub.f32 %v1783, 1.0
    %v1807 = vsub.f32 %v1785, 1.0
    %v1808 = vsub.f32 %v1787, 1.0
    %v1809 = vsub.f32 %v1789, 1.0
    %v1810 = vsub.f32 %v1791, 1.0
    %v1811 = vsub.f32 %v1793, 1.0
    %v1812 = vsub.f32 %v1795, 1.0
    %v1813 = vsub.f32 %v1797, 1.0
    %v1814 = vsel %vm1734, %v1718, %v1798
    %v1815 = vsel %vm1735, %v1719, %v1799
    %v1816 = vsel %vm1736, %v1720, %v1800
    %v1817 = vsel %vm1737, %v1721, %v1801
    %v1818 = vsel %vm1738, %v1722, %v1802
    %v1819 = vsel %vm1739, %v1723, %v1803
    %v1820 = vsel %vm1740, %v1724, %v1804
    %v1821 = vsel %vm1741, %v1725, %v1805
    %v1822 = vsel %vm1742, %v1726, %v1806
    %v1823 = vsel %vm1743, %v1727, %v1807
    %v1824 = vsel %vm1744, %v1728, %v1808
    %v1825 = vsel %vm1745, %v1729, %v1809
    %v1826 = vsel %vm1746, %v1730, %v1810
    %v1827 = vsel %vm1747, %v1731, %v1811
    %v1828 = vsel %vm1748, %v1732, %v1812
    %v1829 = vsel %vm1749, %v1733, %v1813
    %v1830 = vld [vmem:[%s6] sm:$0xff]
    %v1831 = vld [vmem:[%s6 + $0x8] sm:$0xff]
    %v1832 = vld [vmem:[%s6 + $0x10] sm:$0xff]
    %v1833 = vld [vmem:[%s6 + $0x18] sm:$0xff]
    %v1834 = vld [vmem:[%s6 + $0x20] sm:$0xff]
    %v1835 = vld [vmem:[%s6 + $0x28] sm:$0xff]
    %v1836 = vld [vmem:[%s6 + $0x30] sm:$0xff]
    %v1837 = vld [vmem:[%s6 + $0x38] sm:$0xff]
    %v1838 = vld [vmem:[%s6 + $0x40] sm:$0xff]
    %v1839 = vld [vmem:[%s6 + $0x48] sm:$0xff]
    %v1840 = vld [vmem:[%s6 + $0x50] sm:$0xff]
    %v1841 = vld [vmem:[%s6 + $0x58] sm:$0xff]
    %v1842 = vld [vmem:[%s6 + $0x60] sm:$0xff]
    %v1843 = vld [vmem:[%s6 + $0x68] sm:$0xff]
    %v1844 = vld [vmem:[%s6 + $0x70] sm:$0xff]
    %v1845 = vld [vmem:[%s6 + $0x78] sm:$0xff]
    %v1846 = vld [vmem:[%s6 + $0x80] sm:$0xff]
    %v1847 = vld [vmem:[%s6 + $0x88] sm:$0xff]
    %v1848 = vld [vmem:[%s6 + $0x90] sm:$0xff]
    %v1849 = vld [vmem:[%s6 + $0x98] sm:$0xff]
    %v1850 = vld [vmem:[%s6 + $0xa0] sm:$0xff]
    %v1851 = vld [vmem:[%s6 + $0xa8] sm:$0xff]
    %v1852 = vld [vmem:[%s6 + $0xb0] sm:$0xff]
    %v1853 = vld [vmem:[%s6 + $0xb8] sm:$0xff]
    %v1854 = vld [vmem:[%s6 + $0xc0] sm:$0xff]
    %v1855 = vld [vmem:[%s6 + $0xc8] sm:$0xff]
    %v1856 = vld [vmem:[%s6 + $0xd0] sm:$0xff]
    %v1857 = vld [vmem:[%s6 + $0xd8] sm:$0xff]
    %v1858 = vld [vmem:[%s6 + $0xe0] sm:$0xff]
    %v1859 = vld [vmem:[%s6 + $0xe8] sm:$0xff]
    %v1860 = vld [vmem:[%s6 + $0xf0] sm:$0xff]
    %v1861 = vld [vmem:[%s6 + $0xf8] sm:$0xff]
    %v1862 = vld [vmem:[%s7] sm:$0x3]
    %v1863 = vld [vmem:[%s8] sm:$0xff]
    %v1864 = vld [vmem:[%s8 + $0x8] sm:$0xff]
    %v1865 = vld [vmem:[%s8 + $0x10] sm:$0xff]
    %v1866 = vld [vmem:[%s8 + $0x18] sm:$0xff]
    %v1867 = vld [vmem:[%s8 + $0x20] sm:$0xff]
    %v1868 = vld [vmem:[%s8 + $0x28] sm:$0xff]
    %v1869 = vld [vmem:[%s8 + $0x30] sm:$0xff]
    %v1870 = vld [vmem:[%s8 + $0x38] sm:$0xff]
    %v1871 = vld [vmem:[%s8 + $0x40] sm:$0xff]
    %v1872 = vld [vmem:[%s8 + $0x48] sm:$0xff]
    %v1873 = vld [vmem:[%s8 + $0x50] sm:$0xff]
    %v1874 = vld [vmem:[%s8 + $0x58] sm:$0xff]
    %v1875 = vld [vmem:[%s8 + $0x60] sm:$0xff]
    %v1876 = vld [vmem:[%s8 + $0x68] sm:$0xff]
    %v1877 = vld [vmem:[%s8 + $0x70] sm:$0xff]
    %v1878 = vld [vmem:[%s8 + $0x78] sm:$0xff]
    %v1879 = vld [vmem:[%s9] sm:$0x1]
    %v1881 = vperm.slane %v1862, 0
    %v1882 = vperm.slane %v1862, 1
    %v1901 = vrot.slane %v1815, 7
    %vm1902 = vcmask 1041409
    %v1903 = vsel %vm1902, %v1901, %v1814
    %v1904 = vrot.slane %v1816, 6
    %vm1905 = vcmask 1042434
    %v1906 = vsel %vm1905, %v1904, %v1903
    %v1907 = vrot.slane %v1817, 5
    %vm1908 = vcmask 1043459
    %v1909 = vsel %vm1908, %v1907, %v1906
    %v1910 = vrot.slane %v1818, 4
    %vm1911 = vcmask 1044484
    %v1912 = vsel %vm1911, %v1910, %v1909
    %v1913 = vrot.slane %v1819, 3
    %vm1914 = vcmask 1045509
    %v1915 = vsel %vm1914, %v1913, %v1912
    %v1916 = vrot.slane %v1820, 2
    %vm1917 = vcmask 1046534
    %v1918 = vsel %vm1917, %v1916, %v1915
    %v1919 = vrot.slane %v1821, 1
    %vm1920 = vcmask 1047559
    %v1921 = vsel %vm1920, %v1919, %v1918
    %v1922 = vrot.slane %v1823, 7
    %v1923 = vsel %vm1902, %v1922, %v1822
    %v1924 = vrot.slane %v1824, 6
    %v1925 = vsel %vm1905, %v1924, %v1923
    %v1926 = vrot.slane %v1825, 5
    %v1927 = vsel %vm1908, %v1926, %v1925
    %v1928 = vrot.slane %v1826, 4
    %v1929 = vsel %vm1911, %v1928, %v1927
    %v1930 = vrot.slane %v1827, 3
    %v1931 = vsel %vm1914, %v1930, %v1929
    %v1932 = vrot.slane %v1828, 2
    %v1933 = vsel %vm1917, %v1932, %v1931
    %v1934 = vrot.slane %v1829, 1
    %v1935 = vsel %vm1920, %v1934, %v1933
    %1938 = vmatpush.msra.mxu0 %v1860
    %1939 = vmatpush.msra.mxu0 %v1858
    %1940 = vmatpush.msra.mxu0 %v1856
    %1941 = vmatpush.msra.mxu0 %v1854
    %1942 = vmatpush.msra.mxu0 %v1852
    %1943 = vmatpush.msra.mxu0 %v1850
    %1944 = vmatpush.msra.mxu0 %v1848
    %1945 = vmatpush.msra.mxu0 %v1846
    %1946 = vmatpush.msra.mxu0 %v1844
    %1947 = vmatpush.msra.mxu0 %v1842
    %1948 = vmatpush.msra.mxu0 %v1840
    %1949 = vmatpush.msra.mxu0 %v1838
    %1950 = vmatpush.msra.mxu0 %v1836
    %1951 = vmatpush.msra.mxu0 %v1834
    %1952 = vmatpush.msra.mxu0 %v1832
    %1953 = vmatpush.msra.mxu0 %v1830
    %1954 = vmatmul.f32.gmra.mxu0 %v1921
    %v1955 = vpop.f32.mrf.mxu0
    %v1956 = vadd.f32 %v1881, %v1955
    %1957 = vmatmul.f32.gmra.mxu0 %v1935
    %v1958 = vpop.f32.mrf.mxu0
    %v1959 = vadd.f32 %v1881, %v1958
    %1960 = vdwg.mxu0
    %1961 = vmatpush.msra.mxu0 %v1861
    %1962 = vmatpush.msra.mxu0 %v1859
    %1963 = vmatpush.msra.mxu0 %v1857
    %1964 = vmatpush.msra.mxu0 %v1855
    %1965 = vmatpush.msra.mxu0 %v1853
    %1966 = vmatpush.msra.mxu0 %v1851
    %1967 = vmatpush.msra.mxu0 %v1849
    %1968 = vmatpush.msra.mxu0 %v1847
    %1969 = vmatpush.msra.mxu0 %v1845
    %1970 = vmatpush.msra.mxu0 %v1843
    %1971 = vmatpush.msra.mxu0 %v1841
    %1972 = vmatpush.msra.mxu0 %v1839
    %1973 = vmatpush.msra.mxu0 %v1837
    %1974 = vmatpush.msra.mxu0 %v1835
    %1975 = vmatpush.msra.mxu0 %v1833
    %1976 = vmatpush.msra.mxu0 %v1831
    %1977 = vmatmul.f32.gmra.mxu0 %v1921
    %v1978 = vpop.f32.mrf.mxu0
    %v1979 = vadd.f32 %v1882, %v1978
    %1980 = vmatmul.f32.gmra.mxu0 %v1935
    %v1981 = vpop.f32.mrf.mxu0
    %v1982 = vadd.f32 %v1882, %v1981
    %1983 = vdwg.mxu0
    %v1986 = vrot.slane %v1979, 1
    %v1987 = vrot.slane %v1979, 2
    %v1988 = vrot.slane %v1979, 3
    %v1989 = vrot.slane %v1979, 4
    %v1990 = vrot.slane %v1979, 5
    %v1991 = vrot.slane %v1979, 6
    %v1992 = vrot.slane %v1979, 7
    %v1993 = vrot.slane %v1982, 1
    %v1994 = vrot.slane %v1982, 2
    %v1995 = vrot.slane %v1982, 3
    %v1996 = vrot.slane %v1982, 4
    %v1997 = vrot.slane %v1982, 5
    %v1998 = vrot.slane %v1982, 6
    %v1999 = vrot.slane %v1982, 7
    %v2000 = vperm.slane %v1979, 0
    %v2001 = vperm.slane %v1986, 0
    %v2002 = vperm.slane %v1987, 0
    %v2003 = vperm.slane %v1988, 0
    %v2004 = vperm.slane %v1989, 0
    %v2005 = vperm.slane %v1990, 0
    %v2006 = vperm.slane %v1991, 0
    %v2007 = vperm.slane %v1992, 0
    %v2008 = vperm.slane %v1982, 0
    %v2009 = vperm.slane %v1993, 0
    %v2010 = vperm.slane %v1994, 0
    %v2011 = vperm.slane %v1995, 0
    %v2012 = vperm.slane %v1996, 0
    %v2013 = vperm.slane %v1997, 0
    %v2014 = vperm.slane %v1998, 0
    %v2015 = vperm.slane %v1999, 0
    %v2032 = vadd.f32 %v2000, %v1956
    %v2033 = vadd.f32 %v2000, %v1959
    %v2034 = vadd.f32 %v2001, %v1956
    %v2035 = vadd.f32 %v2001, %v1959
    %v2036 = vadd.f32 %v2002, %v1956
    %v2037 = vadd.f32 %v2002, %v1959
    %v2038 = vadd.f32 %v2003, %v1956
    %v2039 = vadd.f32 %v2003, %v1959
    %v2040 = vadd.f32 %v2004, %v1956
    %v2041 = vadd.f32 %v2004, %v1959
    %v2042 = vadd.f32 %v2005, %v1956
    %v2043 = vadd.f32 %v2005, %v1959
    %v2044 = vadd.f32 %v2006, %v1956
    %v2045 = vadd.f32 %v2006, %v1959
    %v2046 = vadd.f32 %v2007, %v1956
    %v2047 = vadd.f32 %v2007, %v1959
    %v2048 = vadd.f32 %v2008, %v1956
    %v2049 = vadd.f32 %v2008, %v1959
    %v2050 = vadd.f32 %v2009, %v1956
    %v2051 = vadd.f32 %v2009, %v1959
    %v2052 = vadd.f32 %v2010, %v1956
    %v2053 = vadd.f32 %v2010, %v1959
    %v2054 = vadd.f32 %v2011, %v1956
    %v2055 = vadd.f32 %v2011, %v1959
    %v2056 = vadd.f32 %v2012, %v1956
    %v2057 = vadd.f32 %v2012, %v1959
    %v2058 = vadd.f32 %v2013, %v1956
    %v2059 = vadd.f32 %v2013, %v1959
    %v2060 = vadd.f32 %v2014, %v1956
    %v2061 = vadd.f32 %v2014, %v1959
    %v2062 = vadd.f32 %v2015, %v1956
    %v2063 = vadd.f32 %v2015, %v1959
    %vm2064 = vcmp.gt.f32.partialorder %v2032, 0.0
    %vm2065 = vcmp.gt.f32.partialorder %v2033, 0.0
    %vm2066 = vcmp.gt.f32.partialorder %v2034, 0.0
    %vm2067 = vcmp.gt.f32.partialorder %v2035, 0.0
    %vm2068 = vcmp.gt.f32.partialorder %v2036, 0.0
    %vm2069 = vcmp.gt.f32.partialorder %v2037, 0.0
    %vm2070 = vcmp.gt.f32.partialorder %v2038, 0.0
    %vm2071 = vcmp.gt.f32.partialorder %v2039, 0.0
    %vm2072 = vcmp.gt.f32.partialorder %v2040, 0.0
    %vm2073 = vcmp.gt.f32.partialorder %v2041, 0.0
    %vm2074 = vcmp.gt.f32.partialorder %v2042, 0.0
    %vm2075 = vcmp.gt.f32.partialorder %v2043, 0.0
    %vm2076 = vcmp.gt.f32.partialorder %v2044, 0.0
    %vm2077 = vcmp.gt.f32.partialorder %v2045, 0.0
    %vm2078 = vcmp.gt.f32.partialorder %v2046, 0.0
    %vm2079 = vcmp.gt.f32.partialorder %v2047, 0.0
    %vm2080 = vcmp.gt.f32.partialorder %v2048, 0.0
    %vm2081 = vcmp.gt.f32.partialorder %v2049, 0.0
    %vm2082 = vcmp.gt.f32.partialorder %v2050, 0.0
    %vm2083 = vcmp.gt.f32.partialorder %v2051, 0.0
    %vm2084 = vcmp.gt.f32.partialorder %v2052, 0.0
    %vm2085 = vcmp.gt.f32.partialorder %v2053, 0.0
    %vm2086 = vcmp.gt.f32.partialorder %v2054, 0.0
    %vm2087 = vcmp.gt.f32.partialorder %v2055, 0.0
    %vm2088 = vcmp.gt.f32.partialorder %v2056, 0.0
    %vm2089 = vcmp.gt.f32.partialorder %v2057, 0.0
    %vm2090 = vcmp.gt.f32.partialorder %v2058, 0.0
    %vm2091 = vcmp.gt.f32.partialorder %v2059, 0.0
    %vm2092 = vcmp.gt.f32.partialorder %v2060, 0.0
    %vm2093 = vcmp.gt.f32.partialorder %v2061, 0.0
    %vm2094 = vcmp.gt.f32.partialorder %v2062, 0.0
    %vm2095 = vcmp.gt.f32.partialorder %v2063, 0.0
    %v2096 = vmul.f32 %v2032, 0.2
    %v2097 = vmul.f32 %v2033, 0.2
    %v2098 = vmul.f32 %v2034, 0.2
    %v2099 = vmul.f32 %v2035, 0.2
    %v2100 = vmul.f32 %v2036, 0.2
    %v2101 = vmul.f32 %v2037, 0.2
    %v2102 = vmul.f32 %v2038, 0.2
    %v2103 = vmul.f32 %v2039, 0.2
    %v2104 = vmul.f32 %v2040, 0.2
    %v2105 = vmul.f32 %v2041, 0.2
    %v2106 = vmul.f32 %v2042, 0.2
    %v2107 = vmul.f32 %v2043, 0.2
    %v2108 = vmul.f32 %v2044, 0.2
    %v2109 = vmul.f32 %v2045, 0.2
    %v2110 = vmul.f32 %v2046, 0.2
    %v2111 = vmul.f32 %v2047, 0.2
    %v2112 = vmul.f32 %v2048, 0.2
    %v2113 = vmul.f32 %v2049, 0.2
    %v2114 = vmul.f32 %v2050, 0.2
    %v2115 = vmul.f32 %v2051, 0.2
    %v2116 = vmul.f32 %v2052, 0.2
    %v2117 = vmul.f32 %v2053, 0.2
    %v2118 = vmul.f32 %v2054, 0.2
    %v2119 = vmul.f32 %v2055, 0.2
    %v2120 = vmul.f32 %v2056, 0.2
    %v2121 = vmul.f32 %v2057, 0.2
    %v2122 = vmul.f32 %v2058, 0.2
    %v2123 = vmul.f32 %v2059, 0.2
    %v2124 = vmul.f32 %v2060, 0.2
    %v2125 = vmul.f32 %v2061, 0.2
    %v2126 = vmul.f32 %v2062, 0.2
    %v2127 = vmul.f32 %v2063, 0.2
    %v2128 = vsel %vm2064, %v2032, %v2096
    %v2129 = vsel %vm2065, %v2033, %v2097
    %v2130 = vsel %vm2066, %v2034, %v2098
    %v2131 = vsel %vm2067, %v2035, %v2099
    %v2132 = vsel %vm2068, %v2036, %v2100
    %v2133 = vsel %vm2069, %v2037, %v2101
    %v2134 = vsel %vm2070, %v2038, %v2102
    %v2135 = vsel %vm2071, %v2039, %v2103
    %v2136 = vsel %vm2072, %v2040, %v2104
    %v2137 = vsel %vm2073, %v2041, %v2105
    %v2138 = vsel %vm2074, %v2042, %v2106
    %v2139 = vsel %vm2075, %v2043, %v2107
    %v2140 = vsel %vm2076, %v2044, %v2108
    %v2141 = vsel %vm2077, %v2045, %v2109
    %v2142 = vsel %vm2078, %v2046, %v2110
    %v2143 = vsel %vm2079, %v2047, %v2111
    %v2144 = vsel %vm2080, %v2048, %v2112
    %v2145 = vsel %vm2081, %v2049, %v2113
    %v2146 = vsel %vm2082, %v2050, %v2114
    %v2147 = vsel %vm2083, %v2051, %v2115
    %v2148 = vsel %vm2084, %v2052, %v2116
    %v2149 = vsel %vm2085, %v2053, %v2117
    %v2150 = vsel %vm2086, %v2054, %v2118
    %v2151 = vsel %vm2087, %v2055, %v2119
    %v2152 = vsel %vm2088, %v2056, %v2120
    %v2153 = vsel %vm2089, %v2057, %v2121
    %v2154 = vsel %vm2090, %v2058, %v2122
    %v2155 = vsel %vm2091, %v2059, %v2123
    %v2156 = vsel %vm2092, %v2060, %v2124
    %v2157 = vsel %vm2093, %v2061, %v2125
    %v2158 = vsel %vm2094, %v2062, %v2126
    %v2159 = vsel %vm2095, %v2063, %v2127
    %2160 = vmatpush.msra.mxu0 %v1878
    %2161 = vmatpush.msra.mxu0 %v1877
    %2162 = vmatpush.msra.mxu0 %v1876
    %2163 = vmatpush.msra.mxu0 %v1875
    %2164 = vmatpush.msra.mxu0 %v1874
    %2165 = vmatpush.msra.mxu0 %v1873
    %2166 = vmatpush.msra.mxu0 %v1872
    %2167 = vmatpush.msra.mxu0 %v1871
    %2168 = vmatpush.msra.mxu0 %v1870
    %2169 = vmatpush.msra.mxu0 %v1869
    %2170 = vmatpush.msra.mxu0 %v1868
    %2171 = vmatpush.msra.mxu0 %v1867
    %2172 = vmatpush.msra.mxu0 %v1866
    %2173 = vmatpush.msra.mxu0 %v1865
    %2174 = vmatpush.msra.mxu0 %v1864
    %2175 = vmatpush.msra.mxu0 %v1863
    %2176 = vmatmul.f32.gmra.mxu0 %v2128
    %v2177 = vpop.f32.mrf.mxu0
    %v2178 = vadd.f32 %v431, %v2177
    %2179 = vmatmul.f32.gmra.mxu0 %v2129
    %v2180 = vpop.f32.mrf.mxu0
    %v2181 = vadd.f32 %v436, %v2180
    %2182 = vmatmul.f32.gmra.mxu0 %v2130
    %v2183 = vpop.f32.mrf.mxu0
    %v2184 = vadd.f32 %v441, %v2183
    %2185 = vmatmul.f32.gmra.mxu0 %v2131
    %v2186 = vpop.f32.mrf.mxu0
    %v2187 = vadd.f32 %v446, %v2186
    %2188 = vmatmul.f32.gmra.mxu0 %v2132
    %v2189 = vpop.f32.mrf.mxu0
    %v2190 = vadd.f32 %v451, %v2189
    %2191 = vmatmul.f32.gmra.mxu0 %v2133
    %v2192 = vpop.f32.mrf.mxu0
    %v2193 = vadd.f32 %v456, %v2192
    %2194 = vmatmul.f32.gmra.mxu0 %v2134
    %v2195 = vpop.f32.mrf.mxu0
    %v2196 = vadd.f32 %v461, %v2195
    %2197 = vmatmul.f32.gmra.mxu0 %v2135
    %v2198 = vpop.f32.mrf.mxu0
    %v2199 = vadd.f32 %v466, %v2198
    %2200 = vmatmul.f32.gmra.mxu0 %v2136
    %v2201 = vpop.f32.mrf.mxu0
    %v2202 = vadd.f32 %v471, %v2201
    %2203 = vmatmul.f32.gmra.mxu0 %v2137
    %v2204 = vpop.f32.mrf.mxu0
    %v2205 = vadd.f32 %v476, %v2204
    %2206 = vmatmul.f32.gmra.mxu0 %v2138
    %v2207 = vpop.f32.mrf.mxu0
    %v2208 = vadd.f32 %v481, %v2207
    %2209 = vmatmul.f32.gmra.mxu0 %v2139
    %v2210 = vpop.f32.mrf.mxu0
    %v2211 = vadd.f32 %v486, %v2210
    %2212 = vmatmul.f32.gmra.mxu0 %v2140
    %v2213 = vpop.f32.mrf.mxu0
    %v2214 = vadd.f32 %v491, %v2213
    %2215 = vmatmul.f32.gmra.mxu0 %v2141
    %v2216 = vpop.f32.mrf.mxu0
    %v2217 = vadd.f32 %v496, %v2216
    %2218 = vmatmul.f32.gmra.mxu0 %v2142
    %v2219 = vpop.f32.mrf.mxu0
    %v2220 = vadd.f32 %v501, %v2219
    %2221 = vmatmul.f32.gmra.mxu0 %v2143
    %v2222 = vpop.f32.mrf.mxu0
    %v2223 = vadd.f32 %v506, %v2222
    %2224 = vmatmul.f32.gmra.mxu0 %v2144
    %v2225 = vpop.f32.mrf.mxu0
    %v2226 = vadd.f32 %v511, %v2225
    %2227 = vmatmul.f32.gmra.mxu0 %v2145
    %v2228 = vpop.f32.mrf.mxu0
    %v2229 = vadd.f32 %v516, %v2228
    %2230 = vmatmul.f32.gmra.mxu0 %v2146
    %v2231 = vpop.f32.mrf.mxu0
    %v2232 = vadd.f32 %v521, %v2231
    %2233 = vmatmul.f32.gmra.mxu0 %v2147
    %v2234 = vpop.f32.mrf.mxu0
    %v2235 = vadd.f32 %v526, %v2234
    %2236 = vmatmul.f32.gmra.mxu0 %v2148
    %v2237 = vpop.f32.mrf.mxu0
    %v2238 = vadd.f32 %v531, %v2237
    %2239 = vmatmul.f32.gmra.mxu0 %v2149
    %v2240 = vpop.f32.mrf.mxu0
    %v2241 = vadd.f32 %v536, %v2240
    %2242 = vmatmul.f32.gmra.mxu0 %v2150
    %v2243 = vpop.f32.mrf.mxu0
    %v2244 = vadd.f32 %v541, %v2243
    %2245 = vmatmul.f32.gmra.mxu0 %v2151
    %v2246 = vpop.f32.mrf.mxu0
    %v2247 = vadd.f32 %v546, %v2246
    %2248 = vmatmul.f32.gmra.mxu0 %v2152
    %v2249 = vpop.f32.mrf.mxu0
    %v2250 = vadd.f32 %v551, %v2249
    %2251 = vmatmul.f32.gmra.mxu0 %v2153
    %v2252 = vpop.f32.mrf.mxu0
    %v2253 = vadd.f32 %v556, %v2252
    %2254 = vmatmul.f32.gmra.mxu0 %v2154
    %v2255 = vpop.f32.mrf.mxu0
    %v2256 = vadd.f32 %v561, %v2255
    %2257 = vmatmul.f32.gmra.mxu0 %v2155
    %v2258 = vpop.f32.mrf.mxu0
    %v2259 = vadd.f32 %v566, %v2258
    %2260 = vmatmul.f32.gmra.mxu0 %v2156
    %v2261 = vpop.f32.mrf.mxu0
    %v2262 = vadd.f32 %v571, %v2261
    %2263 = vmatmul.f32.gmra.mxu0 %v2157
    %v2264 = vpop.f32.mrf.mxu0
    %v2265 = vadd.f32 %v576, %v2264
    %2266 = vmatmul.f32.gmra.mxu0 %v2158
    %v2267 = vpop.f32.mrf.mxu0
    %v2268 = vadd.f32 %v581, %v2267
    %2269 = vmatmul.f32.gmra.mxu0 %v2159
    %v2270 = vpop.f32.mrf.mxu0
    %v2271 = vadd.f32 %v586, %v2270
    %2272 = vdwg.mxu0
    %v2273 = vsel %vm701, %v2178, -inf
    %v2274 = vsel %vm701, %v2181, -inf
    %v2275 = vmax.f32 %v2273, %v2274
    %v2276 = vrot.slane %v2275, 4
    %v2277 = vmax.f32 %v2275, %v2276
    %v2278 = vrot.slane %v2277, 2
    %v2279 = vmax.f32 %v2277, %v2278
    %v2280 = vrot.slane %v2279, 1
    %v2281 = vmax.f32 %v2279, %v2280
    %v2282 = vsel %vm701, %v2184, -inf
    %v2283 = vsel %vm701, %v2187, -inf
    %v2284 = vmax.f32 %v2282, %v2283
    %v2285 = vrot.slane %v2284, 4
    %v2286 = vmax.f32 %v2284, %v2285
    %v2287 = vrot.slane %v2286, 2
    %v2288 = vmax.f32 %v2286, %v2287
    %v2289 = vrot.slane %v2288, 1
    %v2290 = vmax.f32 %v2288, %v2289
    %v2291 = vsel %vm701, %v2190, -inf
    %v2292 = vsel %vm701, %v2193, -inf
    %v2293 = vmax.f32 %v2291, %v2292
    %v2294 = vrot.slane %v2293, 4
    %v2295 = vmax.f32 %v2293, %v2294
    %v2296 = vrot.slane %v2295, 2
    %v2297 = vmax.f32 %v2295, %v2296
    %v2298 = vrot.slane %v2297, 1
    %v2299 = vmax.f32 %v2297, %v2298
    %v2300 = vsel %vm701, %v2196, -inf
    %v2301 = vsel %vm701, %v2199, -inf
    %v2302 = vmax.f32 %v2300, %v2301
    %v2303 = vrot.slane %v2302, 4
    %v2304 = vmax.f32 %v2302, %v2303
    %v2305 = vrot.slane %v2304, 2
    %v2306 = vmax.f32 %v2304, %v2305
    %v2307 = vrot.slane %v2306, 1
    %v2308 = vmax.f32 %v2306, %v2307
    %v2309 = vsel %vm701, %v2202, -inf
    %v2310 = vsel %vm701, %v2205, -inf
    %v2311 = vmax.f32 %v2309, %v2310
    %v2312 = vrot.slane %v2311, 4
    %v2313 = vmax.f32 %v2311, %v2312
    %v2314 = vrot.slane %v2313, 2
    %v2315 = vmax.f32 %v2313, %v2314
    %v2316 = vrot.slane %v2315, 1
    %v2317 = vmax.f32 %v2315, %v2316
    %v2318 = vsel %vm701, %v2208, -inf
    %v2319 = vsel %vm701, %v2211, -inf
    %v2320 = vmax.f32 %v2318, %v2319
    %v2321 = vrot.slane %v2320, 4
    %v2322 = vmax.f32 %v2320, %v2321
    %v2323 = vrot.slane %v2322, 2
    %v2324 = vmax.f32 %v2322, %v2323
    %v2325 = vrot.slane %v2324, 1
    %v2326 = vmax.f32 %v2324, %v2325
    %v2327 = vsel %vm701, %v2214, -inf
    %v2328 = vsel %vm701, %v2217, -inf
    %v2329 = vmax.f32 %v2327, %v2328
    %v2330 = vrot.slane %v2329, 4
    %v2331 = vmax.f32 %v2329, %v2330
    %v2332 = vrot.slane %v2331, 2
    %v2333 = vmax.f32 %v2331, %v2332
    %v2334 = vrot.slane %v2333, 1
    %v2335 = vmax.f32 %v2333, %v2334
    %v2336 = vsel %vm701, %v2220, -inf
    %v2337 = vsel %vm701, %v2223, -inf
    %v2338 = vmax.f32 %v2336, %v2337
    %v2339 = vrot.slane %v2338, 4
    %v2340 = vmax.f32 %v2338, %v2339
    %v2341 = vrot.slane %v2340, 2
    %v2342 = vmax.f32 %v2340, %v2341
    %v2343 = vrot.slane %v2342, 1
    %v2344 = vmax.f32 %v2342, %v2343
    %v2345 = vsel %vm701, %v2226, -inf
    %v2346 = vsel %vm701, %v2229, -inf
    %v2347 = vmax.f32 %v2345, %v2346
    %v2348 = vrot.slane %v2347, 4
    %v2349 = vmax.f32 %v2347, %v2348
    %v2350 = vrot.slane %v2349, 2
    %v2351 = vmax.f32 %v2349, %v2350
    %v2352 = vrot.slane %v2351, 1
    %v2353 = vmax.f32 %v2351, %v2352
    %v2354 = vsel %vm701, %v2232, -inf
    %v2355 = vsel %vm701, %v2235, -inf
    %v2356 = vmax.f32 %v2354, %v2355
    %v2357 = vrot.slane %v2356, 4
    %v2358 = vmax.f32 %v2356, %v2357
    %v2359 = vrot.slane %v2358, 2
    %v2360 = vmax.f32 %v2358, %v2359
    %v2361 = vrot.slane %v2360, 1
    %v2362 = vmax.f32 %v2360, %v2361
    %v2363 = vsel %vm701, %v2238, -inf
    %v2364 = vsel %vm701, %v2241, -inf
    %v2365 = vmax.f32 %v2363, %v2364
    %v2366 = vrot.slane %v2365, 4
    %v2367 = vmax.f32 %v2365, %v2366
    %v2368 = vrot.slane %v2367, 2
    %v2369 = vmax.f32 %v2367, %v2368
    %v2370 = vrot.slane %v2369, 1
    %v2371 = vmax.f32 %v2369, %v2370
    %v2372 = vsel %vm701, %v2244, -inf
    %v2373 = vsel %vm701, %v2247, -inf
    %v2374 = vmax.f32 %v2372, %v2373
    %v2375 = vrot.slane %v2374, 4
    %v2376 = vmax.f32 %v2374, %v2375
    %v2377 = vrot.slane %v2376, 2
    %v2378 = vmax.f32 %v2376, %v2377
    %v2379 = vrot.slane %v2378, 1
    %v2380 = vmax.f32 %v2378, %v2379
    %v2381 = vsel %vm701, %v2250, -inf
    %v2382 = vsel %vm701, %v2253, -inf
    %v2383 = vmax.f32 %v2381, %v2382
    %v2384 = vrot.slane %v2383, 4
    %v2385 = vmax.f32 %v2383, %v2384
    %v2386 = vrot.slane %v2385, 2
    %v2387 = vmax.f32 %v2385, %v2386
    %v2388 = vrot.slane %v2387, 1
    %v2389 = vmax.f32 %v2387, %v2388
    %v2390 = vsel %vm701, %v2256, -inf
    %v2391 = vsel %vm701, %v2259, -inf
    %v2392 = vmax.f32 %v2390, %v2391
    %v2393 = vrot.slane %v2392, 4
    %v2394 = vmax.f32 %v2392, %v2393
    %v2395 = vrot.slane %v2394, 2
    %v2396 = vmax.f32 %v2394, %v2395
    %v2397 = vrot.slane %v2396, 1
    %v2398 = vmax.f32 %v2396, %v2397
    %v2399 = vsel %vm701, %v2262, -inf
    %v2400 = vsel %vm701, %v2265, -inf
    %v2401 = vmax.f32 %v2399, %v2400
    %v2402 = vrot.slane %v2401, 4
    %v2403 = vmax.f32 %v2401, %v2402
    %v2404 = vrot.slane %v2403, 2
    %v2405 = vmax.f32 %v2403, %v2404
    %v2406 = vrot.slane %v2405, 1
    %v2407 = vmax.f32 %v2405, %v2406
    %v2408 = vsel %vm701, %v2268, -inf
    %v2409 = vsel %vm701, %v2271, -inf
    %v2410 = vmax.f32 %v2408, %v2409
    %v2411 = vrot.slane %v2410, 4
    %v2412 = vmax.f32 %v2410, %v2411
    %v2413 = vrot.slane %v2412, 2
    %v2414 = vmax.f32 %v2412, %v2413
    %v2415 = vrot.slane %v2414, 1
    %v2416 = vmax.f32 %v2414, %v2415
    %v2417 = vsub.f32 %v2178, %v2281
    %v2418 = vsub.f32 %v2181, %v2281
    %v2419 = vsub.f32 %v2184, %v2290
    %v2420 = vsub.f32 %v2187, %v2290
    %v2421 = vsub.f32 %v2190, %v2299
    %v2422 = vsub.f32 %v2193, %v2299
    %v2423 = vsub.f32 %v2196, %v2308
    %v2424 = vsub.f32 %v2199, %v2308
    %v2425 = vsub.f32 %v2202, %v2317
    %v2426 = vsub.f32 %v2205, %v2317
    %v2427 = vsub.f32 %v2208, %v2326
    %v2428 = vsub.f32 %v2211, %v2326
    %v2429 = vsub.f32 %v2214, %v2335
    %v2430 = vsub.f32 %v2217, %v2335
    %v2431 = vsub.f32 %v2220, %v2344
    %v2432 = vsub.f32 %v2223, %v2344
    %v2433 = vsub.f32 %v2226, %v2353
    %v2434 = vsub.f32 %v2229, %v2353
    %v2435 = vsub.f32 %v2232, %v2362
    %v2436 = vsub.f32 %v2235, %v2362
    %v2437 = vsub.f32 %v2238, %v2371
    %v2438 = vsub.f32 %v2241, %v2371
    %v2439 = vsub.f32 %v2244, %v2380
    %v2440 = vsub.f32 %v2247, %v2380
    %v2441 = vsub.f32 %v2250, %v2389
    %v2442 = vsub.f32 %v2253, %v2389
    %v2443 = vsub.f32 %v2256, %v2398
    %v2444 = vsub.f32 %v2259, %v2398
    %v2445 = vsub.f32 %v2262, %v2407
    %v2446 = vsub.f32 %v2265, %v2407
    %v2447 = vsub.f32 %v2268, %v2416
    %v2448 = vsub.f32 %v2271, %v2416
    %v2449 = vmul.f32 %v2417, 1.442695
    %v2450 = vpow.pop %v2449
    %v2451 = vmul.f32 %v2418, 1.442695
    %v2452 = vpow.pop %v2451
    %v2453 = vmul.f32 %v2419, 1.442695
    %v2454 = vpow.pop %v2453
    %v2455 = vmul.f32 %v2420, 1.442695
    %v2456 = vpow.pop %v2455
    %v2457 = vmul.f32 %v2421, 1.442695
    %v2458 = vpow.pop %v2457
    %v2459 = vmul.f32 %v2422, 1.442695
    %v2460 = vpow.pop %v2459
    %v2461 = vmul.f32 %v2423, 1.442695
    %v2462 = vpow.pop %v2461
    %v2463 = vmul.f32 %v2424, 1.442695
    %v2464 = vpow.pop %v2463
    %v2465 = vmul.f32 %v2425, 1.442695
    %v2466 = vpow.pop %v2465
    %v2467 = vmul.f32 %v2426, 1.442695
    %v2468 = vpow.pop %v2467
    %v2469 = vmul.f32 %v2427, 1.442695
    %v2470 = vpow.pop %v2469
    %v2471 = vmul.f32 %v2428, 1.442695
    %v2472 = vpow.pop %v2471
    %v2473 = vmul.f32 %v2429, 1.442695
    %v2474 = vpow.pop %v2473
    %v2475 = vmul.f32 %v2430, 1.442695
    %v2476 = vpow.pop %v2475
    %v2477 = vmul.f32 %v2431, 1.442695
    %v2478 = vpow.pop %v2477
    %v2479 = vmul.f32 %v2432, 1.442695
    %v2480 = vpow.pop %v2479
    %v2481 = vmul.f32 %v2433, 1.442695
    %v2482 = vpow.pop %v2481
    %v2483 = vmul.f32 %v2434, 1.442695
    %v2484 = vpow.pop %v2483
    %v2485 = vmul.f32 %v2435, 1.442695
    %v2486 = vpow.pop %v2485
    %v2487 = vmul.f32 %v2436, 1.442695
    %v2488 = vpow.pop %v2487
    %v2489 = vmul.f32 %v2437, 1.442695
    %v2490 = vpow.pop %v2489
    %v2491 = vmul.f32 %v2438, 1.442695
    %v2492 = vpow.pop %v2491
    %v2493 = vmul.f32 %v2439, 1.442695
    %v2494 = vpow.pop %v2493
    %v2495 = vmul.f32 %v2440, 1.442695
    %v2496 = vpow.pop %v2495
    %v2497 = vmul.f32 %v2441, 1.442695
    %v2498 = vpow.pop %v2497
    %v2499 = vmul.f32 %v2442, 1.442695
    %v2500 = vpow.pop %v2499
    %v2501 = vmul.f32 %v2443, 1.442695
    %v2502 = vpow.pop %v2501
    %v2503 = vmul.f32 %v2444, 1.442695
    %v2504 = vpow.pop %v2503
    %v2505 = vmul.f32 %v2445, 1.442695
    %v2506 = vpow.pop %v2505
    %v2507 = vmul.f32 %v2446, 1.442695
    %v2508 = vpow.pop %v2507
    %v2509 = vmul.f32 %v2447, 1.442695
    %v2510 = vpow.pop %v2509
    %v2511 = vmul.f32 %v2448, 1.442695
    %v2512 = vpow.pop %v2511
    %v2513 = vsel %vm701, %v2450, 0.0
    %v2514 = vsel %vm701, %v2452, 0.0
    %v2515 = vadd.f32 %v2513, %v2514
    %v2516 = vrot.slane %v2515, 4
    %v2517 = vadd.f32 %v2515, %v2516
    %v2518 = vrot.slane %v2517, 2
    %v2519 = vadd.f32 %v2517, %v2518
    %v2520 = vrot.slane %v2519, 1
    %v2521 = vadd.f32 %v2519, %v2520
    %v2522 = vsel %vm701, %v2454, 0.0
    %v2523 = vsel %vm701, %v2456, 0.0
    %v2524 = vadd.f32 %v2522, %v2523
    %v2525 = vrot.slane %v2524, 4
    %v2526 = vadd.f32 %v2524, %v2525
    %v2527 = vrot.slane %v2526, 2
    %v2528 = vadd.f32 %v2526, %v2527
    %v2529 = vrot.slane %v2528, 1
    %v2530 = vadd.f32 %v2528, %v2529
    %v2531 = vsel %vm701, %v2458, 0.0
    %v2532 = vsel %vm701, %v2460, 0.0
    %v2533 = vadd.f32 %v2531, %v2532
    %v2534 = vrot.slane %v2533, 4
    %v2535 = vadd.f32 %v2533, %v2534
    %v2536 = vrot.slane %v2535, 2
    %v2537 = vadd.f32 %v2535, %v2536
    %v2538 = vrot.slane %v2537, 1
    %v2539 = vadd.f32 %v2537, %v2538
    %v2540 = vsel %vm701, %v2462, 0.0
    %v2541 = vsel %vm701, %v2464, 0.0
    %v2542 = vadd.f32 %v2540, %v2541
    %v2543 = vrot.slane %v2542, 4
    %v2544 = vadd.f32 %v2542, %v2543
    %v2545 = vrot.slane %v2544, 2
    %v2546 = vadd.f32 %v2544, %v2545
    %v2547 = vrot.slane %v2546, 1
    %v2548 = vadd.f32 %v2546, %v2547
    %v2549 = vsel %vm701, %v2466, 0.0
    %v2550 = vsel %vm701, %v2468, 0.0
    %v2551 = vadd.f32 %v2549, %v2550
    %v2552 = vrot.slane %v2551, 4
    %v2553 = vadd.f32 %v2551, %v2552
    %v2554 = vrot.slane %v2553, 2
    %v2555 = vadd.f32 %v2553, %v2554
    %v2556 = vrot.slane %v2555, 1
    %v2557 = vadd.f32 %v2555, %v2556
    %v2558 = vsel %vm701, %v2470, 0.0
    %v2559 = vsel %vm701, %v2472, 0.0
    %v2560 = vadd.f32 %v2558, %v2559
    %v2561 = vrot.slane %v2560, 4
    %v2562 = vadd.f32 %v2560, %v2561
    %v2563 = vrot.slane %v2562, 2
    %v2564 = vadd.f32 %v2562, %v2563
    %v2565 = vrot.slane %v2564, 1
    %v2566 = vadd.f32 %v2564, %v2565
    %v2567 = vsel %vm701, %v2474, 0.0
    %v2568 = vsel %vm701, %v2476, 0.0
    %v2569 = vadd.f32 %v2567, %v2568
    %v2570 = vrot.slane %v2569, 4
    %v2571 = vadd.f32 %v2569, %v2570
    %v2572 = vrot.slane %v2571, 2
    %v2573 = vadd.f32 %v2571, %v2572
    %v2574 = vrot.slane %v2573, 1
    %v2575 = vadd.f32 %v2573, %v2574
    %v2576 = vsel %vm701, %v2478, 0.0
    %v2577 = vsel %vm701, %v2480, 0.0
    %v2578 = vadd.f32 %v2576, %v2577
    %v2579 = vrot.slane %v2578, 4
    %v2580 = vadd.f32 %v2578, %v2579
    %v2581 = vrot.slane %v2580, 2
    %v2582 = vadd.f32 %v2580, %v2581
    %v2583 = vrot.slane %v2582, 1
    %v2584 = vadd.f32 %v2582, %v2583
    %v2585 = vsel %vm701, %v2482, 0.0
    %v2586 = vsel %vm701, %v2484, 0.0
    %v2587 = vadd.f32 %v2585, %v2586
    %v2588 = vrot.slane %v2587, 4
    %v2589 = vadd.f32 %v2587, %v2588
    %v2590 = vrot.slane %v2589, 2
    %v2591 = vadd.f32 %v2589, %v2590
    %v2592 = vrot.slane %v2591, 1
    %v2593 = vadd.f32 %v2591, %v2592
    %v2594 = vsel %vm701, %v2486, 0.0
    %v2595 = vsel %vm701, %v2488, 0.0
    %v2596 = vadd.f32 %v2594, %v2595
    %v2597 = vrot.slane %v2596, 4
    %v2598 = vadd.f32 %v2596, %v2597
    %v2599 = vrot.slane %v2598, 2
    %v2600 = vadd.f32 %v2598, %v2599
    %v2601 = vrot.slane %v2600, 1
    %v2602 = vadd.f32 %v2600, %v2601
    %v2603 = vsel %vm701, %v2490, 0.0
    %v2604 = vsel %vm701, %v2492, 0.0
    %v2605 = vadd.f32 %v2603, %v2604
    %v2606 = vrot.slane %v2605, 4
    %v2607 = vadd.f32 %v2605, %v2606
    %v2608 = vrot.slane %v2607, 2
    %v2609 = vadd.f32 %v2607, %v2608
    %v2610 = vrot.slane %v2609, 1
    %v2611 = vadd.f32 %v2609, %v2610
    %v2612 = vsel %vm701, %v2494, 0.0
    %v2613 = vsel %vm701, %v2496, 0.0
    %v2614 = vadd.f32 %v2612, %v2613
    %v2615 = vrot.slane %v2614, 4
    %v2616 = vadd.f32 %v2614, %v2615
    %v2617 = vrot.slane %v2616, 2
    %v2618 = vadd.f32 %v2616, %v2617
    %v2619 = vrot.slane %v2618, 1
    %v2620 = vadd.f32 %v2618, %v2619
    %v2621 = vsel %vm701, %v2498, 0.0
    %v2622 = vsel %vm701, %v2500, 0.0
    %v2623 = vadd.f32 %v2621, %v2622
    %v2624 = vrot.slane %v2623, 4
    %v2625 = vadd.f32 %v2623, %v2624
    %v2626 = vrot.slane %v2625, 2
    %v2627 = vadd.f32 %v2625, %v2626
    %v2628 = vrot.slane %v2627, 1
    %v2629 = vadd.f32 %v2627, %v2628
    %v2630 = vsel %vm701, %v2502, 0.0
    %v2631 = vsel %vm701, %v2504, 0.0
    %v2632 = vadd.f32 %v2630, %v2631
    %v2633 = vrot.slane %v2632, 4
    %v2634 = vadd.f32 %v2632, %v2633
    %v2635 = vrot.slane %v2634, 2
    %v2636 = vadd.f32 %v2634, %v2635
    %v2637 = vrot.slane %v2636, 1
    %v2638 = vadd.f32 %v2636, %v2637
    %v2639 = vsel %vm701, %v2506, 0.0
    %v2640 = vsel %vm701, %v2508, 0.0
    %v2641 = vadd.f32 %v2639, %v2640
    %v2642 = vrot.slane %v2641, 4
    %v2643 = vadd.f32 %v2641, %v2642
    %v2644 = vrot.slane %v2643, 2
    %v2645 = vadd.f32 %v2643, %v2644
    %v2646 = vrot.slane %v2645, 1
    %v2647 = vadd.f32 %v2645, %v2646
    %v2648 = vsel %vm701, %v2510, 0.0
    %v2649 = vsel %vm701, %v2512, 0.0
    %v2650 = vadd.f32 %v2648, %v2649
    %v2651 = vrot.slane %v2650, 4
    %v2652 = vadd.f32 %v2650, %v2651
    %v2653 = vrot.slane %v2652, 2
    %v2654 = vadd.f32 %v2652, %v2653
    %v2655 = vrot.slane %v2654, 1
    %v2656 = vadd.f32 %v2654, %v2655
    %v2657 = vrcp.pop %v2521
    %v2658 = vmul.f32 %v2521, %v2657
    %v2659 = vsub.f32 1.0, %v2658
    %v2660 = vmul.f32 %v2657, %v2659
    %v2661 = vadd.f32 %v2657, %v2660
    %vm2662 = vweird.f32 %v2521
    %vm2663 = vweird.f32 %v2657
    %vm2664 = vmor %vm2662, %vm2663
    %v2665 = vsel %vm2664, %v2657, %v2661
    %v2666 = vand.u32 2147483647, %v2521
    %vm2667 = vcmp.eq.f32.partialorder %v2666, 8.507059e+37
    %v2668 = vand.u32 %v2521, 2147483648
    %v2669 = vor.u32 1.1754944e-38, %v2668
    %v2670 = vsel %vm2667, %v2669, %v2665
    %v2671 = vmul.f32 1.0, %v2670
    %v2672 = vrcp.pop %v2530
    %v2673 = vmul.f32 %v2530, %v2672
    %v2674 = vsub.f32 1.0, %v2673
    %v2675 = vmul.f32 %v2672, %v2674
    %v2676 = vadd.f32 %v2672, %v2675
    %vm2677 = vweird.f32 %v2530
    %vm2678 = vweird.f32 %v2672
    %vm2679 = vmor %vm2677, %vm2678
    %v2680 = vsel %vm2679, %v2672, %v2676
    %v2681 = vand.u32 2147483647, %v2530
    %vm2682 = vcmp.eq.f32.partialorder %v2681, 8.507059e+37
    %v2683 = vand.u32 %v2530, 2147483648
    %v2684 = vor.u32 1.1754944e-38, %v2683
    %v2685 = vsel %vm2682, %v2684, %v2680
    %v2686 = vmul.f32 1.0, %v2685
    %v2687 = vrcp.pop %v2539
    %v2688 = vmul.f32 %v2539, %v2687
    %v2689 = vsub.f32 1.0, %v2688
    %v2690 = vmul.f32 %v2687, %v2689
    %v2691 = vadd.f32 %v2687, %v2690
    %vm2692 = vweird.f32 %v2539
    %vm2693 = vweird.f32 %v2687
    %vm2694 = vmor %vm2692, %vm2693
    %v2695 = vsel %vm2694, %v2687, %v2691
    %v2696 = vand.u32 2147483647, %v2539
    %vm2697 = vcmp.eq.f32.partialorder %v2696, 8.507059e+37
    %v2698 = vand.u32 %v2539, 2147483648
    %v2699 = vor.u32 1.1754944e-38, %v2698
    %v2700 = vsel %vm2697, %v2699, %v2695
    %v2701 = vmul.f32 1.0, %v2700
    %v2702 = vrcp.pop %v2548
    %v2703 = vmul.f32 %v2548, %v2702
    %v2704 = vsub.f32 1.0, %v2703
    %v2705 = vmul.f32 %v2702, %v2704
    %v2706 = vadd.f32 %v2702, %v2705
    %vm2707 = vweird.f32 %v2548
    %vm2708 = vweird.f32 %v2702
    %vm2709 = vmor %vm2707, %vm2708
    %v2710 = vsel %vm2709, %v2702, %v2706
    %v2711 = vand.u32 2147483647, %v2548
    %vm2712 = vcmp.eq.f32.partialorder %v2711, 8.507059e+37
    %v2713 = vand.u32 %v2548, 2147483648
    %v2714 = vor.u32 1.1754944e-38, %v2713
    %v2715 = vsel %vm2712, %v2714, %v2710
    %v2716 = vmul.f32 1.0, %v2715
    %v2717 = vrcp.pop %v2557
    %v2718 = vmul.f32 %v2557, %v2717
    %v2719 = vsub.f32 1.0, %v2718
    %v2720 = vmul.f32 %v2717, %v2719
    %v2721 = vadd.f32 %v2717, %v2720
    %vm2722 = vweird.f32 %v2557
    %vm2723 = vweird.f32 %v2717
    %vm2724 = vmor %vm2722, %vm2723
    %v2725 = vsel %vm2724, %v2717, %v2721
    %v2726 = vand.u32 2147483647, %v2557
    %vm2727 = vcmp.eq.f32.partialorder %v2726, 8.507059e+37
    %v2728 = vand.u32 %v2557, 2147483648
    %v2729 = vor.u32 1.1754944e-38, %v2728
    %v2730 = vsel %vm2727, %v2729, %v2725
    %v2731 = vmul.f32 1.0, %v2730
    %v2732 = vrcp.pop %v2566
    %v2733 = vmul.f32 %v2566, %v2732
    %v2734 = vsub.f32 1.0, %v2733
    %v2735 = vmul.f32 %v2732, %v2734
    %v2736 = vadd.f32 %v2732, %v2735
    %vm2737 = vweird.f32 %v2566
    %vm2738 = vweird.f32 %v2732
    %vm2739 = vmor %vm2737, %vm2738
    %v2740 = vsel %vm2739, %v2732, %v2736
    %v2741 = vand.u32 2147483647, %v2566
    %vm2742 = vcmp.eq.f32.partialorder %v2741, 8.507059e+37
    %v2743 = vand.u32 %v2566, 2147483648
    %v2744 = vor.u32 1.1754944e-38, %v2743
    %v2745 = vsel %vm2742, %v2744, %v2740
    %v2746 = vmul.f32 1.0, %v2745
    %v2747 = vrcp.pop %v2575
    %v2748 = vmul.f32 %v2575, %v2747
    %v2749 = vsub.f32 1.0, %v2748
    %v2750 = vmul.f32 %v2747, %v2749
    %v2751 = vadd.f32 %v2747, %v2750
    %vm2752 = vweird.f32 %v2575
    %vm2753 = vweird.f32 %v2747
    %vm2754 = vmor %vm2752, %vm2753
    %v2755 = vsel %vm2754, %v2747, %v2751
    %v2756 = vand.u32 2147483647, %v2575
    %vm2757 = vcmp.eq.f32.partialorder %v2756, 8.507059e+37
    %v2758 = vand.u32 %v2575, 2147483648
    %v2759 = vor.u32 1.1754944e-38, %v2758
    %v2760 = vsel %vm2757, %v2759, %v2755
    %v2761 = vmul.f32 1.0, %v2760
    %v2762 = vrcp.pop %v2584
    %v2763 = vmul.f32 %v2584, %v2762
    %v2764 = vsub.f32 1.0, %v2763
    %v2765 = vmul.f32 %v2762, %v2764
    %v2766 = vadd.f32 %v2762, %v2765
    %vm2767 = vweird.f32 %v2584
    %vm2768 = vweird.f32 %v2762
    %vm2769 = vmor %vm2767, %vm2768
    %v2770 = vsel %vm2769, %v2762, %v2766
    %v2771 = vand.u32 2147483647, %v2584
    %vm2772 = vcmp.eq.f32.partialorder %v2771, 8.507059e+37
    %v2773 = vand.u32 %v2584, 2147483648
    %v2774 = vor.u32 1.1754944e-38, %v2773
    %v2775 = vsel %vm2772, %v2774, %v2770
    %v2776 = vmul.f32 1.0, %v2775
    %v2777 = vrcp.pop %v2593
    %v2778 = vmul.f32 %v2593, %v2777
    %v2779 = vsub.f32 1.0, %v2778
    %v2780 = vmul.f32 %v2777, %v2779
    %v2781 = vadd.f32 %v2777, %v2780
    %vm2782 = vweird.f32 %v2593
    %vm2783 = vweird.f32 %v2777
    %vm2784 = vmor %vm2782, %vm2783
    %v2785 = vsel %vm2784, %v2777, %v2781
    %v2786 = vand.u32 2147483647, %v2593
    %vm2787 = vcmp.eq.f32.partialorder %v2786, 8.507059e+37
    %v2788 = vand.u32 %v2593, 2147483648
    %v2789 = vor.u32 1.1754944e-38, %v2788
    %v2790 = vsel %vm2787, %v2789, %v2785
    %v2791 = vmul.f32 1.0, %v2790
    %v2792 = vrcp.pop %v2602
    %v2793 = vmul.f32 %v2602, %v2792
    %v2794 = vsub.f32 1.0, %v2793
    %v2795 = vmul.f32 %v2792, %v2794
    %v2796 = vadd.f32 %v2792, %v2795
    %vm2797 = vweird.f32 %v2602
    %vm2798 = vweird.f32 %v2792
    %vm2799 = vmor %vm2797, %vm2798
    %v2800 = vsel %vm2799, %v2792, %v2796
    %v2801 = vand.u32 2147483647, %v2602
    %vm2802 = vcmp.eq.f32.partialorder %v2801, 8.507059e+37
    %v2803 = vand.u32 %v2602, 2147483648
    %v2804 = vor.u32 1.1754944e-38, %v2803
    %v2805 = vsel %vm2802, %v2804, %v2800
    %v2806 = vmul.f32 1.0, %v2805
    %v2807 = vrcp.pop %v2611
    %v2808 = vmul.f32 %v2611, %v2807
    %v2809 = vsub.f32 1.0, %v2808
    %v2810 = vmul.f32 %v2807, %v2809
    %v2811 = vadd.f32 %v2807, %v2810
    %vm2812 = vweird.f32 %v2611
    %vm2813 = vweird.f32 %v2807
    %vm2814 = vmor %vm2812, %vm2813
    %v2815 = vsel %vm2814, %v2807, %v2811
    %v2816 = vand.u32 2147483647, %v2611
    %vm2817 = vcmp.eq.f32.partialorder %v2816, 8.507059e+37
    %v2818 = vand.u32 %v2611, 2147483648
    %v2819 = vor.u32 1.1754944e-38, %v2818
    %v2820 = vsel %vm2817, %v2819, %v2815
    %v2821 = vmul.f32 1.0, %v2820
    %v2822 = vrcp.pop %v2620
    %v2823 = vmul.f32 %v2620, %v2822
    %v2824 = vsub.f32 1.0, %v2823
    %v2825 = vmul.f32 %v2822, %v2824
    %v2826 = vadd.f32 %v2822, %v2825
    %vm2827 = vweird.f32 %v2620
    %vm2828 = vweird.f32 %v2822
    %vm2829 = vmor %vm2827, %vm2828
    %v2830 = vsel %vm2829, %v2822, %v2826
    %v2831 = vand.u32 2147483647, %v2620
    %vm2832 = vcmp.eq.f32.partialorder %v2831, 8.507059e+37
    %v2833 = vand.u32 %v2620, 2147483648
    %v2834 = vor.u32 1.1754944e-38, %v2833
    %v2835 = vsel %vm2832, %v2834, %v2830
    %v2836 = vmul.f32 1.0, %v2835
    %v2837 = vrcp.pop %v2629
    %v2838 = vmul.f32 %v2629, %v2837
    %v2839 = vsub.f32 1.0, %v2838
    %v2840 = vmul.f32 %v2837, %v2839
    %v2841 = vadd.f32 %v2837, %v2840
    %vm2842 = vweird.f32 %v2629
    %vm2843 = vweird.f32 %v2837
    %vm2844 = vmor %vm2842, %vm2843
    %v2845 = vsel %vm2844, %v2837, %v2841
    %v2846 = vand.u32 2147483647, %v2629
    %vm2847 = vcmp.eq.f32.partialorder %v2846, 8.507059e+37
    %v2848 = vand.u32 %v2629, 2147483648
    %v2849 = vor.u32 1.1754944e-38, %v2848
    %v2850 = vsel %vm2847, %v2849, %v2845
    %v2851 = vmul.f32 1.0, %v2850
    %v2852 = vrcp.pop %v2638
    %v2853 = vmul.f32 %v2638, %v2852
    %v2854 = vsub.f32 1.0, %v2853
    %v2855 = vmul.f32 %v2852, %v2854
    %v2856 = vadd.f32 %v2852, %v2855
    %vm2857 = vweird.f32 %v2638
    %vm2858 = vweird.f32 %v2852
    %vm2859 = vmor %vm2857, %vm2858
    %v2860 = vsel %vm2859, %v2852, %v2856
    %v2861 = vand.u32 2147483647, %v2638
    %vm2862 = vcmp.eq.f32.partialorder %v2861, 8.507059e+37
    %v2863 = vand.u32 %v2638, 2147483648
    %v2864 = vor.u32 1.1754944e-38, %v2863
    %v2865 = vsel %vm2862, %v2864, %v2860
    %v2866 = vmul.f32 1.0, %v2865
    %v2867 = vrcp.pop %v2647
    %v2868 = vmul.f32 %v2647, %v2867
    %v2869 = vsub.f32 1.0, %v2868
    %v2870 = vmul.f32 %v2867, %v2869
    %v2871 = vadd.f32 %v2867, %v2870
    %vm2872 = vweird.f32 %v2647
    %vm2873 = vweird.f32 %v2867
    %vm2874 = vmor %vm2872, %vm2873
    %v2875 = vsel %vm2874, %v2867, %v2871
    %v2876 = vand.u32 2147483647, %v2647
    %vm2877 = vcmp.eq.f32.partialorder %v2876, 8.507059e+37
    %v2878 = vand.u32 %v2647, 2147483648
    %v2879 = vor.u32 1.1754944e-38, %v2878
    %v2880 = vsel %vm2877, %v2879, %v2875
    %v2881 = vmul.f32 1.0, %v2880
    %v2882 = vrcp.pop %v2656
    %v2883 = vmul.f32 %v2656, %v2882
    %v2884 = vsub.f32 1.0, %v2883
    %v2885 = vmul.f32 %v2882, %v2884
    %v2886 = vadd.f32 %v2882, %v2885
    %vm2887 = vweird.f32 %v2656
    %vm2888 = vweird.f32 %v2882
    %vm2889 = vmor %vm2887, %vm2888
    %v2890 = vsel %vm2889, %v2882, %v2886
    %v2891 = vand.u32 2147483647, %v2656
    %vm2892 = vcmp.eq.f32.partialorder %v2891, 8.507059e+37
    %v2893 = vand.u32 %v2656, 2147483648
    %v2894 = vor.u32 1.1754944e-38, %v2893
    %v2895 = vsel %vm2892, %v2894, %v2890
    %v2896 = vmul.f32 1.0, %v2895
    %v2897 = vmul.f32 %v2450, %v2671
    %v2898 = vmul.f32 %v2452, %v2671
    %v2899 = vmul.f32 %v2454, %v2686
    %v2900 = vmul.f32 %v2456, %v2686
    %v2901 = vmul.f32 %v2458, %v2701
    %v2902 = vmul.f32 %v2460, %v2701
    %v2903 = vmul.f32 %v2462, %v2716
    %v2904 = vmul.f32 %v2464, %v2716
    %v2905 = vmul.f32 %v2466, %v2731
    %v2906 = vmul.f32 %v2468, %v2731
    %v2907 = vmul.f32 %v2470, %v2746
    %v2908 = vmul.f32 %v2472, %v2746
    %v2909 = vmul.f32 %v2474, %v2761
    %v2910 = vmul.f32 %v2476, %v2761
    %v2911 = vmul.f32 %v2478, %v2776
    %v2912 = vmul.f32 %v2480, %v2776
    %v2913 = vmul.f32 %v2482, %v2791
    %v2914 = vmul.f32 %v2484, %v2791
    %v2915 = vmul.f32 %v2486, %v2806
    %v2916 = vmul.f32 %v2488, %v2806
    %v2917 = vmul.f32 %v2490, %v2821
    %v2918 = vmul.f32 %v2492, %v2821
    %v2919 = vmul.f32 %v2494, %v2836
    %v2920 = vmul.f32 %v2496, %v2836
    %v2921 = vmul.f32 %v2498, %v2851
    %v2922 = vmul.f32 %v2500, %v2851
    %v2923 = vmul.f32 %v2502, %v2866
    %v2924 = vmul.f32 %v2504, %v2866
    %v2925 = vmul.f32 %v2506, %v2881
    %v2926 = vmul.f32 %v2508, %v2881
    %v2927 = vmul.f32 %v2510, %v2896
    %v2928 = vmul.f32 %v2512, %v2896
    %v2930 = vsel %vm701, %v2897, 0
    %v2933 = vsel %vm701, %v2898, 0
    %v2936 = vsel %vm701, %v2899, 0
    %v2939 = vsel %vm701, %v2900, 0
    %v2942 = vsel %vm701, %v2901, 0
    %v2945 = vsel %vm701, %v2902, 0
    %v2948 = vsel %vm701, %v2903, 0
    %v2951 = vsel %vm701, %v2904, 0
    %v2954 = vsel %vm701, %v2905, 0
    %v2957 = vsel %vm701, %v2906, 0
    %v2960 = vsel %vm701, %v2907, 0
    %v2963 = vsel %vm701, %v2908, 0
    %v2966 = vsel %vm701, %v2909, 0
    %v2969 = vsel %vm701, %v2910, 0
    %v2972 = vsel %vm701, %v2911, 0
    %v2975 = vsel %vm701, %v2912, 0
    %v2978 = vsel %vm701, %v2913, 0
    %v2981 = vsel %vm701, %v2914, 0
    %v2984 = vsel %vm701, %v2915, 0
    %v2987 = vsel %vm701, %v2916, 0
    %v2990 = vsel %vm701, %v2917, 0
    %v2993 = vsel %vm701, %v2918, 0
    %v2996 = vsel %vm701, %v2919, 0
    %v2999 = vsel %vm701, %v2920, 0
    %v3002 = vsel %vm701, %v2921, 0
    %v3005 = vsel %vm701, %v2922, 0
    %v3008 = vsel %vm701, %v2923, 0
    %v3011 = vsel %vm701, %v2924, 0
    %v3014 = vsel %vm701, %v2925, 0
    %v3017 = vsel %vm701, %v2926, 0
    %v3020 = vsel %vm701, %v2927, 0
    %v3023 = vsel %vm701, %v2928, 0
    %3025 = vmatpush.msra.mxu0 0.0
    %3026 = vmatpush.msra.mxu0 0.0
    %3027 = vmatpush.msra.mxu0 0.0
    %3028 = vmatpush.msra.mxu0 0.0
    %3029 = vmatpush.msra.mxu0 0.0
    %3030 = vmatpush.msra.mxu0 0.0
    %3031 = vmatpush.msra.mxu0 0.0
    %3032 = vmatpush.msra.mxu0 0.0
    %3033 = vmatpush.msra.mxu0 0.0
    %3034 = vmatpush.msra.mxu0 0.0
    %3035 = vmatpush.msra.mxu0 0.0
    %3036 = vmatpush.msra.mxu0 0.0
    %3037 = vmatpush.msra.mxu0 0.0
    %3038 = vmatpush.msra.mxu0 0.0
    %3039 = vmatpush.msra.mxu0 %v1456
    %3040 = vmatpush.msra.mxu0 %v147
    %3041 = vmatmul.f32.gmra.mxu0 %v2930
    %v3042 = vpop.f32.mrf.mxu0
    %v3043 = vadd.f32 0.0, %v3042
    %3044 = vmatmul.f32.gmra.mxu0 %v2933
    %v3045 = vpop.f32.mrf.mxu0
    %v3046 = vadd.f32 0.0, %v3045
    %3047 = vmatmul.f32.gmra.mxu0 %v2936
    %v3048 = vpop.f32.mrf.mxu0
    %v3049 = vadd.f32 0.0, %v3048
    %3050 = vmatmul.f32.gmra.mxu0 %v2939
    %v3051 = vpop.f32.mrf.mxu0
    %v3052 = vadd.f32 0.0, %v3051
    %3053 = vmatmul.f32.gmra.mxu0 %v2942
    %v3054 = vpop.f32.mrf.mxu0
    %v3055 = vadd.f32 0.0, %v3054
    %3056 = vmatmul.f32.gmra.mxu0 %v2945
    %v3057 = vpop.f32.mrf.mxu0
    %v3058 = vadd.f32 0.0, %v3057
    %3059 = vmatmul.f32.gmra.mxu0 %v2948
    %v3060 = vpop.f32.mrf.mxu0
    %v3061 = vadd.f32 0.0, %v3060
    %3062 = vmatmul.f32.gmra.mxu0 %v2951
    %v3063 = vpop.f32.mrf.mxu0
    %v3064 = vadd.f32 0.0, %v3063
    %3065 = vmatmul.f32.gmra.mxu0 %v2954
    %v3066 = vpop.f32.mrf.mxu0
    %v3067 = vadd.f32 0.0, %v3066
    %3068 = vmatmul.f32.gmra.mxu0 %v2957
    %v3069 = vpop.f32.mrf.mxu0
    %v3070 = vadd.f32 0.0, %v3069
    %3071 = vmatmul.f32.gmra.mxu0 %v2960
    %v3072 = vpop.f32.mrf.mxu0
    %v3073 = vadd.f32 0.0, %v3072
    %3074 = vmatmul.f32.gmra.mxu0 %v2963
    %v3075 = vpop.f32.mrf.mxu0
    %v3076 = vadd.f32 0.0, %v3075
    %3077 = vmatmul.f32.gmra.mxu0 %v2966
    %v3078 = vpop.f32.mrf.mxu0
    %v3079 = vadd.f32 0.0, %v3078
    %3080 = vmatmul.f32.gmra.mxu0 %v2969
    %v3081 = vpop.f32.mrf.mxu0
    %v3082 = vadd.f32 0.0, %v3081
    %3083 = vmatmul.f32.gmra.mxu0 %v2972
    %v3084 = vpop.f32.mrf.mxu0
    %v3085 = vadd.f32 0.0, %v3084
    %3086 = vmatmul.f32.gmra.mxu0 %v2975
    %v3087 = vpop.f32.mrf.mxu0
    %v3088 = vadd.f32 0.0, %v3087
    %3089 = vmatmul.f32.gmra.mxu0 %v2978
    %v3090 = vpop.f32.mrf.mxu0
    %v3091 = vadd.f32 0.0, %v3090
    %3092 = vmatmul.f32.gmra.mxu0 %v2981
    %v3093 = vpop.f32.mrf.mxu0
    %v3094 = vadd.f32 0.0, %v3093
    %3095 = vmatmul.f32.gmra.mxu0 %v2984
    %v3096 = vpop.f32.mrf.mxu0
    %v3097 = vadd.f32 0.0, %v3096
    %3098 = vmatmul.f32.gmra.mxu0 %v2987
    %v3099 = vpop.f32.mrf.mxu0
    %v3100 = vadd.f32 0.0, %v3099
    %3101 = vmatmul.f32.gmra.mxu0 %v2990
    %v3102 = vpop.f32.mrf.mxu0
    %v3103 = vadd.f32 0.0, %v3102
    %3104 = vmatmul.f32.gmra.mxu0 %v2993
    %v3105 = vpop.f32.mrf.mxu0
    %v3106 = vadd.f32 0.0, %v3105
    %3107 = vmatmul.f32.gmra.mxu0 %v2996
    %v3108 = vpop.f32.mrf.mxu0
    %v3109 = vadd.f32 0.0, %v3108
    %3110 = vmatmul.f32.gmra.mxu0 %v2999
    %v3111 = vpop.f32.mrf.mxu0
    %v3112 = vadd.f32 0.0, %v3111
    %3113 = vmatmul.f32.gmra.mxu0 %v3002
    %v3114 = vpop.f32.mrf.mxu0
    %v3115 = vadd.f32 0.0, %v3114
    %3116 = vmatmul.f32.gmra.mxu0 %v3005
    %v3117 = vpop.f32.mrf.mxu0
    %v3118 = vadd.f32 0.0, %v3117
    %3119 = vmatmul.f32.gmra.mxu0 %v3008
    %v3120 = vpop.f32.mrf.mxu0
    %v3121 = vadd.f32 0.0, %v3120
    %3122 = vmatmul.f32.gmra.mxu0 %v3011
    %v3123 = vpop.f32.mrf.mxu0
    %v3124 = vadd.f32 0.0, %v3123
    %3125 = vmatmul.f32.gmra.mxu0 %v3014
    %v3126 = vpop.f32.mrf.mxu0
    %v3127 = vadd.f32 0.0, %v3126
    %3128 = vmatmul.f32.gmra.mxu0 %v3017
    %v3129 = vpop.f32.mrf.mxu0
    %v3130 = vadd.f32 0.0, %v3129
    %3131 = vmatmul.f32.gmra.mxu0 %v3020
    %v3132 = vpop.f32.mrf.mxu0
    %v3133 = vadd.f32 0.0, %v3132
    %3134 = vmatmul.f32.gmra.mxu0 %v3023
    %v3135 = vpop.f32.mrf.mxu0
    %v3136 = vadd.f32 0.0, %v3135
    %3137 = vdwg.mxu0
    %v3138 = vmul.f32 %v3043, %v1956
    %v3139 = vmul.f32 %v3046, %v1959
    %v3140 = vmul.f32 %v3049, %v1956
    %v3141 = vmul.f32 %v3052, %v1959
    %v3142 = vmul.f32 %v3055, %v1956
    %v3143 = vmul.f32 %v3058, %v1959
    %v3144 = vmul.f32 %v3061, %v1956
    %v3145 = vmul.f32 %v3064, %v1959
    %v3146 = vmul.f32 %v3067, %v1956
    %v3147 = vmul.f32 %v3070, %v1959
    %v3148 = vmul.f32 %v3073, %v1956
    %v3149 = vmul.f32 %v3076, %v1959
    %v3150 = vmul.f32 %v3079, %v1956
    %v3151 = vmul.f32 %v3082, %v1959
    %v3152 = vmul.f32 %v3085, %v1956
    %v3153 = vmul.f32 %v3088, %v1959
    %v3154 = vmul.f32 %v3091, %v1956
    %v3155 = vmul.f32 %v3094, %v1959
    %v3156 = vmul.f32 %v3097, %v1956
    %v3157 = vmul.f32 %v3100, %v1959
    %v3158 = vmul.f32 %v3103, %v1956
    %v3159 = vmul.f32 %v3106, %v1959
    %v3160 = vmul.f32 %v3109, %v1956
    %v3161 = vmul.f32 %v3112, %v1959
    %v3162 = vmul.f32 %v3115, %v1956
    %v3163 = vmul.f32 %v3118, %v1959
    %v3164 = vmul.f32 %v3121, %v1956
    %v3165 = vmul.f32 %v3124, %v1959
    %v3166 = vmul.f32 %v3127, %v1956
    %v3167 = vmul.f32 %v3130, %v1959
    %v3168 = vmul.f32 %v3133, %v1956
    %v3169 = vmul.f32 %v3136, %v1959
    %v3170 = vadd.f32 %v3138, %v3139
    %v3171 = vrot.slane %v3170, 4
    %v3172 = vadd.f32 %v3170, %v3171
    %v3173 = vrot.slane %v3172, 2
    %v3174 = vadd.f32 %v3172, %v3173
    %v3175 = vrot.slane %v3174, 1
    %v3176 = vadd.f32 %v3174, %v3175
    %v3177 = vadd.f32 %v3140, %v3141
    %v3178 = vrot.slane %v3177, 4
    %v3179 = vadd.f32 %v3177, %v3178
    %v3180 = vrot.slane %v3179, 2
    %v3181 = vadd.f32 %v3179, %v3180
    %v3182 = vrot.slane %v3181, 1
    %v3183 = vadd.f32 %v3181, %v3182
    %v3184 = vadd.f32 %v3142, %v3143
    %v3185 = vrot.slane %v3184, 4
    %v3186 = vadd.f32 %v3184, %v3185
    %v3187 = vrot.slane %v3186, 2
    %v3188 = vadd.f32 %v3186, %v3187
    %v3189 = vrot.slane %v3188, 1
    %v3190 = vadd.f32 %v3188, %v3189
    %v3191 = vadd.f32 %v3144, %v3145
    %v3192 = vrot.slane %v3191, 4
    %v3193 = vadd.f32 %v3191, %v3192
    %v3194 = vrot.slane %v3193, 2
    %v3195 = vadd.f32 %v3193, %v3194
    %v3196 = vrot.slane %v3195, 1
    %v3197 = vadd.f32 %v3195, %v3196
    %v3198 = vadd.f32 %v3146, %v3147
    %v3199 = vrot.slane %v3198, 4
    %v3200 = vadd.f32 %v3198, %v3199
    %v3201 = vrot.slane %v3200, 2
    %v3202 = vadd.f32 %v3200, %v3201
    %v3203 = vrot.slane %v3202, 1
    %v3204 = vadd.f32 %v3202, %v3203
    %v3205 = vadd.f32 %v3148, %v3149
    %v3206 = vrot.slane %v3205, 4
    %v3207 = vadd.f32 %v3205, %v3206
    %v3208 = vrot.slane %v3207, 2
    %v3209 = vadd.f32 %v3207, %v3208
    %v3210 = vrot.slane %v3209, 1
    %v3211 = vadd.f32 %v3209, %v3210
    %v3212 = vadd.f32 %v3150, %v3151
    %v3213 = vrot.slane %v3212, 4
    %v3214 = vadd.f32 %v3212, %v3213
    %v3215 = vrot.slane %v3214, 2
    %v3216 = vadd.f32 %v3214, %v3215
    %v3217 = vrot.slane %v3216, 1
    %v3218 = vadd.f32 %v3216, %v3217
    %v3219 = vadd.f32 %v3152, %v3153
    %v3220 = vrot.slane %v3219, 4
    %v3221 = vadd.f32 %v3219, %v3220
    %v3222 = vrot.slane %v3221, 2
    %v3223 = vadd.f32 %v3221, %v3222
    %v3224 = vrot.slane %v3223, 1
    %v3225 = vadd.f32 %v3223, %v3224
    %v3226 = vadd.f32 %v3154, %v3155
    %v3227 = vrot.slane %v3226, 4
    %v3228 = vadd.f32 %v3226, %v3227
    %v3229 = vrot.slane %v3228, 2
    %v3230 = vadd.f32 %v3228, %v3229
    %v3231 = vrot.slane %v3230, 1
    %v3232 = vadd.f32 %v3230, %v3231
    %v3233 = vadd.f32 %v3156, %v3157
    %v3234 = vrot.slane %v3233, 4
    %v3235 = vadd.f32 %v3233, %v3234
    %v3236 = vrot.slane %v3235, 2
    %v3237 = vadd.f32 %v3235, %v3236
    %v3238 = vrot.slane %v3237, 1
    %v3239 = vadd.f32 %v3237, %v3238
    %v3240 = vadd.f32 %v3158, %v3159
    %v3241 = vrot.slane %v3240, 4
    %v3242 = vadd.f32 %v3240, %v3241
    %v3243 = vrot.slane %v3242, 2
    %v3244 = vadd.f32 %v3242, %v3243
    %v3245 = vrot.slane %v3244, 1
    %v3246 = vadd.f32 %v3244, %v3245
    %v3247 = vadd.f32 %v3160, %v3161
    %v3248 = vrot.slane %v3247, 4
    %v3249 = vadd.f32 %v3247, %v3248
    %v3250 = vrot.slane %v3249, 2
    %v3251 = vadd.f32 %v3249, %v3250
    %v3252 = vrot.slane %v3251, 1
    %v3253 = vadd.f32 %v3251, %v3252
    %v3254 = vadd.f32 %v3162, %v3163
    %v3255 = vrot.slane %v3254, 4
    %v3256 = vadd.f32 %v3254, %v3255
    %v3257 = vrot.slane %v3256, 2
    %v3258 = vadd.f32 %v3256, %v3257
    %v3259 = vrot.slane %v3258, 1
    %v3260 = vadd.f32 %v3258, %v3259
    %v3261 = vadd.f32 %v3164, %v3165
    %v3262 = vrot.slane %v3261, 4
    %v3263 = vadd.f32 %v3261, %v3262
    %v3264 = vrot.slane %v3263, 2
    %v3265 = vadd.f32 %v3263, %v3264
    %v3266 = vrot.slane %v3265, 1
    %v3267 = vadd.f32 %v3265, %v3266
    %v3268 = vadd.f32 %v3166, %v3167
    %v3269 = vrot.slane %v3268, 4
    %v3270 = vadd.f32 %v3268, %v3269
    %v3271 = vrot.slane %v3270, 2
    %v3272 = vadd.f32 %v3270, %v3271
    %v3273 = vrot.slane %v3272, 1
    %v3274 = vadd.f32 %v3272, %v3273
    %v3275 = vadd.f32 %v3168, %v3169
    %v3276 = vrot.slane %v3275, 4
    %v3277 = vadd.f32 %v3275, %v3276
    %v3278 = vrot.slane %v3277, 2
    %v3279 = vadd.f32 %v3277, %v3278
    %v3280 = vrot.slane %v3279, 1
    %v3281 = vadd.f32 %v3279, %v3280
    %v3283 = vperm.slane %v1879, 0
    %v3285 = vadd.f32 %v3176, %v3283
    %v3286 = vadd.f32 %v3183, %v3283
    %v3287 = vadd.f32 %v3190, %v3283
    %v3288 = vadd.f32 %v3197, %v3283
    %v3289 = vadd.f32 %v3204, %v3283
    %v3290 = vadd.f32 %v3211, %v3283
    %v3291 = vadd.f32 %v3218, %v3283
    %v3292 = vadd.f32 %v3225, %v3283
    %v3293 = vadd.f32 %v3232, %v3283
    %v3294 = vadd.f32 %v3239, %v3283
    %v3295 = vadd.f32 %v3246, %v3283
    %v3296 = vadd.f32 %v3253, %v3283
    %v3297 = vadd.f32 %v3260, %v3283
    %v3298 = vadd.f32 %v3267, %v3283
    %v3299 = vadd.f32 %v3274, %v3283
    %v3300 = vadd.f32 %v3281, %v3283
    %vm3301 = vcmp.gt.f32.partialorder %v3285, 0.0
    %vm3302 = vcmp.gt.f32.partialorder %v3286, 0.0
    %vm3303 = vcmp.gt.f32.partialorder %v3287, 0.0
    %vm3304 = vcmp.gt.f32.partialorder %v3288, 0.0
    %vm3305 = vcmp.gt.f32.partialorder %v3289, 0.0
    %vm3306 = vcmp.gt.f32.partialorder %v3290, 0.0
    %vm3307 = vcmp.gt.f32.partialorder %v3291, 0.0
    %vm3308 = vcmp.gt.f32.partialorder %v3292, 0.0
    %vm3309 = vcmp.gt.f32.partialorder %v3293, 0.0
    %vm3310 = vcmp.gt.f32.partialorder %v3294, 0.0
    %vm3311 = vcmp.gt.f32.partialorder %v3295, 0.0
    %vm3312 = vcmp.gt.f32.partialorder %v3296, 0.0
    %vm3313 = vcmp.gt.f32.partialorder %v3297, 0.0
    %vm3314 = vcmp.gt.f32.partialorder %v3298, 0.0
    %vm3315 = vcmp.gt.f32.partialorder %v3299, 0.0
    %vm3316 = vcmp.gt.f32.partialorder %v3300, 0.0
    %v3317 = vmin.f32 %v3285, 0.0
    %v3318 = vmin.f32 %v3286, 0.0
    %v3319 = vmin.f32 %v3287, 0.0
    %v3320 = vmin.f32 %v3288, 0.0
    %v3321 = vmin.f32 %v3289, 0.0
    %v3322 = vmin.f32 %v3290, 0.0
    %v3323 = vmin.f32 %v3291, 0.0
    %v3324 = vmin.f32 %v3292, 0.0
    %v3325 = vmin.f32 %v3293, 0.0
    %v3326 = vmin.f32 %v3294, 0.0
    %v3327 = vmin.f32 %v3295, 0.0
    %v3328 = vmin.f32 %v3296, 0.0
    %v3329 = vmin.f32 %v3297, 0.0
    %v3330 = vmin.f32 %v3298, 0.0
    %v3331 = vmin.f32 %v3299, 0.0
    %v3332 = vmin.f32 %v3300, 0.0
    %v3333 = vmul.f32 %v3317, 1.442695
    %v3334 = vpow.pop %v3333
    %v3335 = vmul.f32 %v3318, 1.442695
    %v3336 = vpow.pop %v3335
    %v3337 = vmul.f32 %v3319, 1.442695
    %v3338 = vpow.pop %v3337
    %v3339 = vmul.f32 %v3320, 1.442695
    %v3340 = vpow.pop %v3339
    %v3341 = vmul.f32 %v3321, 1.442695
    %v3342 = vpow.pop %v3341
    %v3343 = vmul.f32 %v3322, 1.442695
    %v3344 = vpow.pop %v3343
    %v3345 = vmul.f32 %v3323, 1.442695
    %v3346 = vpow.pop %v3345
    %v3347 = vmul.f32 %v3324, 1.442695
    %v3348 = vpow.pop %v3347
    %v3349 = vmul.f32 %v3325, 1.442695
    %v3350 = vpow.pop %v3349
    %v3351 = vmul.f32 %v3326, 1.442695
    %v3352 = vpow.pop %v3351
    %v3353 = vmul.f32 %v3327, 1.442695
    %v3354 = vpow.pop %v3353
    %v3355 = vmul.f32 %v3328, 1.442695
    %v3356 = vpow.pop %v3355
    %v3357 = vmul.f32 %v3329, 1.442695
    %v3358 = vpow.pop %v3357
    %v3359 = vmul.f32 %v3330, 1.442695
    %v3360 = vpow.pop %v3359
    %v3361 = vmul.f32 %v3331, 1.442695
    %v3362 = vpow.pop %v3361
    %v3363 = vmul.f32 %v3332, 1.442695
    %v3364 = vpow.pop %v3363
    %v3365 = vsub.f32 %v3334, 1.0
    %v3366 = vsub.f32 %v3336, 1.0
    %v3367 = vsub.f32 %v3338, 1.0
    %v3368 = vsub.f32 %v3340, 1.0
    %v3369 = vsub.f32 %v3342, 1.0
    %v3370 = vsub.f32 %v3344, 1.0
    %v3371 = vsub.f32 %v3346, 1.0
    %v3372 = vsub.f32 %v3348, 1.0
    %v3373 = vsub.f32 %v3350, 1.0
    %v3374 = vsub.f32 %v3352, 1.0
    %v3375 = vsub.f32 %v3354, 1.0
    %v3376 = vsub.f32 %v3356, 1.0
    %v3377 = vsub.f32 %v3358, 1.0
    %v3378 = vsub.f32 %v3360, 1.0
    %v3379 = vsub.f32 %v3362, 1.0
    %v3380 = vsub.f32 %v3364, 1.0
    %v3381 = vsel %vm3301, %v3285, %v3365
    %v3382 = vsel %vm3302, %v3286, %v3366
    %v3383 = vsel %vm3303, %v3287, %v3367
    %v3384 = vsel %vm3304, %v3288, %v3368
    %v3385 = vsel %vm3305, %v3289, %v3369
    %v3386 = vsel %vm3306, %v3290, %v3370
    %v3387 = vsel %vm3307, %v3291, %v3371
    %v3388 = vsel %vm3308, %v3292, %v3372
    %v3389 = vsel %vm3309, %v3293, %v3373
    %v3390 = vsel %vm3310, %v3294, %v3374
    %v3391 = vsel %vm3311, %v3295, %v3375
    %v3392 = vsel %vm3312, %v3296, %v3376
    %v3393 = vsel %vm3313, %v3297, %v3377
    %v3394 = vsel %vm3314, %v3298, %v3378
    %v3395 = vsel %vm3315, %v3299, %v3379
    %v3396 = vsel %vm3316, %v3300, %v3380
    %v3397 = vld [vmem:[%s11] sm:$0xff]
    %v3398 = vld [vmem:[%s11 + $0x8] sm:$0xff]
    %v3399 = vld [vmem:[%s11 + $0x10] sm:$0xff]
    %v3400 = vld [vmem:[%s11 + $0x18] sm:$0xff]
    %v3401 = vld [vmem:[%s11 + $0x20] sm:$0xff]
    %v3402 = vld [vmem:[%s11 + $0x28] sm:$0xff]
    %v3403 = vld [vmem:[%s11 + $0x30] sm:$0xff]
    %v3404 = vld [vmem:[%s11 + $0x38] sm:$0xff]
    %v3405 = vld [vmem:[%s11 + $0x40] sm:$0xff]
    %v3406 = vld [vmem:[%s11 + $0x48] sm:$0xff]
    %v3407 = vld [vmem:[%s11 + $0x50] sm:$0xff]
    %v3408 = vld [vmem:[%s11 + $0x58] sm:$0xff]
    %v3409 = vld [vmem:[%s11 + $0x60] sm:$0xff]
    %v3410 = vld [vmem:[%s11 + $0x68] sm:$0xff]
    %v3411 = vld [vmem:[%s11 + $0x70] sm:$0xff]
    %v3412 = vld [vmem:[%s11 + $0x78] sm:$0xff]
    %v3413 = vld [vmem:[%s12] sm:$0x1]
    %v3415 = vperm.slane %v3413, 0
    %v3433 = vrot.slane %v3382, 7
    %v3434 = vsel %vm1902, %v3433, %v3381
    %v3435 = vrot.slane %v3383, 6
    %v3436 = vsel %vm1905, %v3435, %v3434
    %v3437 = vrot.slane %v3384, 5
    %v3438 = vsel %vm1908, %v3437, %v3436
    %v3439 = vrot.slane %v3385, 4
    %v3440 = vsel %vm1911, %v3439, %v3438
    %v3441 = vrot.slane %v3386, 3
    %v3442 = vsel %vm1914, %v3441, %v3440
    %v3443 = vrot.slane %v3387, 2
    %v3444 = vsel %vm1917, %v3443, %v3442
    %v3445 = vrot.slane %v3388, 1
    %v3446 = vsel %vm1920, %v3445, %v3444
    %v3447 = vrot.slane %v3390, 7
    %v3448 = vsel %vm1902, %v3447, %v3389
    %v3449 = vrot.slane %v3391, 6
    %v3450 = vsel %vm1905, %v3449, %v3448
    %v3451 = vrot.slane %v3392, 5
    %v3452 = vsel %vm1908, %v3451, %v3450
    %v3453 = vrot.slane %v3393, 4
    %v3454 = vsel %vm1911, %v3453, %v3452
    %v3455 = vrot.slane %v3394, 3
    %v3456 = vsel %vm1914, %v3455, %v3454
    %v3457 = vrot.slane %v3395, 2
    %v3458 = vsel %vm1917, %v3457, %v3456
    %v3459 = vrot.slane %v3396, 1
    %v3460 = vsel %vm1920, %v3459, %v3458
    %3463 = vmatpush.msra.mxu0 %v3412
    %3464 = vmatpush.msra.mxu0 %v3411
    %3465 = vmatpush.msra.mxu0 %v3410
    %3466 = vmatpush.msra.mxu0 %v3409
    %3467 = vmatpush.msra.mxu0 %v3408
    %3468 = vmatpush.msra.mxu0 %v3407
    %3469 = vmatpush.msra.mxu0 %v3406
    %3470 = vmatpush.msra.mxu0 %v3405
    %3471 = vmatpush.msra.mxu0 %v3404
    %3472 = vmatpush.msra.mxu0 %v3403
    %3473 = vmatpush.msra.mxu0 %v3402
    %3474 = vmatpush.msra.mxu0 %v3401
    %3475 = vmatpush.msra.mxu0 %v3400
    %3476 = vmatpush.msra.mxu0 %v3399
    %3477 = vmatpush.msra.mxu0 %v3398
    %3478 = vmatpush.msra.mxu0 %v3397
    %3479 = vmatmul.f32.gmra.mxu0 %v3446
    %v3480 = vpop.f32.mrf.mxu0
    %v3481 = vadd.f32 %v3415, %v3480
    %3482 = vmatmul.f32.gmra.mxu0 %v3460
    %v3483 = vpop.f32.mrf.mxu0
    %v3484 = vadd.f32 %v3415, %v3483
    %3485 = vdwg.mxu0
    %vm3486 = vcmp.gt.f32.partialorder %v3481, 0.0
    %vm3487 = vcmp.gt.f32.partialorder %v3484, 0.0
    %v3488 = vmin.f32 %v3481, 0.0
    %v3489 = vmin.f32 %v3484, 0.0
    %v3490 = vmul.f32 %v3488, 1.442695
    %v3491 = vpow.pop %v3490
    %v3492 = vmul.f32 %v3489, 1.442695
    %v3493 = vpow.pop %v3492
    %v3494 = vsub.f32 %v3491, 1.0
    %v3495 = vsub.f32 %v3493, 1.0
    %v3496 = vsel %vm3486, %v3481, %v3494
    %v3497 = vsel %vm3487, %v3484, %v3495
    %v3498 = vld [vmem:[%s13] sm:$0xff]
    %v3499 = vld [vmem:[%s14] sm:$0x1]
    %v3501 = vperm.slane %v3499, 0
    %vm3503 = vcmask 64512
    %v3505 = vsel %vm3503, %v3496, 0
    %v3508 = vsel %vm3503, %v3497, 0
    %3510 = vmatpush.msra.mxu0 0.0
    %3511 = vmatpush.msra.mxu0 0.0
    %3512 = vmatpush.msra.mxu0 0.0
    %3513 = vmatpush.msra.mxu0 0.0
    %3514 = vmatpush.msra.mxu0 0.0
    %3515 = vmatpush.msra.mxu0 0.0
    %3516 = vmatpush.msra.mxu0 0.0
    %3517 = vmatpush.msra.mxu0 0.0
    %3518 = vmatpush.msra.mxu0 0.0
    %3519 = vmatpush.msra.mxu0 0.0
    %3520 = vmatpush.msra.mxu0 0.0
    %3521 = vmatpush.msra.mxu0 0.0
    %3522 = vmatpush.msra.mxu0 0.0
    %3523 = vmatpush.msra.mxu0 0.0
    %3524 = vmatpush.msra.mxu0 0.0
    %3525 = vmatpush.msra.mxu0 %v3498
    %3526 = vmatmul.f32.gmra.mxu0 %v3505
    %v3527 = vpop.f32.mrf.mxu0
    %v3528 = vadd.f32 %v3501, %v3527
    %3529 = vmatmul.f32.gmra.mxu0 %v3508
    %v3530 = vpop.f32.mrf.mxu0
    %v3531 = vadd.f32 %v3501, %v3530
    %3532 = vdwg.mxu0
    %vm3533 = vcmask 326656
    %v3534 = vsel %vm3533, %v3528, -inf
    %3535 = vmax.xlane.f32.xlu0 %v3534
    %v3536 = vpop.xlane.xlu0 %3535
    %v3537 = vsel %vm3533, %v3531, -inf
    %3538 = vmax.xlane.f32.xlu0 %v3537
    %v3539 = vpop.xlane.xlu0 %3538
    %v3540 = vsub.f32 %v3528, %v3536
    %v3541 = vsub.f32 %v3531, %v3539
    %v3542 = vmul.f32 %v3540, 1.442695
    %v3543 = vpow.pop %v3542
    %v3544 = vmul.f32 %v3541, 1.442695
    %v3545 = vpow.pop %v3544
    %v3546 = vsel %vm3533, %v3543, 0.0
    %3547 = vadd.xlane.f32.xlu0 %v3546
    %v3548 = vpop.xlane.xlu0 %3547
    %v3549 = vsel %vm3533, %v3545, 0.0
    %3550 = vadd.xlane.f32.xlu0 %v3549
    %v3551 = vpop.xlane.xlu0 %3550
    %v3552 = vlog2.pop %v3548
    %v3553 = vmul.f32 %v3552, 0.6931472
    %v3554 = vlog2.pop %v3551
    %v3555 = vmul.f32 %v3554, 0.6931472
    %v3556 = vsub.f32 %v3540, %v3553
    %v3557 = vsub.f32 %v3541, %v3555
    %3558 = vst.msk [vmem:[#allocation2] sm:$0xff] %vm3533, %v3556
    %3559 = vst.msk [vmem:[#allocation2 + $0x8] sm:$0xff] %vm3533, %v3557
    // Predicated region
    $region62: #{tpu_custom_call.1} parent=1 // pred_check
      _
    $region63: #{tpu_custom_call.1} parent=1 // pred_check_branch
      %3561 = sbr.rel (0) target = $region65
    $region64: #{tpu_custom_call.1} parent=1 // pred_region
      %3563 = vsyncadd [#allocation3], 0
      %s3564 = sshll.u32 [#allocation2], 4
      %s3565 = int_to_ptr.vmem [resolvable:$true] %s3564
      %s3566 = sshll.u32 %s15, 4
      %s3567 = int_to_ptr.hbm [resolvable:$true] %s3566
      %3572 = dma.vmem_to_hbm [thread:$0]  %s3565, 256, %s3567, [#allocation3], 128, 128, 8
    $region65: #{tpu_custom_call.1} parent=1 // pred_fallthru
      _
    // Predicated region
    $region66: #{tpu_custom_call.1} parent=1 // pred_check
      _
    $region67: #{tpu_custom_call.1} parent=1 // pred_check_branch
      %3574 = sbr.rel (0) target = $region69
    $region68: #{tpu_custom_call.1} parent=1 // pred_region
      %3576 = dma.done [#allocation3], 256
    $region69: #{tpu_custom_call.1} parent=1 // pred_fallthru
      _
    %3577 = vsyncpa [#allocation3], 1

</llo_original>
